<compile_context>
chip_gen: v5e
topology: v5e:2x2
jax: 0.10.0
libtpu: 0.0.40
codegen_flags: <defaults>
</compile_context>

<pallas_src>
import functools

import jax
import jax.numpy as jnp
from jax import lax
from jax.experimental import pallas as pl
from jax.experimental.pallas import tpu as pltpu


# ---------------------------------------------------------------------------
# Fused Pallas kernel: six (matmul + bias + sigmoid) stages, VMEM-resident
# ---------------------------------------------------------------------------
def _sigmoid_f32(x):
    # sigmoid(x) == 0.5 * (tanh(x/2) + 1): ONE EUP push (tanh) per element
    # instead of two (exp + reciprocal); the 0.5* and +1 ride on the VPU.
    return 0.5 * (jnp.tanh(0.5 * x) + 1.0)


def _make_fused_kernel(n_layers):
    def kernel(x_ref, *rest):
        o_ref = rest[-1]
        h = x_ref[...]                           # (tm, K0), compute dtype
        cdt = h.dtype
        for l in range(n_layers - 1):            # static unroll: stages 1..5
            w = rest[2 * l][...]                 # (kin, kout), compute dtype
            b = rest[2 * l + 1][...]             # (1, kout), f32
            acc = jnp.dot(h, w, preferred_element_type=jnp.float32)
            h = _sigmoid_f32(acc + b).astype(cdt)
        # Last stage: channel-major (n_out, tm) output tile.  The matmul is
        # the native A @ B^T MXU form (pre-transposed weight, no in-kernel
        # transpose); bias/sigmoid stay in f32 and the result is stored with
        # no extra cast (full output precision, lane-dense store).
        wT = rest[2 * (n_layers - 1)][...]       # (n_out, kin), compute dtype
        bT = rest[2 * (n_layers - 1) + 1][...]   # (n_out, 1), f32
        acc = lax.dot_general(wT, h, (((1,), (1,)), ((), ())),
                              preferred_element_type=jnp.float32)
        o_ref[...] = _sigmoid_f32(acc + bT)
    return kernel


def _pick_tm(M):
    """Fixed M tiles + cdiv grid (Pallas masks the ragged last block).
    - tiny M: one full-dim block (always a legal block shape)
    - moderate M: tm=128 -> >=2 grid steps (v7x: both TensorCores busy,
      input/output DMAs pipeline with compute)
    - large M: tm=512 (>=3 steps, ~1.5 MB of f32 intermediates per step)."""
    if M <= 128:
        return M
    if M <= 1024:
        return 128
    return 512


def fused_conv_stack(x0, packed_params, *, compute_dtype=jnp.bfloat16):
    """sigmoid(...sigmoid(x0 @ W1 + b1)... @ W6 + b6) in a single pallas_call.

    x0:            (M, K0) packed activation slab (rows = (n, hb, wb)).
    packed_params: list of (W_i (K_i, N_i), b_i (N_i,)) float32 pairs.
    Returns a channel-major (N_last, M) float32 slab.
    """
    M, K0 = x0.shape
    n_layers = len(packed_params)
    n_out = packed_params[-1][0].shape[1]
    tm = _pick_tm(M)
    grid = (pl.cdiv(M, tm),)

    in_specs = [pl.BlockSpec((tm, K0), lambda i: (i, 0))]
    args = [x0.astype(compute_dtype)]
    for l, (w, b) in enumerate(packed_params):
        kin, kout = w.shape
        if l < n_layers - 1:
            # Full-array, grid-invariant blocks -> resident in VMEM.
            in_specs.append(pl.BlockSpec((kin, kout), lambda i: (0, 0)))
            in_specs.append(pl.BlockSpec((1, kout), lambda i: (0, 0)))
            args.append(w.astype(compute_dtype))
            args.append(b.reshape(1, kout).astype(jnp.float32))
        else:
            # Last layer: pre-transposed weight (n_out, kin) for the A @ B^T
            # MXU form; bias as a column vector for the (n_out, tm) tile.
            in_specs.append(pl.BlockSpec((kout, kin), lambda i: (0, 0)))
            in_specs.append(pl.BlockSpec((kout, 1), lambda i: (0, 0)))
            args.append(w.T.astype(compute_dtype))
            args.append(b.reshape(kout, 1).astype(jnp.float32))

    return pl.pallas_call(
        _make_fused_kernel(n_layers),
        out_shape=jax.ShapeDtypeStruct((n_out, M), jnp.float32),
        grid=grid,
        in_specs=in_specs,
        out_specs=pl.BlockSpec((n_out, tm), lambda i: (0, i)),
        compiler_params=pltpu.CompilerParams(
            dimension_semantics=("parallel",)),
    )(*args)


# ---------------------------------------------------------------------------
# Parameter construction (deterministic, in-script) and packing
# ---------------------------------------------------------------------------
def make_params(key):
    # Weights stored in HWIO layout: (kh, kw, in, out).
    cfgs = [
        (3, 24, 2), (24, 48, 1), (48, 96, 2),
        (96, 208, 1), (208, 384, 1), (384, 192, 1),
    ]
    params = []
    for i, (cin, cout, k) in enumerate(cfgs):
        kw_key, kb_key = jax.random.split(jax.random.fold_in(key, i))
        fan_in = cin * k * k
        bound = 1.0 / jnp.sqrt(fan_in)
        w = jax.random.uniform(kw_key, (k, k, cin, cout), jnp.float32,
                               minval=-bound, maxval=bound)
        b = jax.random.uniform(kb_key, (cout,), jnp.float32,
                               minval=-bound, maxval=bound)
        params.append((w, b, k))
    return params


def pack_params(params):
    """HWIO conv weights -> the 6 matmul (W, b) pairs used by the fused
    kernel.  conv1/conv2 are block-diagonal-expanded (kron with I4) because
    their outputs still carry the 2x2 sub-position axis in the column dim."""
    (w1, b1, _), (w2, b2, _), (w3, b3, _), (w4, b4, _), (w5, b5, _), (w6, b6, _) = params
    eye4 = jnp.eye(4, dtype=jnp.float32)

    def flat(w):  # HWIO (kh, kw, cin, cout) -> (kh*kw*cin, cout)
        kh, kw, cin, cout = w.shape
        return w.reshape(kh * kw * cin, cout)

    return [
        (jnp.kron(eye4, flat(w1)), jnp.tile(b1, 4)),   # conv1: per sub-position
        (jnp.kron(eye4, flat(w2)), jnp.tile(b2, 4)),   # conv2: per sub-position
        (flat(w3), b3),                                # conv3: eats (h2,w2,c) cols
        (flat(w4), b4),
        (flat(w5), b5),
        (flat(w6), b6),
    ]


# ---------------------------------------------------------------------------
# Forward pass (mirrors PyTorch Model.forward; NCHW in -> NCHW out)
# ---------------------------------------------------------------------------
@functools.partial(jax.jit, static_argnames=("compute_dtype",))
def model_forward(x_nchw, packed_params, compute_dtype=jnp.bfloat16):
    N, C, H, W = x_nchw.shape
    assert H % 4 == 0 and W % 4 == 0, "spatial dims must be divisible by 4"
    # One-time relayout (done in the compute dtype to halve HBM traffic):
    # rows = (n, hb, wb) 4x4 super-blocks, cols = (h2, w2, h1, w1, c).
    x = jnp.transpose(x_nchw.astype(compute_dtype), (0, 2, 3, 1))   # NHWC
    x = x.reshape(N, H // 4, 2, 2, W // 4, 2, 2, C)     # n,hb,h2,h1,wb,w2,w1,c
    x = jnp.transpose(x, (0, 1, 4, 2, 5, 3, 6, 7))      # n,hb,wb,h2,w2,h1,w1,c
    x0 = x.reshape(N * (H // 4) * (W // 4), 16 * C)

    # Channel-major (192, M) slab straight from the kernel.
    y = fused_conv_stack(x0, packed_params, compute_dtype=compute_dtype)

    cout = y.shape[0]
    y = y.reshape(cout, N, H // 4, W // 4)
    # Moves contiguous Hq*Wq blocks (pure reshape when N == 1).
    return jnp.transpose(y, (1, 0, 2, 3))               # NCHW, quarter res


# ---------------------------------------------------------------------------
# Pure-JAX reference (lax conv) for correctness checking
# ---------------------------------------------------------------------------
def model_forward_ref(x_nchw, params):
    x = jnp.transpose(x_nchw, (0, 2, 3, 1))
    for (wgt, bias, k) in params:
        y = lax.conv_general_dilated(
            x, wgt, window_strides=(k, k), padding="VALID",
            dimension_numbers=("NHWC", "HWIO", "NHWC"))
        x = jax.nn.sigmoid(y + bias)
    return jnp.transpose(x, (0, 3, 1, 2))


if __name__ == "__main__":
    key = jax.random.PRNGKey(0)
    pkey, xkey = jax.random.split(key)
    params = make_params(pkey)
    packed = pack_params(params)

    # Small input consistent with the module (NCHW, spatial divisible by 4).
    # M = 2*12*12 = 288 -> tm=128, grid=3 with a ragged last block, so the
    # multi-step + masked-tail code path is exercised.
    x = jax.random.normal(xkey, (2, 3, 48, 48), jnp.float32)

    ref = jax.block_until_ready(model_forward_ref(x, params))

    # Default path: bf16 MXU operands, f32 accumulate / bias / sigmoid.
    out = jax.block_until_ready(model_forward(x, packed))
    assert out.shape == (2, 192, 12, 12), out.shape
    assert jnp.allclose(out, ref, atol=5e-2), "bf16 mismatch vs reference"

    # f32-operand path for a tight correctness check.
    out_f32 = jax.block_until_ready(
        model_forward(x, packed, compute_dtype=jnp.float32))
    assert out_f32.shape == (2, 192, 12, 12), out_f32.shape
    assert jnp.allclose(out_f32, ref, atol=1e-4, rtol=1e-4), "f32 mismatch vs reference"

    print("KERNEL_OK")
</pallas_src>

<mosaic_0001>
module attributes {stable_mosaic.version = 11 : i64} {
  func.func @kernel(%arg0: i32, %arg1: memref<128x48xbf16, #tpu.memory_space<vmem>>, %arg2: memref<48x96xbf16, #tpu.memory_space<vmem>>, %arg3: memref<1x96xf32, #tpu.memory_space<vmem>>, %arg4: memref<96x192xbf16, #tpu.memory_space<vmem>>, %arg5: memref<1x192xf32, #tpu.memory_space<vmem>>, %arg6: memref<192x96xbf16, #tpu.memory_space<vmem>>, %arg7: memref<1x96xf32, #tpu.memory_space<vmem>>, %arg8: memref<96x208xbf16, #tpu.memory_space<vmem>>, %arg9: memref<1x208xf32, #tpu.memory_space<vmem>>, %arg10: memref<208x384xbf16, #tpu.memory_space<vmem>>, %arg11: memref<1x384xf32, #tpu.memory_space<vmem>>, %arg12: memref<192x384xbf16, #tpu.memory_space<vmem>>, %arg13: memref<192x1xf32, #tpu.memory_space<vmem>>, %arg14: memref<192x128xf32, #tpu.memory_space<vmem>>) attributes {dimension_semantics = [#tpu.dimension_semantics<parallel>], iteration_bounds = array<i64: 3>, scalar_prefetch = 0 : i64, scratch_operands = 0 : i64, tpu.core_type = #tpu.core_type<tc>, window_params = [{transform_indices = @transform_0, window_bounds = array<i64: 128, 48>}, {pipeline_mode = #tpu.pipeline_mode<synchronous>, transform_indices = @transform_1, window_bounds = array<i64: 48, 96>}, {pipeline_mode = #tpu.pipeline_mode<synchronous>, transform_indices = @transform_2, window_bounds = array<i64: 1, 96>}, {pipeline_mode = #tpu.pipeline_mode<synchronous>, transform_indices = @transform_3, window_bounds = array<i64: 96, 192>}, {pipeline_mode = #tpu.pipeline_mode<synchronous>, transform_indices = @transform_4, window_bounds = array<i64: 1, 192>}, {pipeline_mode = #tpu.pipeline_mode<synchronous>, transform_indices = @transform_5, window_bounds = array<i64: 192, 96>}, {pipeline_mode = #tpu.pipeline_mode<synchronous>, transform_indices = @transform_6, window_bounds = array<i64: 1, 96>}, {pipeline_mode = #tpu.pipeline_mode<synchronous>, transform_indices = @transform_7, window_bounds = array<i64: 96, 208>}, {pipeline_mode = #tpu.pipeline_mode<synchronous>, transform_indices = @transform_8, window_bounds = array<i64: 1, 208>}, {pipeline_mode = #tpu.pipeline_mode<synchronous>, transform_indices = @transform_9, window_bounds = array<i64: 208, 384>}, {pipeline_mode = #tpu.pipeline_mode<synchronous>, transform_indices = @transform_10, window_bounds = array<i64: 1, 384>}, {pipeline_mode = #tpu.pipeline_mode<synchronous>, transform_indices = @transform_11, window_bounds = array<i64: 192, 384>}, {pipeline_mode = #tpu.pipeline_mode<synchronous>, transform_indices = @transform_12, window_bounds = array<i64: 192, 1>}, {transform_indices = @transform_13, window_bounds = array<i64: 192, 128>}]} {
    %c0 = arith.constant 0 : index
    %c0_0 = arith.constant 0 : index
    %0 = vector.load %arg1[%c0, %c0_0] : memref<128x48xbf16, #tpu.memory_space<vmem>>, vector<128x48xbf16>
    %c0_1 = arith.constant 0 : index
    %c0_2 = arith.constant 0 : index
    %1 = vector.load %arg2[%c0_1, %c0_2] : memref<48x96xbf16, #tpu.memory_space<vmem>>, vector<48x96xbf16>
    %c0_3 = arith.constant 0 : index
    %c0_4 = arith.constant 0 : index
    %2 = vector.load %arg3[%c0_3, %c0_4] : memref<1x96xf32, #tpu.memory_space<vmem>>, vector<1x96xf32>
    %cst = arith.constant dense<0.000000e+00> : vector<128x96xf32>
    %3 = tpu.matmul %0, %1, %cst {dimension_numbers = #tpu.dot_dimension_numbers<[1], [0], [0], [1], [0, 0, 1, 1], [], []>} : vector<128x48xbf16>, vector<48x96xbf16>, vector<128x96xf32> -> vector<128x96xf32>
    %4 = vector.broadcast %2 : vector<1x96xf32> to vector<128x96xf32>
    %5 = arith.addf %3, %4 : vector<128x96xf32>
    %cst_5 = arith.constant 5.000000e-01 : f32
    %6 = vector.broadcast %cst_5 : f32 to vector<128x96xf32>
    %7 = arith.mulf %6, %5 : vector<128x96xf32>
    %8 = math.tanh %7 : vector<128x96xf32>
    %cst_6 = arith.constant 1.000000e+00 : f32
    %9 = vector.broadcast %cst_6 : f32 to vector<128x96xf32>
    %10 = arith.addf %8, %9 : vector<128x96xf32>
    %cst_7 = arith.constant 5.000000e-01 : f32
    %11 = vector.broadcast %cst_7 : f32 to vector<128x96xf32>
    %12 = arith.mulf %11, %10 : vector<128x96xf32>
    %13 = arith.truncf %12 : vector<128x96xf32> to vector<128x96xbf16>
    %c0_8 = arith.constant 0 : index
    %c0_9 = arith.constant 0 : index
    %14 = vector.load %arg4[%c0_8, %c0_9] : memref<96x192xbf16, #tpu.memory_space<vmem>>, vector<96x192xbf16>
    %c0_10 = arith.constant 0 : index
    %c0_11 = arith.constant 0 : index
    %15 = vector.load %arg5[%c0_10, %c0_11] : memref<1x192xf32, #tpu.memory_space<vmem>>, vector<1x192xf32>
    %cst_12 = arith.constant dense<0.000000e+00> : vector<128x192xf32>
    %16 = tpu.matmul %13, %14, %cst_12 {dimension_numbers = #tpu.dot_dimension_numbers<[1], [0], [0], [1], [0, 0, 1, 1], [], []>} : vector<128x96xbf16>, vector<96x192xbf16>, vector<128x192xf32> -> vector<128x192xf32>
    %17 = vector.broadcast %15 : vector<1x192xf32> to vector<128x192xf32>
    %18 = arith.addf %16, %17 : vector<128x192xf32>
    %cst_13 = arith.constant 5.000000e-01 : f32
    %19 = vector.broadcast %cst_13 : f32 to vector<128x192xf32>
    %20 = arith.mulf %19, %18 : vector<128x192xf32>
    %21 = math.tanh %20 : vector<128x192xf32>
    %cst_14 = arith.constant 1.000000e+00 : f32
    %22 = vector.broadcast %cst_14 : f32 to vector<128x192xf32>
    %23 = arith.addf %21, %22 : vector<128x192xf32>
    %cst_15 = arith.constant 5.000000e-01 : f32
    %24 = vector.broadcast %cst_15 : f32 to vector<128x192xf32>
    %25 = arith.mulf %24, %23 : vector<128x192xf32>
    %26 = arith.truncf %25 : vector<128x192xf32> to vector<128x192xbf16>
    %c0_16 = arith.constant 0 : index
    %c0_17 = arith.constant 0 : index
    %27 = vector.load %arg6[%c0_16, %c0_17] : memref<192x96xbf16, #tpu.memory_space<vmem>>, vector<192x96xbf16>
    %c0_18 = arith.constant 0 : index
    %c0_19 = arith.constant 0 : index
    %28 = vector.load %arg7[%c0_18, %c0_19] : memref<1x96xf32, #tpu.memory_space<vmem>>, vector<1x96xf32>
    %cst_20 = arith.constant dense<0.000000e+00> : vector<128x96xf32>
    %29 = tpu.matmul %26, %27, %cst_20 {dimension_numbers = #tpu.dot_dimension_numbers<[1], [0], [0], [1], [0, 0, 1, 1], [], []>} : vector<128x192xbf16>, vector<192x96xbf16>, vector<128x96xf32> -> vector<128x96xf32>
    %30 = vector.broadcast %28 : vector<1x96xf32> to vector<128x96xf32>
    %31 = arith.addf %29, %30 : vector<128x96xf32>
    %cst_21 = arith.constant 5.000000e-01 : f32
    %32 = vector.broadcast %cst_21 : f32 to vector<128x96xf32>
    %33 = arith.mulf %32, %31 : vector<128x96xf32>
    %34 = math.tanh %33 : vector<128x96xf32>
    %cst_22 = arith.constant 1.000000e+00 : f32
    %35 = vector.broadcast %cst_22 : f32 to vector<128x96xf32>
    %36 = arith.addf %34, %35 : vector<128x96xf32>
    %cst_23 = arith.constant 5.000000e-01 : f32
    %37 = vector.broadcast %cst_23 : f32 to vector<128x96xf32>
    %38 = arith.mulf %37, %36 : vector<128x96xf32>
    %39 = arith.truncf %38 : vector<128x96xf32> to vector<128x96xbf16>
    %c0_24 = arith.constant 0 : index
    %c0_25 = arith.constant 0 : index
    %40 = vector.load %arg8[%c0_24, %c0_25] : memref<96x208xbf16, #tpu.memory_space<vmem>>, vector<96x208xbf16>
    %c0_26 = arith.constant 0 : index
    %c0_27 = arith.constant 0 : index
    %41 = vector.load %arg9[%c0_26, %c0_27] : memref<1x208xf32, #tpu.memory_space<vmem>>, vector<1x208xf32>
    %cst_28 = arith.constant dense<0.000000e+00> : vector<128x208xf32>
    %42 = tpu.matmul %39, %40, %cst_28 {dimension_numbers = #tpu.dot_dimension_numbers<[1], [0], [0], [1], [0, 0, 1, 1], [], []>} : vector<128x96xbf16>, vector<96x208xbf16>, vector<128x208xf32> -> vector<128x208xf32>
    %43 = vector.broadcast %41 : vector<1x208xf32> to vector<128x208xf32>
    %44 = arith.addf %42, %43 : vector<128x208xf32>
    %cst_29 = arith.constant 5.000000e-01 : f32
    %45 = vector.broadcast %cst_29 : f32 to vector<128x208xf32>
    %46 = arith.mulf %45, %44 : vector<128x208xf32>
    %47 = math.tanh %46 : vector<128x208xf32>
    %cst_30 = arith.constant 1.000000e+00 : f32
    %48 = vector.broadcast %cst_30 : f32 to vector<128x208xf32>
    %49 = arith.addf %47, %48 : vector<128x208xf32>
    %cst_31 = arith.constant 5.000000e-01 : f32
    %50 = vector.broadcast %cst_31 : f32 to vector<128x208xf32>
    %51 = arith.mulf %50, %49 : vector<128x208xf32>
    %52 = arith.truncf %51 : vector<128x208xf32> to vector<128x208xbf16>
    %c0_32 = arith.constant 0 : index
    %c0_33 = arith.constant 0 : index
    %53 = vector.load %arg10[%c0_32, %c0_33] : memref<208x384xbf16, #tpu.memory_space<vmem>>, vector<208x384xbf16>
    %c0_34 = arith.constant 0 : index
    %c0_35 = arith.constant 0 : index
    %54 = vector.load %arg11[%c0_34, %c0_35] : memref<1x384xf32, #tpu.memory_space<vmem>>, vector<1x384xf32>
    %cst_36 = arith.constant dense<0.000000e+00> : vector<128x384xf32>
    %55 = tpu.matmul %52, %53, %cst_36 {dimension_numbers = #tpu.dot_dimension_numbers<[1], [0], [0], [1], [0, 0, 1, 1], [], []>} : vector<128x208xbf16>, vector<208x384xbf16>, vector<128x384xf32> -> vector<128x384xf32>
    %56 = vector.broadcast %54 : vector<1x384xf32> to vector<128x384xf32>
    %57 = arith.addf %55, %56 : vector<128x384xf32>
    %cst_37 = arith.constant 5.000000e-01 : f32
    %58 = vector.broadcast %cst_37 : f32 to vector<128x384xf32>
    %59 = arith.mulf %58, %57 : vector<128x384xf32>
    %60 = math.tanh %59 : vector<128x384xf32>
    %cst_38 = arith.constant 1.000000e+00 : f32
    %61 = vector.broadcast %cst_38 : f32 to vector<128x384xf32>
    %62 = arith.addf %60, %61 : vector<128x384xf32>
    %cst_39 = arith.constant 5.000000e-01 : f32
    %63 = vector.broadcast %cst_39 : f32 to vector<128x384xf32>
    %64 = arith.mulf %63, %62 : vector<128x384xf32>
    %65 = arith.truncf %64 : vector<128x384xf32> to vector<128x384xbf16>
    %c0_40 = arith.constant 0 : index
    %c0_41 = arith.constant 0 : index
    %66 = vector.load %arg12[%c0_40, %c0_41] : memref<192x384xbf16, #tpu.memory_space<vmem>>, vector<192x384xbf16>
    %c0_42 = arith.constant 0 : index
    %c0_43 = arith.constant 0 : index
    %67 = vector.load %arg13[%c0_42, %c0_43] : memref<192x1xf32, #tpu.memory_space<vmem>>, vector<192x1xf32>
    %cst_44 = arith.constant dense<0.000000e+00> : vector<192x128xf32>
    %68 = tpu.matmul %66, %65, %cst_44 {dimension_numbers = #tpu.dot_dimension_numbers<[1], [1], [0], [0], [0, 0, 1, 0], [], []>} : vector<192x384xbf16>, vector<128x384xbf16>, vector<192x128xf32> -> vector<192x128xf32>
    %69 = vector.broadcast %67 : vector<192x1xf32> to vector<192x128xf32>
    %70 = arith.addf %68, %69 : vector<192x128xf32>
    %cst_45 = arith.constant 5.000000e-01 : f32
    %71 = vector.broadcast %cst_45 : f32 to vector<192x128xf32>
    %72 = arith.mulf %71, %70 : vector<192x128xf32>
    %73 = math.tanh %72 : vector<192x128xf32>
    %cst_46 = arith.constant 1.000000e+00 : f32
    %74 = vector.broadcast %cst_46 : f32 to vector<192x128xf32>
    %75 = arith.addf %73, %74 : vector<192x128xf32>
    %cst_47 = arith.constant 5.000000e-01 : f32
    %76 = vector.broadcast %cst_47 : f32 to vector<192x128xf32>
    %77 = arith.mulf %76, %75 : vector<192x128xf32>
    %c0_48 = arith.constant 0 : index
    %c0_49 = arith.constant 0 : index
    %78 = vector.load %arg14[%c0_48, %c0_49] : memref<192x128xf32, #tpu.memory_space<vmem>>, vector<192x128xf32>
    tpu.vector_store %arg14[%c0_48, %c0_49], %77 {strides = array<i32>} : memref<192x128xf32, #tpu.memory_space<vmem>>, vector<192x128xf32>,
    return
  }
  func.func @transform_0(%arg0: i32) -> (i32, i32) {
    %c0_i32 = arith.constant 0 : i32
    %c0_i32_0 = arith.constant 0 : i32
    return %arg0, %c0_i32 : i32, i32
  }
  func.func @transform_1(%arg0: i32) -> (i32, i32) {
    %c0_i32 = arith.constant 0 : i32
    %c0_i32_0 = arith.constant 0 : i32
    %c0_i32_1 = arith.constant 0 : i32
    return %c0_i32, %c0_i32_0 : i32, i32
  }
  func.func @transform_2(%arg0: i32) -> (i32, i32) {
    %c0_i32 = arith.constant 0 : i32
    %c0_i32_0 = arith.constant 0 : i32
    %c0_i32_1 = arith.constant 0 : i32
    return %c0_i32, %c0_i32_0 : i32, i32
  }
  func.func @transform_3(%arg0: i32) -> (i32, i32) {
    %c0_i32 = arith.constant 0 : i32
    %c0_i32_0 = arith.constant 0 : i32
    %c0_i32_1 = arith.constant 0 : i32
    return %c0_i32, %c0_i32_0 : i32, i32
  }
  func.func @transform_4(%arg0: i32) -> (i32, i32) {
    %c0_i32 = arith.constant 0 : i32
    %c0_i32_0 = arith.constant 0 : i32
    %c0_i32_1 = arith.constant 0 : i32
    return %c0_i32, %c0_i32_0 : i32, i32
  }
  func.func @transform_5(%arg0: i32) -> (i32, i32) {
    %c0_i32 = arith.constant 0 : i32
    %c0_i32_0 = arith.constant 0 : i32
    %c0_i32_1 = arith.constant 0 : i32
    return %c0_i32, %c0_i32_0 : i32, i32
  }
  func.func @transform_6(%arg0: i32) -> (i32, i32) {
    %c0_i32 = arith.constant 0 : i32
    %c0_i32_0 = arith.constant 0 : i32
    %c0_i32_1 = arith.constant 0 : i32
    return %c0_i32, %c0_i32_0 : i32, i32
  }
  func.func @transform_7(%arg0: i32) -> (i32, i32) {
    %c0_i32 = arith.constant 0 : i32
    %c0_i32_0 = arith.constant 0 : i32
    %c0_i32_1 = arith.constant 0 : i32
    return %c0_i32, %c0_i32_0 : i32, i32
  }
  func.func @transform_8(%arg0: i32) -> (i32, i32) {
    %c0_i32 = arith.constant 0 : i32
    %c0_i32_0 = arith.constant 0 : i32
    %c0_i32_1 = arith.constant 0 : i32
    return %c0_i32, %c0_i32_0 : i32, i32
  }
  func.func @transform_9(%arg0: i32) -> (i32, i32) {
    %c0_i32 = arith.constant 0 : i32
    %c0_i32_0 = arith.constant 0 : i32
    %c0_i32_1 = arith.constant 0 : i32
    return %c0_i32, %c0_i32_0 : i32, i32
  }
  func.func @transform_10(%arg0: i32) -> (i32, i32) {
    %c0_i32 = arith.constant 0 : i32
    %c0_i32_0 = arith.constant 0 : i32
    %c0_i32_1 = arith.constant 0 : i32
    return %c0_i32, %c0_i32_0 : i32, i32
  }
  func.func @transform_11(%arg0: i32) -> (i32, i32) {
    %c0_i32 = arith.constant 0 : i32
    %c0_i32_0 = arith.constant 0 : i32
    %c0_i32_1 = arith.constant 0 : i32
    return %c0_i32, %c0_i32_0 : i32, i32
  }
  func.func @transform_12(%arg0: i32) -> (i32, i32) {
    %c0_i32 = arith.constant 0 : i32
    %c0_i32_0 = arith.constant 0 : i32
    %c0_i32_1 = arith.constant 0 : i32
    return %c0_i32, %c0_i32_0 : i32, i32
  }
  func.func @transform_13(%arg0: i32) -> (i32, i32) {
    %c0_i32 = arith.constant 0 : i32
    %c0_i32_0 = arith.constant 0 : i32
    return %c0_i32, %arg0 : i32, i32
  }
}

</mosaic_0001>

<llo_original>
// kernel: model_forward.1
$region0: #{model_forward.1}
  #allocation0 [shape = 'u32[]', space=smem, size = 0x4, offset = 0x4, fixed_abs, tag = 'smem constant byte address 0x4 - core index']
  #allocation1 [shape = 'u32[72,128]{1,0:T(1,128)}', space=vmem, size = 0x9000, scoped, tag = 'internal scratch']
  %s0 = inlined_call_operand.vmem [shape: bf16[288,48], index: 0, kind: input, shape index: {}]
  %s1 = inlined_call_operand.vmem [shape: bf16[48,96], index: 1, kind: input, shape index: {}]
  %s2 = inlined_call_operand.vmem [shape: f32[1,96], index: 2, kind: input, shape index: {}]
  %s3 = inlined_call_operand.vmem [shape: bf16[96,192], index: 3, kind: input, shape index: {}]
  %s4 = inlined_call_operand.vmem [shape: f32[1,192], index: 4, kind: input, shape index: {}]
  %s5 = inlined_call_operand.vmem [shape: bf16[192,96], index: 5, kind: input, shape index: {}]
  %s6 = inlined_call_operand.vmem [shape: f32[1,96], index: 6, kind: input, shape index: {}]
  %s7 = inlined_call_operand.vmem [shape: bf16[96,208], index: 7, kind: input, shape index: {}]
  %s8 = inlined_call_operand.vmem [shape: f32[1,208], index: 8, kind: input, shape index: {}]
  %s9 = inlined_call_operand.vmem [shape: bf16[208,384], index: 9, kind: input, shape index: {}]
  %s10 = inlined_call_operand.vmem [shape: f32[1,384], index: 10, kind: input, shape index: {}]
  %s11 = inlined_call_operand.vmem [shape: bf16[192,384], index: 11, kind: input, shape index: {}]
  %s12 = inlined_call_operand.vmem [shape: f32[192,1], index: 12, kind: input, shape index: {}]
  %s13 = inlined_call_operand.vmem [shape: f32[192,288], index: 13, kind: output, shape index: {}]
  %s14 = sld [smem:[#allocation0]]
  $region119: #{model_forward.1} parent=0
    _
  %s16 = ssub.s32 1, %s14
  %s17 = scalar_select 0, %s16, %s14
  $region1: #{model_forward.1} parent=0
    #allocation2 [shape = 'u8[196608]{0}', space=vmem, size = 0x30000, scoped, tag = 'output window, operand 0']
    loop: start=0, step=1, limit=5
    $region2: #{model_forward.1} parent=1 // loop_pre_header
      _
    $region3: #{model_forward.1} parent=1 // loop_header
      %s19 = sphi 0, %s23
      %p20 = scmp.ge.s32.totalorder %s19, 5
      %s29 = sphi 0, %s31
      %s32 = sphi 0, %s29
      %s33 = sphi 0, %s32
      %s49 = sphi 0, %s33
      %s53 = sphi 0, %s53
      %s55 = sphi 0, %s53
      %s56 = sphi 0, %s55
      %s70 = sphi 0, %s56
      %s74 = sphi 0, %s74
      %s76 = sphi 0, %s74
      %s77 = sphi 0, %s76
      %s91 = sphi 0, %s77
      %s95 = sphi 0, %s95
      %s97 = sphi 0, %s95
      %s98 = sphi 0, %s97
      %s112 = sphi 0, %s98
      %s116 = sphi 0, %s116
      %s118 = sphi 0, %s116
      %s119 = sphi 0, %s118
      %s133 = sphi 0, %s119
      %s137 = sphi 0, %s137
      %s139 = sphi 0, %s137
      %s140 = sphi 0, %s139
      %s154 = sphi 0, %s140
      %s158 = sphi 0, %s158
      %s160 = sphi 0, %s158
      %s161 = sphi 0, %s160
      %s175 = sphi 0, %s161
      %s179 = sphi 0, %s179
      %s181 = sphi 0, %s179
      %s182 = sphi 0, %s181
      %s196 = sphi 0, %s182
      %s200 = sphi 0, %s200
      %s202 = sphi 0, %s200
      %s203 = sphi 0, %s202
      %s217 = sphi 0, %s203
      %s221 = sphi 0, %s221
      %s223 = sphi 0, %s221
      %s224 = sphi 0, %s223
      %s238 = sphi 0, %s224
      %s242 = sphi 0, %s242
      %s244 = sphi 0, %s242
      %s245 = sphi 0, %s244
      %s259 = sphi 0, %s245
      %s263 = sphi 0, %s263
      %s265 = sphi 0, %s263
      %s266 = sphi 0, %s265
      %s280 = sphi 0, %s266
      %s284 = sphi 0, %s284
      %s286 = sphi 0, %s284
      %s287 = sphi 0, %s286
      %s301 = sphi 0, %s287
      %s307 = sphi 0, %s309
      %s310 = sphi 0, %s307
      %s311 = sphi 0, %s310
      %s327 = sphi 0, %s311
    $region4: #{model_forward.1} parent=1 // loop_header_branch
      %22 = sbr.rel (%p20) target = $region8
    $region5: #{model_forward.1} parent=1 // loop_body
      %s24 = ssub.s32 %s19, 1
      %s25 = ssub.s32 %s19, 2
      %s26 = sadd.s32 %s19, 1
      %s27 = ssub.s32 %s19, %s26
      %p28 = scmp.eq.s32.totalorder %s27, 0
      %s30 = sadd.s32 %s29, 1
      %s31 = scalar_select %p28, %s29, %s30
      %p34 = pneg %p28
      %p35 = scmp.eq.s32.totalorder %s19, 2
      %p36 = por %p34, %p35
      %p37 = scmp.ne.s32.totalorder %s29, %s32
      %p38 = scmp.eq.s32.totalorder %s19, 0
      %p39 = por %p37, %p38
      %p40 = scmp.ne.s32.totalorder %s29, %s32
      %p41 = scmp.eq.s32.totalorder %s24, 2
      %p42 = por %p40, %p41
      %p43 = scmp.ne.s32.totalorder %s32, %s33
      %p44 = scmp.eq.s32.totalorder %s24, 0
      %p45 = por %p43, %p44
      %p46 = scmp.ne.s32.totalorder %s32, %s33
      %p47 = scmp.eq.s32.totalorder %s25, 2
      %p48 = por %p46, %p47
      %p50 = scmp.ne.s32.totalorder %s33, %s49
      %p51 = scmp.eq.s32.totalorder %s25, 0
      %p52 = por %p50, %p51
      %s54 = sadd.s32 %s53, 1
      %p57 = scmp.eq.s32.totalorder %s19, 2
      %p58 = scmp.ne.s32.totalorder %s53, %s55
      %p59 = scmp.eq.s32.totalorder %s19, 0
      %p60 = por %p58, %p59
      %p61 = scmp.ne.s32.totalorder %s53, %s55
      %p62 = scmp.eq.s32.totalorder %s24, 2
      %p63 = por %p61, %p62
      %p64 = scmp.ne.s32.totalorder %s55, %s56
      %p65 = scmp.eq.s32.totalorder %s24, 0
      %p66 = por %p64, %p65
      %p67 = scmp.ne.s32.totalorder %s55, %s56
      %p68 = scmp.eq.s32.totalorder %s25, 2
      %p69 = por %p67, %p68
      %p71 = scmp.ne.s32.totalorder %s56, %s70
      %p72 = scmp.eq.s32.totalorder %s25, 0
      %p73 = por %p71, %p72
      %s75 = sadd.s32 %s74, 1
      %p78 = scmp.eq.s32.totalorder %s19, 2
      %p79 = scmp.ne.s32.totalorder %s74, %s76
      %p80 = scmp.eq.s32.totalorder %s19, 0
      %p81 = por %p79, %p80
      %p82 = scmp.ne.s32.totalorder %s74, %s76
      %p83 = scmp.eq.s32.totalorder %s24, 2
      %p84 = por %p82, %p83
      %p85 = scmp.ne.s32.totalorder %s76, %s77
      %p86 = scmp.eq.s32.totalorder %s24, 0
      %p87 = por %p85, %p86
      %p88 = scmp.ne.s32.totalorder %s76, %s77
      %p89 = scmp.eq.s32.totalorder %s25, 2
      %p90 = por %p88, %p89
      %p92 = scmp.ne.s32.totalorder %s77, %s91
      %p93 = scmp.eq.s32.totalorder %s25, 0
      %p94 = por %p92, %p93
      %s96 = sadd.s32 %s95, 1
      %p99 = scmp.eq.s32.totalorder %s19, 2
      %p100 = scmp.ne.s32.totalorder %s95, %s97
      %p101 = scmp.eq.s32.totalorder %s19, 0
      %p102 = por %p100, %p101
      %p103 = scmp.ne.s32.totalorder %s95, %s97
      %p104 = scmp.eq.s32.totalorder %s24, 2
      %p105 = por %p103, %p104
      %p106 = scmp.ne.s32.totalorder %s97, %s98
      %p107 = scmp.eq.s32.totalorder %s24, 0
      %p108 = por %p106, %p107
      %p109 = scmp.ne.s32.totalorder %s97, %s98
      %p110 = scmp.eq.s32.totalorder %s25, 2
      %p111 = por %p109, %p110
      %p113 = scmp.ne.s32.totalorder %s98, %s112
      %p114 = scmp.eq.s32.totalorder %s25, 0
      %p115 = por %p113, %p114
      %s117 = sadd.s32 %s116, 1
      %p120 = scmp.eq.s32.totalorder %s19, 2
      %p121 = scmp.ne.s32.totalorder %s116, %s118
      %p122 = scmp.eq.s32.totalorder %s19, 0
      %p123 = por %p121, %p122
      %p124 = scmp.ne.s32.totalorder %s116, %s118
      %p125 = scmp.eq.s32.totalorder %s24, 2
      %p126 = por %p124, %p125
      %p127 = scmp.ne.s32.totalorder %s118, %s119
      %p128 = scmp.eq.s32.totalorder %s24, 0
      %p129 = por %p127, %p128
      %p130 = scmp.ne.s32.totalorder %s118, %s119
      %p131 = scmp.eq.s32.totalorder %s25, 2
      %p132 = por %p130, %p131
      %p134 = scmp.ne.s32.totalorder %s119, %s133
      %p135 = scmp.eq.s32.totalorder %s25, 0
      %p136 = por %p134, %p135
      %s138 = sadd.s32 %s137, 1
      %p141 = scmp.eq.s32.totalorder %s19, 2
      %p142 = scmp.ne.s32.totalorder %s137, %s139
      %p143 = scmp.eq.s32.totalorder %s19, 0
      %p144 = por %p142, %p143
      %p145 = scmp.ne.s32.totalorder %s137, %s139
      %p146 = scmp.eq.s32.totalorder %s24, 2
      %p147 = por %p145, %p146
      %p148 = scmp.ne.s32.totalorder %s139, %s140
      %p149 = scmp.eq.s32.totalorder %s24, 0
      %p150 = por %p148, %p149
      %p151 = scmp.ne.s32.totalorder %s139, %s140
      %p152 = scmp.eq.s32.totalorder %s25, 2
      %p153 = por %p151, %p152
      %p155 = scmp.ne.s32.totalorder %s140, %s154
      %p156 = scmp.eq.s32.totalorder %s25, 0
      %p157 = por %p155, %p156
      %s159 = sadd.s32 %s158, 1
      %p162 = scmp.eq.s32.totalorder %s19, 2
      %p163 = scmp.ne.s32.totalorder %s158, %s160
      %p164 = scmp.eq.s32.totalorder %s19, 0
      %p165 = por %p163, %p164
      %p166 = scmp.ne.s32.totalorder %s158, %s160
      %p167 = scmp.eq.s32.totalorder %s24, 2
      %p168 = por %p166, %p167
      %p169 = scmp.ne.s32.totalorder %s160, %s161
      %p170 = scmp.eq.s32.totalorder %s24, 0
      %p171 = por %p169, %p170
      %p172 = scmp.ne.s32.totalorder %s160, %s161
      %p173 = scmp.eq.s32.totalorder %s25, 2
      %p174 = por %p172, %p173
      %p176 = scmp.ne.s32.totalorder %s161, %s175
      %p177 = scmp.eq.s32.totalorder %s25, 0
      %p178 = por %p176, %p177
      %s180 = sadd.s32 %s179, 1
      %p183 = scmp.eq.s32.totalorder %s19, 2
      %p184 = scmp.ne.s32.totalorder %s179, %s181
      %p185 = scmp.eq.s32.totalorder %s19, 0
      %p186 = por %p184, %p185
      %p187 = scmp.ne.s32.totalorder %s179, %s181
      %p188 = scmp.eq.s32.totalorder %s24, 2
      %p189 = por %p187, %p188
      %p190 = scmp.ne.s32.totalorder %s181, %s182
      %p191 = scmp.eq.s32.totalorder %s24, 0
      %p192 = por %p190, %p191
      %p193 = scmp.ne.s32.totalorder %s181, %s182
      %p194 = scmp.eq.s32.totalorder %s25, 2
      %p195 = por %p193, %p194
      %p197 = scmp.ne.s32.totalorder %s182, %s196
      %p198 = scmp.eq.s32.totalorder %s25, 0
      %p199 = por %p197, %p198
      %s201 = sadd.s32 %s200, 1
      %p204 = scmp.eq.s32.totalorder %s19, 2
      %p205 = scmp.ne.s32.totalorder %s200, %s202
      %p206 = scmp.eq.s32.totalorder %s19, 0
      %p207 = por %p205, %p206
      %p208 = scmp.ne.s32.totalorder %s200, %s202
      %p209 = scmp.eq.s32.totalorder %s24, 2
      %p210 = por %p208, %p209
      %p211 = scmp.ne.s32.totalorder %s202, %s203
      %p212 = scmp.eq.s32.totalorder %s24, 0
      %p213 = por %p211, %p212
      %p214 = scmp.ne.s32.totalorder %s202, %s203
      %p215 = scmp.eq.s32.totalorder %s25, 2
      %p216 = por %p214, %p215
      %p218 = scmp.ne.s32.totalorder %s203, %s217
      %p219 = scmp.eq.s32.totalorder %s25, 0
      %p220 = por %p218, %p219
      %s222 = sadd.s32 %s221, 1
      %p225 = scmp.eq.s32.totalorder %s19, 2
      %p226 = scmp.ne.s32.totalorder %s221, %s223
      %p227 = scmp.eq.s32.totalorder %s19, 0
      %p228 = por %p226, %p227
      %p229 = scmp.ne.s32.totalorder %s221, %s223
      %p230 = scmp.eq.s32.totalorder %s24, 2
      %p231 = por %p229, %p230
      %p232 = scmp.ne.s32.totalorder %s223, %s224
      %p233 = scmp.eq.s32.totalorder %s24, 0
      %p234 = por %p232, %p233
      %p235 = scmp.ne.s32.totalorder %s223, %s224
      %p236 = scmp.eq.s32.totalorder %s25, 2
      %p237 = por %p235, %p236
      %p239 = scmp.ne.s32.totalorder %s224, %s238
      %p240 = scmp.eq.s32.totalorder %s25, 0
      %p241 = por %p239, %p240
      %s243 = sadd.s32 %s242, 1
      %p246 = scmp.eq.s32.totalorder %s19, 2
      %p247 = scmp.ne.s32.totalorder %s242, %s244
      %p248 = scmp.eq.s32.totalorder %s19, 0
      %p249 = por %p247, %p248
      %p250 = scmp.ne.s32.totalorder %s242, %s244
      %p251 = scmp.eq.s32.totalorder %s24, 2
      %p252 = por %p250, %p251
      %p253 = scmp.ne.s32.totalorder %s244, %s245
      %p254 = scmp.eq.s32.totalorder %s24, 0
      %p255 = por %p253, %p254
      %p256 = scmp.ne.s32.totalorder %s244, %s245
      %p257 = scmp.eq.s32.totalorder %s25, 2
      %p258 = por %p256, %p257
      %p260 = scmp.ne.s32.totalorder %s245, %s259
      %p261 = scmp.eq.s32.totalorder %s25, 0
      %p262 = por %p260, %p261
      %s264 = sadd.s32 %s263, 1
      %p267 = scmp.eq.s32.totalorder %s19, 2
      %p268 = scmp.ne.s32.totalorder %s263, %s265
      %p269 = scmp.eq.s32.totalorder %s19, 0
      %p270 = por %p268, %p269
      %p271 = scmp.ne.s32.totalorder %s263, %s265
      %p272 = scmp.eq.s32.totalorder %s24, 2
      %p273 = por %p271, %p272
      %p274 = scmp.ne.s32.totalorder %s265, %s266
      %p275 = scmp.eq.s32.totalorder %s24, 0
      %p276 = por %p274, %p275
      %p277 = scmp.ne.s32.totalorder %s265, %s266
      %p278 = scmp.eq.s32.totalorder %s25, 2
      %p279 = por %p277, %p278
      %p281 = scmp.ne.s32.totalorder %s266, %s280
      %p282 = scmp.eq.s32.totalorder %s25, 0
      %p283 = por %p281, %p282
      %s285 = sadd.s32 %s284, 1
      %p288 = scmp.eq.s32.totalorder %s19, 2
      %p289 = scmp.ne.s32.totalorder %s284, %s286
      %p290 = scmp.eq.s32.totalorder %s19, 0
      %p291 = por %p289, %p290
      %p292 = scmp.ne.s32.totalorder %s284, %s286
      %p293 = scmp.eq.s32.totalorder %s24, 2
      %p294 = por %p292, %p293
      %p295 = scmp.ne.s32.totalorder %s286, %s287
      %p296 = scmp.eq.s32.totalorder %s24, 0
      %p297 = por %p295, %p296
      %p298 = scmp.ne.s32.totalorder %s286, %s287
      %p299 = scmp.eq.s32.totalorder %s25, 2
      %p300 = por %p298, %p299
      %p302 = scmp.ne.s32.totalorder %s287, %s301
      %p303 = scmp.eq.s32.totalorder %s25, 0
      %p304 = por %p302, %p303
      %s305 = ssub.s32 %s19, %s26
      %p306 = scmp.eq.s32.totalorder %s305, 0
      %s308 = sadd.s32 %s307, 1
      %s309 = scalar_select %p306, %s307, %s308
      %p312 = pneg %p306
      %p313 = scmp.eq.s32.totalorder %s19, 2
      %p314 = por %p312, %p313
      %p315 = scmp.ne.s32.totalorder %s307, %s310
      %p316 = scmp.eq.s32.totalorder %s19, 0
      %p317 = por %p315, %p316
      %p318 = scmp.ne.s32.totalorder %s307, %s310
      %p319 = scmp.eq.s32.totalorder %s24, 2
      %p320 = por %p318, %p319
      %p321 = scmp.ne.s32.totalorder %s310, %s311
      %p322 = scmp.eq.s32.totalorder %s24, 0
      %p323 = por %p321, %p322
      %p324 = scmp.ne.s32.totalorder %s310, %s311
      %p325 = scmp.eq.s32.totalorder %s25, 2
      %p326 = por %p324, %p325
      %p328 = scmp.ne.s32.totalorder %s311, %s327
      %p329 = scmp.eq.s32.totalorder %s25, 0
      %p330 = por %p328, %p329
      %p331 = scmp.le.s32.totalorder 1, %s19
      %p332 = scmp.lt.s32.totalorder %s19, 4
      %p333 = pnand %p331, %p332
      %p334 = pneg %p333
      // Predicated region
      $region9: #{model_forward.1} parent=5 // pred_check
        _
      $region10: #{model_forward.1} parent=5 // pred_check_branch
        %336 = sbr.rel (%p333) target = $region12
      $region11: #{model_forward.1} parent=5 // pred_region
        %s337 = ssub.s32 %s19, 1
        // Predicated region
        $region13: #{model_forward.1} parent=11 // pred_check
          %p338 = pneg %p66
        $region14: #{model_forward.1} parent=11 // pred_check_branch
          %340 = sbr.rel (%p338) target = $region16
        $region15: #{model_forward.1} parent=11 // pred_region
          _
        $region16: #{model_forward.1} parent=11 // pred_fallthru
          _
        // Predicated region
        $region17: #{model_forward.1} parent=11 // pred_check
          %p341 = pneg %p87
        $region18: #{model_forward.1} parent=11 // pred_check_branch
          %343 = sbr.rel (%p341) target = $region20
        $region19: #{model_forward.1} parent=11 // pred_region
          _
        $region20: #{model_forward.1} parent=11 // pred_fallthru
          _
        // Predicated region
        $region21: #{model_forward.1} parent=11 // pred_check
          %p344 = pneg %p108
        $region22: #{model_forward.1} parent=11 // pred_check_branch
          %346 = sbr.rel (%p344) target = $region24
        $region23: #{model_forward.1} parent=11 // pred_region
          _
        $region24: #{model_forward.1} parent=11 // pred_fallthru
          _
        // Predicated region
        $region25: #{model_forward.1} parent=11 // pred_check
          %p347 = pneg %p129
        $region26: #{model_forward.1} parent=11 // pred_check_branch
          %349 = sbr.rel (%p347) target = $region28
        $region27: #{model_forward.1} parent=11 // pred_region
          _
        $region28: #{model_forward.1} parent=11 // pred_fallthru
          _
        // Predicated region
        $region29: #{model_forward.1} parent=11 // pred_check
          %p350 = pneg %p150
        $region30: #{model_forward.1} parent=11 // pred_check_branch
          %352 = sbr.rel (%p350) target = $region32
        $region31: #{model_forward.1} parent=11 // pred_region
          _
        $region32: #{model_forward.1} parent=11 // pred_fallthru
          _
        // Predicated region
        $region33: #{model_forward.1} parent=11 // pred_check
          %p353 = pneg %p171
        $region34: #{model_forward.1} parent=11 // pred_check_branch
          %355 = sbr.rel (%p353) target = $region36
        $region35: #{model_forward.1} parent=11 // pred_region
          _
        $region36: #{model_forward.1} parent=11 // pred_fallthru
          _
        // Predicated region
        $region37: #{model_forward.1} parent=11 // pred_check
          %p356 = pneg %p192
        $region38: #{model_forward.1} parent=11 // pred_check_branch
          %358 = sbr.rel (%p356) target = $region40
        $region39: #{model_forward.1} parent=11 // pred_region
          _
        $region40: #{model_forward.1} parent=11 // pred_fallthru
          _
        // Predicated region
        $region41: #{model_forward.1} parent=11 // pred_check
          %p359 = pneg %p213
        $region42: #{model_forward.1} parent=11 // pred_check_branch
          %361 = sbr.rel (%p359) target = $region44
        $region43: #{model_forward.1} parent=11 // pred_region
          _
        $region44: #{model_forward.1} parent=11 // pred_fallthru
          _
        // Predicated region
        $region45: #{model_forward.1} parent=11 // pred_check
          %p362 = pneg %p234
        $region46: #{model_forward.1} parent=11 // pred_check_branch
          %364 = sbr.rel (%p362) target = $region48
        $region47: #{model_forward.1} parent=11 // pred_region
          _
        $region48: #{model_forward.1} parent=11 // pred_fallthru
          _
        // Predicated region
        $region49: #{model_forward.1} parent=11 // pred_check
          %p365 = pneg %p255
        $region50: #{model_forward.1} parent=11 // pred_check_branch
          %367 = sbr.rel (%p365) target = $region52
        $region51: #{model_forward.1} parent=11 // pred_region
          _
        $region52: #{model_forward.1} parent=11 // pred_fallthru
          _
        // Predicated region
        $region53: #{model_forward.1} parent=11 // pred_check
          %p368 = pneg %p276
        $region54: #{model_forward.1} parent=11 // pred_check_branch
          %370 = sbr.rel (%p368) target = $region56
        $region55: #{model_forward.1} parent=11 // pred_region
          _
        $region56: #{model_forward.1} parent=11 // pred_fallthru
          _
        // Predicated region
        $region57: #{model_forward.1} parent=11 // pred_check
          %p371 = pneg %p297
        $region58: #{model_forward.1} parent=11 // pred_check_branch
          %373 = sbr.rel (%p371) target = $region60
        $region59: #{model_forward.1} parent=11 // pred_region
          _
        $region60: #{model_forward.1} parent=11 // pred_fallthru
          _
      $region12: #{model_forward.1} parent=5 // pred_fallthru
        _
      %p374 = scmp.lt.s32.totalorder %s19, 3
      // Predicated region
      $region61: #{model_forward.1} parent=5 // pred_check
        %p375 = pneg %p374
      $region62: #{model_forward.1} parent=5 // pred_check_branch
        %377 = sbr.rel (%p375) target = $region64
      $region63: #{model_forward.1} parent=5 // pred_region
        // Predicated region
        $region65: #{model_forward.1} parent=63 // pred_check
          %p378 = pneg %p39
        $region66: #{model_forward.1} parent=63 // pred_check_branch
          %380 = sbr.rel (%p378) target = $region68
        $region67: #{model_forward.1} parent=63 // pred_region
          %s381 = smul.u32 16, %s19
          %s382 = ssub.s32 36, %s381
          %p383 = scmp.lt.s32.totalorder %s382, 16
          %s384 = scalar_select %p383, %s382, 16
          %s385 = smul.u32 4, %s384
          %p386 = scmp.lt.s32.totalorder %s381, 35
          %s387 = scalar_select %p386, %s381, 35
          %s388 = smul.addr %s387, 4
          %s389 = scalar_lea.vmem %s0, %s388
          %s390 = smul.u32 16, %s19
          %s391 = ssub.s32 36, %s390
          %p392 = scmp.lt.s32.totalorder %s391, 16
          %s393 = scalar_select %p392, %s391, 16
          %s394 = smul.u32 4, %s393
        $region68: #{model_forward.1} parent=63 // pred_fallthru
          _
      $region64: #{model_forward.1} parent=5 // pred_fallthru
        _
      %p395 = scmp.le.s32.totalorder 1, %s19
      %p396 = scmp.lt.s32.totalorder %s19, 4
      %p397 = pnand %p395, %p396
      %p398 = pneg %p397
      // Predicated region
      $region69: #{model_forward.1} parent=5 // pred_check
        _
      $region70: #{model_forward.1} parent=5 // pred_check_branch
        %400 = sbr.rel (%p397) target = $region72
      $region71: #{model_forward.1} parent=5 // pred_region
        %s401 = ssub.s32 %s19, 1
        %s402 = smul.u32 16, %s24
        %s403 = ssub.s32 36, %s402
        %p404 = scmp.lt.s32.totalorder %s403, 16
        %s405 = scalar_select %p404, %s403, 16
        %s406 = smul.u32 4, %s405
        %p407 = scmp.lt.s32.totalorder %s402, 35
        %s408 = scalar_select %p407, %s402, 35
        %s409 = smul.addr %s408, 4
        %s410 = scalar_lea.vmem %s0, %s409
        %p411 = pneg %p45
        %p412 = pneg %p42
        %p413 = pneg %p66
        %p414 = pneg %p63
        %p415 = pneg %p87
        %p416 = pneg %p84
        %p417 = pneg %p108
        %p418 = pneg %p105
        %p419 = pneg %p129
        %p420 = pneg %p126
        %p421 = pneg %p150
        %p422 = pneg %p147
        %p423 = pneg %p171
        %p424 = pneg %p168
        %p425 = pneg %p192
        %p426 = pneg %p189
        %p427 = pneg %p213
        %p428 = pneg %p210
        %p429 = pneg %p234
        %p430 = pneg %p231
        %p431 = pneg %p255
        %p432 = pneg %p252
        %p433 = pneg %p276
        %p434 = pneg %p273
        %p435 = pneg %p297
        %p436 = pneg %p294
        %p437 = pneg %p323
        %p438 = pneg %p320
        %s439 = sand.u32 %s310, 1
        %s440 = sand.u32 %s310, 1
        %s441 = smul.addr %s440, 192
        %s442 = scalar_lea.vmem [#allocation2], %s441
        %s443 = smul.u32 16, %s24
        %s444 = ssub.s32 36, %s443
        %p445 = scmp.lt.s32.totalorder %s444, 16
        %s446 = scalar_select %p445, %s444, 16
        %s447 = smul.u32 4, %s446
        %p448 = scmp.lt.s32.totalorder %s443, 35
        %s449 = scalar_select %p448, %s443, 35
        %s450 = smul.addr %s449, 4
        %s451 = scalar_lea.vmem %s0, %s450
        %s452 = smul.u32 16, %s24
        %s453 = ssub.s32 36, %s452
        %p454 = scmp.lt.s32.totalorder %s453, 16
        %s455 = scalar_select %p454, %s453, 16
        %s456 = smul.u32 4, %s455
        %v458 = vld [vmem:[%s451] sm:$0xf]
        %v459 = vld [vmem:[%s451 + $0x4] sm:$0xf]
        %v460 = vld [vmem:[%s451 + $0x8] sm:$0xf]
        %v461 = vld [vmem:[%s451 + $0xc] sm:$0xf]
        %v462 = vld [vmem:[%s451 + $0x10] sm:$0xf]
        %v463 = vld [vmem:[%s451 + $0x14] sm:$0xf]
        %v464 = vld [vmem:[%s451 + $0x18] sm:$0xf]
        %v465 = vld [vmem:[%s451 + $0x1c] sm:$0xf]
        %v466 = vld [vmem:[%s451 + $0x20] sm:$0xf]
        %v467 = vld [vmem:[%s451 + $0x24] sm:$0xf]
        %v468 = vld [vmem:[%s451 + $0x28] sm:$0xf]
        %v469 = vld [vmem:[%s451 + $0x2c] sm:$0xf]
        %v470 = vld [vmem:[%s451 + $0x30] sm:$0xf]
        %v471 = vld [vmem:[%s451 + $0x34] sm:$0xf]
        %v472 = vld [vmem:[%s451 + $0x38] sm:$0xf]
        %v473 = vld [vmem:[%s451 + $0x3c] sm:$0xf]
        %v474 = vld [vmem:[%s1] sm:$0xf]
        %v475 = vld [vmem:[%s1 + $0x4] sm:$0xf]
        %v476 = vld [vmem:[%s1 + $0x8] sm:$0xf]
        %v477 = vld [vmem:[%s1 + $0xc] sm:$0xf]
        %v478 = vld [vmem:[%s1 + $0x10] sm:$0xf]
        %v479 = vld [vmem:[%s1 + $0x14] sm:$0xf]
        %v480 = vld [vmem:[%s2] sm:$0x1]
        %v482 = vperm.slane %v480, 0
        %v500 = vunpack.c.l.b16 %v458
        %v501 = vunpack.c.l.b16 %v459
        %v502 = vunpack.c.l.b16 %v460
        %v503 = vunpack.c.l.b16 %v461
        %v504 = vunpack.c.l.b16 %v462
        %v505 = vunpack.c.l.b16 %v463
        %v506 = vunpack.c.l.b16 %v464
        %v507 = vunpack.c.l.b16 %v465
        %v508 = vunpack.c.l.b16 %v466
        %v509 = vunpack.c.l.b16 %v467
        %v510 = vunpack.c.l.b16 %v468
        %v511 = vunpack.c.l.b16 %v469
        %v512 = vunpack.c.l.b16 %v470
        %v513 = vunpack.c.l.b16 %v471
        %v514 = vunpack.c.l.b16 %v472
        %v515 = vunpack.c.l.b16 %v473
        %v516 = vpack.c.b16 %v501, %v500
        %v517 = vpack.c.b16 %v503, %v502
        %v518 = vpack.c.b16 %v505, %v504
        %v519 = vpack.c.b16 %v507, %v506
        %v520 = vpack.c.b16 %v509, %v508
        %v521 = vpack.c.b16 %v511, %v510
        %v522 = vpack.c.b16 %v513, %v512
        %v523 = vpack.c.b16 %v515, %v514
        %v530 = vunpack.c.l.b16 %v474
        %v531 = vunpack.c.l.b16 %v475
        %v532 = vunpack.c.l.b16 %v476
        %v533 = vunpack.c.l.b16 %v477
        %v534 = vunpack.c.l.b16 %v478
        %v535 = vunpack.c.l.b16 %v479
        %v536 = vpack.c.b16 %v531, %v530
        %v537 = vpack.c.b16 %v533, %v532
        %v538 = vpack.c.b16 %v535, %v534
        %vm542 = vcmask 392192
        %v544 = vsel %vm542, %v516, 0
        %v547 = vsel %vm542, %v517, 0
        %v550 = vsel %vm542, %v518, 0
        %v553 = vsel %vm542, %v519, 0
        %v556 = vsel %vm542, %v520, 0
        %v559 = vsel %vm542, %v521, 0
        %v562 = vsel %vm542, %v522, 0
        %v565 = vsel %vm542, %v523, 0
        %567 = vmatpush.bf16.msra.mxu0 0
        %568 = vmatpush.bf16.msra.mxu0 0
        %569 = vmatpush.bf16.msra.mxu0 0
        %570 = vmatpush.bf16.msra.mxu0 0
        %571 = vmatpush.bf16.msra.mxu0 0
        %572 = vmatpush.bf16.msra.mxu0 %v538
        %573 = vmatpush.bf16.msra.mxu0 %v537
        %574 = vmatpush.bf16.msra.mxu0 %v536
        %575 = vmatmul.bf16.gmra.mxu0 %v544
        %v576 = vpop.f32.mrf.mxu0
        %v577 = vadd.f32 %v482, %v576
        %v578 = vpop.f32.mrf.mxu0
        %v579 = vadd.f32 %v482, %v578
        %580 = vmatmul.bf16.gmra.mxu0 %v547
        %v581 = vpop.f32.mrf.mxu0
        %v582 = vadd.f32 %v482, %v581
        %v583 = vpop.f32.mrf.mxu0
        %v584 = vadd.f32 %v482, %v583
        %585 = vmatmul.bf16.gmra.mxu0 %v550
        %v586 = vpop.f32.mrf.mxu0
        %v587 = vadd.f32 %v482, %v586
        %v588 = vpop.f32.mrf.mxu0
        %v589 = vadd.f32 %v482, %v588
        %590 = vmatmul.bf16.gmra.mxu0 %v553
        %v591 = vpop.f32.mrf.mxu0
        %v592 = vadd.f32 %v482, %v591
        %v593 = vpop.f32.mrf.mxu0
        %v594 = vadd.f32 %v482, %v593
        %595 = vmatmul.bf16.gmra.mxu0 %v556
        %v596 = vpop.f32.mrf.mxu0
        %v597 = vadd.f32 %v482, %v596
        %v598 = vpop.f32.mrf.mxu0
        %v599 = vadd.f32 %v482, %v598
        %600 = vmatmul.bf16.gmra.mxu0 %v559
        %v601 = vpop.f32.mrf.mxu0
        %v602 = vadd.f32 %v482, %v601
        %v603 = vpop.f32.mrf.mxu0
        %v604 = vadd.f32 %v482, %v603
        %605 = vmatmul.bf16.gmra.mxu0 %v562
        %v606 = vpop.f32.mrf.mxu0
        %v607 = vadd.f32 %v482, %v606
        %v608 = vpop.f32.mrf.mxu0
        %v609 = vadd.f32 %v482, %v608
        %610 = vmatmul.bf16.gmra.mxu0 %v565
        %v611 = vpop.f32.mrf.mxu0
        %v612 = vadd.f32 %v482, %v611
        %v613 = vpop.f32.mrf.mxu0
        %v614 = vadd.f32 %v482, %v613
        %615 = vdwg.mxu0
        %v616 = vmul.f32 %v577, 0.5
        %v617 = vmul.f32 %v579, 0.5
        %v618 = vmul.f32 %v582, 0.5
        %v619 = vmul.f32 %v584, 0.5
        %v620 = vmul.f32 %v587, 0.5
        %v621 = vmul.f32 %v589, 0.5
        %v622 = vmul.f32 %v592, 0.5
        %v623 = vmul.f32 %v594, 0.5
        %v624 = vmul.f32 %v597, 0.5
        %v625 = vmul.f32 %v599, 0.5
        %v626 = vmul.f32 %v602, 0.5
        %v627 = vmul.f32 %v604, 0.5
        %v628 = vmul.f32 %v607, 0.5
        %v629 = vmul.f32 %v609, 0.5
        %v630 = vmul.f32 %v612, 0.5
        %v631 = vmul.f32 %v614, 0.5
        %v632 = vtanh.pop %v616
        %v633 = vtanh.pop %v617
        %v634 = vtanh.pop %v618
        %v635 = vtanh.pop %v619
        %v636 = vtanh.pop %v620
        %v637 = vtanh.pop %v621
        %v638 = vtanh.pop %v622
        %v639 = vtanh.pop %v623
        %v640 = vtanh.pop %v624
        %v641 = vtanh.pop %v625
        %v642 = vtanh.pop %v626
        %v643 = vtanh.pop %v627
        %v644 = vtanh.pop %v628
        %v645 = vtanh.pop %v629
        %v646 = vtanh.pop %v630
        %v647 = vtanh.pop %v631
        %v648 = vadd.f32 %v632, 1.0
        %v649 = vadd.f32 %v633, 1.0
        %v650 = vadd.f32 %v634, 1.0
        %v651 = vadd.f32 %v635, 1.0
        %v652 = vadd.f32 %v636, 1.0
        %v653 = vadd.f32 %v637, 1.0
        %v654 = vadd.f32 %v638, 1.0
        %v655 = vadd.f32 %v639, 1.0
        %v656 = vadd.f32 %v640, 1.0
        %v657 = vadd.f32 %v641, 1.0
        %v658 = vadd.f32 %v642, 1.0
        %v659 = vadd.f32 %v643, 1.0
        %v660 = vadd.f32 %v644, 1.0
        %v661 = vadd.f32 %v645, 1.0
        %v662 = vadd.f32 %v646, 1.0
        %v663 = vadd.f32 %v647, 1.0
        %v664 = vmul.f32 %v648, 0.5
        %v665 = vmul.f32 %v649, 0.5
        %v666 = vmul.f32 %v650, 0.5
        %v667 = vmul.f32 %v651, 0.5
        %v668 = vmul.f32 %v652, 0.5
        %v669 = vmul.f32 %v653, 0.5
        %v670 = vmul.f32 %v654, 0.5
        %v671 = vmul.f32 %v655, 0.5
        %v672 = vmul.f32 %v656, 0.5
        %v673 = vmul.f32 %v657, 0.5
        %v674 = vmul.f32 %v658, 0.5
        %v675 = vmul.f32 %v659, 0.5
        %v676 = vmul.f32 %v660, 0.5
        %v677 = vmul.f32 %v661, 0.5
        %v678 = vmul.f32 %v662, 0.5
        %v679 = vmul.f32 %v663, 0.5
        %v680 = vpack.c.bf16 %v665, %v664
        %v681 = vpack.c.bf16 %v667, %v666
        %v682 = vpack.c.bf16 %v669, %v668
        %v683 = vpack.c.bf16 %v671, %v670
        %v684 = vpack.c.bf16 %v673, %v672
        %v685 = vpack.c.bf16 %v675, %v674
        %v686 = vpack.c.bf16 %v677, %v676
        %v687 = vpack.c.bf16 %v679, %v678
        %v688 = vld [vmem:[%s3] sm:$0xff]
        %v689 = vld [vmem:[%s3 + $0x8] sm:$0xff]
        %v690 = vld [vmem:[%s3 + $0x10] sm:$0xff]
        %v691 = vld [vmem:[%s3 + $0x18] sm:$0xff]
        %v692 = vld [vmem:[%s3 + $0x20] sm:$0xff]
        %v693 = vld [vmem:[%s3 + $0x28] sm:$0xff]
        %v694 = vld [vmem:[%s3 + $0x30] sm:$0xff]
        %v695 = vld [vmem:[%s3 + $0x38] sm:$0xff]
        %v696 = vld [vmem:[%s3 + $0x40] sm:$0xff]
        %v697 = vld [vmem:[%s3 + $0x48] sm:$0xff]
        %v698 = vld [vmem:[%s3 + $0x50] sm:$0xff]
        %v699 = vld [vmem:[%s3 + $0x58] sm:$0xff]
        %v700 = vld [vmem:[%s4] sm:$0x3]
        %v702 = vperm.slane %v700, 0
        %v703 = vperm.slane %v700, 1
        %v718 = vunpack.c.l.b16 %v688
        %v719 = vunpack.c.h.b16 %v688
        %v720 = vunpack.c.l.b16 %v689
        %v721 = vunpack.c.h.b16 %v689
        %v722 = vunpack.c.l.b16 %v690
        %v723 = vunpack.c.h.b16 %v690
        %v724 = vunpack.c.l.b16 %v691
        %v725 = vunpack.c.h.b16 %v691
        %v726 = vunpack.c.l.b16 %v692
        %v727 = vunpack.c.h.b16 %v692
        %v728 = vunpack.c.l.b16 %v693
        %v729 = vunpack.c.h.b16 %v693
        %v730 = vunpack.c.l.b16 %v694
        %v731 = vunpack.c.h.b16 %v694
        %v732 = vunpack.c.l.b16 %v695
        %v733 = vunpack.c.h.b16 %v695
        %v734 = vunpack.c.l.b16 %v696
        %v735 = vunpack.c.h.b16 %v696
        %v736 = vunpack.c.l.b16 %v697
        %v737 = vunpack.c.h.b16 %v697
        %v738 = vunpack.c.l.b16 %v698
        %v739 = vunpack.c.h.b16 %v698
        %v740 = vunpack.c.l.b16 %v699
        %v741 = vunpack.c.h.b16 %v699
        %v742 = vpack.c.b16 %v720, %v718
        %v743 = vpack.c.b16 %v721, %v719
        %v744 = vpack.c.b16 %v724, %v722
        %v745 = vpack.c.b16 %v725, %v723
        %v746 = vpack.c.b16 %v728, %v726
        %v747 = vpack.c.b16 %v729, %v727
        %v748 = vpack.c.b16 %v732, %v730
        %v749 = vpack.c.b16 %v733, %v731
        %v750 = vpack.c.b16 %v736, %v734
        %v751 = vpack.c.b16 %v737, %v735
        %v752 = vpack.c.b16 %v740, %v738
        %v753 = vpack.c.b16 %v741, %v739
        %vm766 = vcmask 785408
        %v768 = vsel %vm766, %v680, 0
        %v771 = vsel %vm766, %v681, 0
        %v774 = vsel %vm766, %v682, 0
        %v777 = vsel %vm766, %v683, 0
        %v780 = vsel %vm766, %v684, 0
        %v783 = vsel %vm766, %v685, 0
        %v786 = vsel %vm766, %v686, 0
        %v789 = vsel %vm766, %v687, 0
        %791 = vmatpush.bf16.msra.mxu0 0
        %792 = vmatpush.bf16.msra.mxu0 0
        %793 = vmatpush.bf16.msra.mxu0 %v752
        %794 = vmatpush.bf16.msra.mxu0 %v750
        %795 = vmatpush.bf16.msra.mxu0 %v748
        %796 = vmatpush.bf16.msra.mxu0 %v746
        %797 = vmatpush.bf16.msra.mxu0 %v744
        %798 = vmatpush.bf16.msra.mxu0 %v742
        %799 = vmatmul.bf16.gmra.mxu0 %v768
        %v800 = vpop.f32.mrf.mxu0
        %v801 = vadd.f32 %v702, %v800
        %v802 = vpop.f32.mrf.mxu0
        %v803 = vadd.f32 %v702, %v802
        %804 = vmatmul.bf16.gmra.mxu0 %v771
        %v805 = vpop.f32.mrf.mxu0
        %v806 = vadd.f32 %v702, %v805
        %v807 = vpop.f32.mrf.mxu0
        %v808 = vadd.f32 %v702, %v807
        %809 = vmatmul.bf16.gmra.mxu0 %v774
        %v810 = vpop.f32.mrf.mxu0
        %v811 = vadd.f32 %v702, %v810
        %v812 = vpop.f32.mrf.mxu0
        %v813 = vadd.f32 %v702, %v812
        %814 = vmatmul.bf16.gmra.mxu0 %v777
        %v815 = vpop.f32.mrf.mxu0
        %v816 = vadd.f32 %v702, %v815
        %v817 = vpop.f32.mrf.mxu0
        %v818 = vadd.f32 %v702, %v817
        %819 = vmatmul.bf16.gmra.mxu0 %v780
        %v820 = vpop.f32.mrf.mxu0
        %v821 = vadd.f32 %v702, %v820
        %v822 = vpop.f32.mrf.mxu0
        %v823 = vadd.f32 %v702, %v822
        %824 = vmatmul.bf16.gmra.mxu0 %v783
        %v825 = vpop.f32.mrf.mxu0
        %v826 = vadd.f32 %v702, %v825
        %v827 = vpop.f32.mrf.mxu0
        %v828 = vadd.f32 %v702, %v827
        %829 = vmatmul.bf16.gmra.mxu0 %v786
        %v830 = vpop.f32.mrf.mxu0
        %v831 = vadd.f32 %v702, %v830
        %v832 = vpop.f32.mrf.mxu0
        %v833 = vadd.f32 %v702, %v832
        %834 = vmatmul.bf16.gmra.mxu0 %v789
        %v835 = vpop.f32.mrf.mxu0
        %v836 = vadd.f32 %v702, %v835
        %v837 = vpop.f32.mrf.mxu0
        %v838 = vadd.f32 %v702, %v837
        %839 = vdwg.mxu0
        %840 = vmatpush.bf16.msra.mxu0 0
        %841 = vmatpush.bf16.msra.mxu0 0
        %842 = vmatpush.bf16.msra.mxu0 %v753
        %843 = vmatpush.bf16.msra.mxu0 %v751
        %844 = vmatpush.bf16.msra.mxu0 %v749
        %845 = vmatpush.bf16.msra.mxu0 %v747
        %846 = vmatpush.bf16.msra.mxu0 %v745
        %847 = vmatpush.bf16.msra.mxu0 %v743
        %848 = vmatmul.bf16.gmra.mxu0 %v768
        %v849 = vpop.f32.mrf.mxu0
        %v850 = vadd.f32 %v703, %v849
        %v851 = vpop.f32.mrf.mxu0
        %v852 = vadd.f32 %v703, %v851
        %853 = vmatmul.bf16.gmra.mxu0 %v771
        %v854 = vpop.f32.mrf.mxu0
        %v855 = vadd.f32 %v703, %v854
        %v856 = vpop.f32.mrf.mxu0
        %v857 = vadd.f32 %v703, %v856
        %858 = vmatmul.bf16.gmra.mxu0 %v774
        %v859 = vpop.f32.mrf.mxu0
        %v860 = vadd.f32 %v703, %v859
        %v861 = vpop.f32.mrf.mxu0
        %v862 = vadd.f32 %v703, %v861
        %863 = vmatmul.bf16.gmra.mxu0 %v777
        %v864 = vpop.f32.mrf.mxu0
        %v865 = vadd.f32 %v703, %v864
        %v866 = vpop.f32.mrf.mxu0
        %v867 = vadd.f32 %v703, %v866
        %868 = vmatmul.bf16.gmra.mxu0 %v780
        %v869 = vpop.f32.mrf.mxu0
        %v870 = vadd.f32 %v703, %v869
        %v871 = vpop.f32.mrf.mxu0
        %v872 = vadd.f32 %v703, %v871
        %873 = vmatmul.bf16.gmra.mxu0 %v783
        %v874 = vpop.f32.mrf.mxu0
        %v875 = vadd.f32 %v703, %v874
        %v876 = vpop.f32.mrf.mxu0
        %v877 = vadd.f32 %v703, %v876
        %878 = vmatmul.bf16.gmra.mxu0 %v786
        %v879 = vpop.f32.mrf.mxu0
        %v880 = vadd.f32 %v703, %v879
        %v881 = vpop.f32.mrf.mxu0
        %v882 = vadd.f32 %v703, %v881
        %883 = vmatmul.bf16.gmra.mxu0 %v789
        %v884 = vpop.f32.mrf.mxu0
        %v885 = vadd.f32 %v703, %v884
        %v886 = vpop.f32.mrf.mxu0
        %v887 = vadd.f32 %v703, %v886
        %888 = vdwg.mxu0
        %v889 = vmul.f32 %v801, 0.5
        %v890 = vmul.f32 %v850, 0.5
        %v891 = vmul.f32 %v803, 0.5
        %v892 = vmul.f32 %v852, 0.5
        %v893 = vmul.f32 %v806, 0.5
        %v894 = vmul.f32 %v855, 0.5
        %v895 = vmul.f32 %v808, 0.5
        %v896 = vmul.f32 %v857, 0.5
        %v897 = vmul.f32 %v811, 0.5
        %v898 = vmul.f32 %v860, 0.5
        %v899 = vmul.f32 %v813, 0.5
        %v900 = vmul.f32 %v862, 0.5
        %v901 = vmul.f32 %v816, 0.5
        %v902 = vmul.f32 %v865, 0.5
        %v903 = vmul.f32 %v818, 0.5
        %v904 = vmul.f32 %v867, 0.5
        %v905 = vmul.f32 %v821, 0.5
        %v906 = vmul.f32 %v870, 0.5
        %v907 = vmul.f32 %v823, 0.5
        %v908 = vmul.f32 %v872, 0.5
        %v909 = vmul.f32 %v826, 0.5
        %v910 = vmul.f32 %v875, 0.5
        %v911 = vmul.f32 %v828, 0.5
        %v912 = vmul.f32 %v877, 0.5
        %v913 = vmul.f32 %v831, 0.5
        %v914 = vmul.f32 %v880, 0.5
        %v915 = vmul.f32 %v833, 0.5
        %v916 = vmul.f32 %v882, 0.5
        %v917 = vmul.f32 %v836, 0.5
        %v918 = vmul.f32 %v885, 0.5
        %v919 = vmul.f32 %v838, 0.5
        %v920 = vmul.f32 %v887, 0.5
        %v921 = vtanh.pop %v889
        %v922 = vtanh.pop %v890
        %v923 = vtanh.pop %v891
        %v924 = vtanh.pop %v892
        %v925 = vtanh.pop %v893
        %v926 = vtanh.pop %v894
        %v927 = vtanh.pop %v895
        %v928 = vtanh.pop %v896
        %v929 = vtanh.pop %v897
        %v930 = vtanh.pop %v898
        %v931 = vtanh.pop %v899
        %v932 = vtanh.pop %v900
        %v933 = vtanh.pop %v901
        %v934 = vtanh.pop %v902
        %v935 = vtanh.pop %v903
        %v936 = vtanh.pop %v904
        %v937 = vtanh.pop %v905
        %v938 = vtanh.pop %v906
        %v939 = vtanh.pop %v907
        %v940 = vtanh.pop %v908
        %v941 = vtanh.pop %v909
        %v942 = vtanh.pop %v910
        %v943 = vtanh.pop %v911
        %v944 = vtanh.pop %v912
        %v945 = vtanh.pop %v913
        %v946 = vtanh.pop %v914
        %v947 = vtanh.pop %v915
        %v948 = vtanh.pop %v916
        %v949 = vtanh.pop %v917
        %v950 = vtanh.pop %v918
        %v951 = vtanh.pop %v919
        %v952 = vtanh.pop %v920
        %v953 = vadd.f32 %v921, 1.0
        %v954 = vadd.f32 %v922, 1.0
        %v955 = vadd.f32 %v923, 1.0
        %v956 = vadd.f32 %v924, 1.0
        %v957 = vadd.f32 %v925, 1.0
        %v958 = vadd.f32 %v926, 1.0
        %v959 = vadd.f32 %v927, 1.0
        %v960 = vadd.f32 %v928, 1.0
        %v961 = vadd.f32 %v929, 1.0
        %v962 = vadd.f32 %v930, 1.0
        %v963 = vadd.f32 %v931, 1.0
        %v964 = vadd.f32 %v932, 1.0
        %v965 = vadd.f32 %v933, 1.0
        %v966 = vadd.f32 %v934, 1.0
        %v967 = vadd.f32 %v935, 1.0
        %v968 = vadd.f32 %v936, 1.0
        %v969 = vadd.f32 %v937, 1.0
        %v970 = vadd.f32 %v938, 1.0
        %v971 = vadd.f32 %v939, 1.0
        %v972 = vadd.f32 %v940, 1.0
        %v973 = vadd.f32 %v941, 1.0
        %v974 = vadd.f32 %v942, 1.0
        %v975 = vadd.f32 %v943, 1.0
        %v976 = vadd.f32 %v944, 1.0
        %v977 = vadd.f32 %v945, 1.0
        %v978 = vadd.f32 %v946, 1.0
        %v979 = vadd.f32 %v947, 1.0
        %v980 = vadd.f32 %v948, 1.0
        %v981 = vadd.f32 %v949, 1.0
        %v982 = vadd.f32 %v950, 1.0
        %v983 = vadd.f32 %v951, 1.0
        %v984 = vadd.f32 %v952, 1.0
        %v985 = vmul.f32 %v953, 0.5
        %v986 = vmul.f32 %v954, 0.5
        %v987 = vmul.f32 %v955, 0.5
        %v988 = vmul.f32 %v956, 0.5
        %v989 = vmul.f32 %v957, 0.5
        %v990 = vmul.f32 %v958, 0.5
        %v991 = vmul.f32 %v959, 0.5
        %v992 = vmul.f32 %v960, 0.5
        %v993 = vmul.f32 %v961, 0.5
        %v994 = vmul.f32 %v962, 0.5
        %v995 = vmul.f32 %v963, 0.5
        %v996 = vmul.f32 %v964, 0.5
        %v997 = vmul.f32 %v965, 0.5
        %v998 = vmul.f32 %v966, 0.5
        %v999 = vmul.f32 %v967, 0.5
        %v1000 = vmul.f32 %v968, 0.5
        %v1001 = vmul.f32 %v969, 0.5
        %v1002 = vmul.f32 %v970, 0.5
        %v1003 = vmul.f32 %v971, 0.5
        %v1004 = vmul.f32 %v972, 0.5
        %v1005 = vmul.f32 %v973, 0.5
        %v1006 = vmul.f32 %v974, 0.5
        %v1007 = vmul.f32 %v975, 0.5
        %v1008 = vmul.f32 %v976, 0.5
        %v1009 = vmul.f32 %v977, 0.5
        %v1010 = vmul.f32 %v978, 0.5
        %v1011 = vmul.f32 %v979, 0.5
        %v1012 = vmul.f32 %v980, 0.5
        %v1013 = vmul.f32 %v981, 0.5
        %v1014 = vmul.f32 %v982, 0.5
        %v1015 = vmul.f32 %v983, 0.5
        %v1016 = vmul.f32 %v984, 0.5
        %v1017 = vpack.c.bf16 %v987, %v985
        %v1018 = vpack.c.bf16 %v988, %v986
        %v1019 = vpack.c.bf16 %v991, %v989
        %v1020 = vpack.c.bf16 %v992, %v990
        %v1021 = vpack.c.bf16 %v995, %v993
        %v1022 = vpack.c.bf16 %v996, %v994
        %v1023 = vpack.c.bf16 %v999, %v997
        %v1024 = vpack.c.bf16 %v1000, %v998
        %v1025 = vpack.c.bf16 %v1003, %v1001
        %v1026 = vpack.c.bf16 %v1004, %v1002
        %v1027 = vpack.c.bf16 %v1007, %v1005
        %v1028 = vpack.c.bf16 %v1008, %v1006
        %v1029 = vpack.c.bf16 %v1011, %v1009
        %v1030 = vpack.c.bf16 %v1012, %v1010
        %v1031 = vpack.c.bf16 %v1015, %v1013
        %v1032 = vpack.c.bf16 %v1016, %v1014
        %v1033 = vld [vmem:[%s5] sm:$0xf]
        %v1034 = vld [vmem:[%s5 + $0x4] sm:$0xf]
        %v1035 = vld [vmem:[%s5 + $0x8] sm:$0xf]
        %v1036 = vld [vmem:[%s5 + $0xc] sm:$0xf]
        %v1037 = vld [vmem:[%s5 + $0x10] sm:$0xf]
        %v1038 = vld [vmem:[%s5 + $0x14] sm:$0xf]
        %v1039 = vld [vmem:[%s5 + $0x18] sm:$0xf]
        %v1040 = vld [vmem:[%s5 + $0x1c] sm:$0xf]
        %v1041 = vld [vmem:[%s5 + $0x20] sm:$0xf]
        %v1042 = vld [vmem:[%s5 + $0x24] sm:$0xf]
        %v1043 = vld [vmem:[%s5 + $0x28] sm:$0xf]
        %v1044 = vld [vmem:[%s5 + $0x2c] sm:$0xf]
        %v1045 = vld [vmem:[%s5 + $0x30] sm:$0xf]
        %v1046 = vld [vmem:[%s5 + $0x34] sm:$0xf]
        %v1047 = vld [vmem:[%s5 + $0x38] sm:$0xf]
        %v1048 = vld [vmem:[%s5 + $0x3c] sm:$0xf]
        %v1049 = vld [vmem:[%s5 + $0x40] sm:$0xf]
        %v1050 = vld [vmem:[%s5 + $0x44] sm:$0xf]
        %v1051 = vld [vmem:[%s5 + $0x48] sm:$0xf]
        %v1052 = vld [vmem:[%s5 + $0x4c] sm:$0xf]
        %v1053 = vld [vmem:[%s5 + $0x50] sm:$0xf]
        %v1054 = vld [vmem:[%s5 + $0x54] sm:$0xf]
        %v1055 = vld [vmem:[%s5 + $0x58] sm:$0xf]
        %v1056 = vld [vmem:[%s5 + $0x5c] sm:$0xf]
        %v1057 = vld [vmem:[%s6] sm:$0x1]
        %v1059 = vperm.slane %v1057, 0
        %v1085 = vunpack.c.l.b16 %v1033
        %v1086 = vunpack.c.l.b16 %v1034
        %v1087 = vunpack.c.l.b16 %v1035
        %v1088 = vunpack.c.l.b16 %v1036
        %v1089 = vunpack.c.l.b16 %v1037
        %v1090 = vunpack.c.l.b16 %v1038
        %v1091 = vunpack.c.l.b16 %v1039
        %v1092 = vunpack.c.l.b16 %v1040
        %v1093 = vunpack.c.l.b16 %v1041
        %v1094 = vunpack.c.l.b16 %v1042
        %v1095 = vunpack.c.l.b16 %v1043
        %v1096 = vunpack.c.l.b16 %v1044
        %v1097 = vunpack.c.l.b16 %v1045
        %v1098 = vunpack.c.l.b16 %v1046
        %v1099 = vunpack.c.l.b16 %v1047
        %v1100 = vunpack.c.l.b16 %v1048
        %v1101 = vunpack.c.l.b16 %v1049
        %v1102 = vunpack.c.l.b16 %v1050
        %v1103 = vunpack.c.l.b16 %v1051
        %v1104 = vunpack.c.l.b16 %v1052
        %v1105 = vunpack.c.l.b16 %v1053
        %v1106 = vunpack.c.l.b16 %v1054
        %v1107 = vunpack.c.l.b16 %v1055
        %v1108 = vunpack.c.l.b16 %v1056
        %v1109 = vpack.c.b16 %v1086, %v1085
        %v1110 = vpack.c.b16 %v1088, %v1087
        %v1111 = vpack.c.b16 %v1090, %v1089
        %v1112 = vpack.c.b16 %v1092, %v1091
        %v1113 = vpack.c.b16 %v1094, %v1093
        %v1114 = vpack.c.b16 %v1096, %v1095
        %v1115 = vpack.c.b16 %v1098, %v1097
        %v1116 = vpack.c.b16 %v1100, %v1099
        %v1117 = vpack.c.b16 %v1102, %v1101
        %v1118 = vpack.c.b16 %v1104, %v1103
        %v1119 = vpack.c.b16 %v1106, %v1105
        %v1120 = vpack.c.b16 %v1108, %v1107
        %vm1133 = vcmask 523264
        %v1135 = vsel %vm1133, %v1018, 0
        %v1138 = vsel %vm1133, %v1020, 0
        %v1141 = vsel %vm1133, %v1022, 0
        %v1144 = vsel %vm1133, %v1024, 0
        %v1147 = vsel %vm1133, %v1026, 0
        %v1150 = vsel %vm1133, %v1028, 0
        %v1153 = vsel %vm1133, %v1030, 0
        %v1156 = vsel %vm1133, %v1032, 0
        %1158 = vmatpush.bf16.msra.mxu0 %v1116
        %1159 = vmatpush.bf16.msra.mxu0 %v1115
        %1160 = vmatpush.bf16.msra.mxu0 %v1114
        %1161 = vmatpush.bf16.msra.mxu0 %v1113
        %1162 = vmatpush.bf16.msra.mxu0 %v1112
        %1163 = vmatpush.bf16.msra.mxu0 %v1111
        %1164 = vmatpush.bf16.msra.mxu0 %v1110
        %1165 = vmatpush.bf16.msra.mxu0 %v1109
        %1166 = vmatmul.bf16.gmra.mxu0 %v1017
        %v1167 = vpop.f32.mrf.mxu0
        %v1168 = vadd.f32 %v1059, %v1167
        %v1169 = vpop.f32.mrf.mxu0
        %v1170 = vadd.f32 %v1059, %v1169
        %1171 = vmatmul.bf16.gmra.mxu0 %v1019
        %v1172 = vpop.f32.mrf.mxu0
        %v1173 = vadd.f32 %v1059, %v1172
        %v1174 = vpop.f32.mrf.mxu0
        %v1175 = vadd.f32 %v1059, %v1174
        %1176 = vmatmul.bf16.gmra.mxu0 %v1021
        %v1177 = vpop.f32.mrf.mxu0
        %v1178 = vadd.f32 %v1059, %v1177
        %v1179 = vpop.f32.mrf.mxu0
        %v1180 = vadd.f32 %v1059, %v1179
        %1181 = vmatmul.bf16.gmra.mxu0 %v1023
        %v1182 = vpop.f32.mrf.mxu0
        %v1183 = vadd.f32 %v1059, %v1182
        %v1184 = vpop.f32.mrf.mxu0
        %v1185 = vadd.f32 %v1059, %v1184
        %1186 = vmatmul.bf16.gmra.mxu0 %v1025
        %v1187 = vpop.f32.mrf.mxu0
        %v1188 = vadd.f32 %v1059, %v1187
        %v1189 = vpop.f32.mrf.mxu0
        %v1190 = vadd.f32 %v1059, %v1189
        %1191 = vmatmul.bf16.gmra.mxu0 %v1027
        %v1192 = vpop.f32.mrf.mxu0
        %v1193 = vadd.f32 %v1059, %v1192
        %v1194 = vpop.f32.mrf.mxu0
        %v1195 = vadd.f32 %v1059, %v1194
        %1196 = vmatmul.bf16.gmra.mxu0 %v1029
        %v1197 = vpop.f32.mrf.mxu0
        %v1198 = vadd.f32 %v1059, %v1197
        %v1199 = vpop.f32.mrf.mxu0
        %v1200 = vadd.f32 %v1059, %v1199
        %1201 = vmatmul.bf16.gmra.mxu0 %v1031
        %v1202 = vpop.f32.mrf.mxu0
        %v1203 = vadd.f32 %v1059, %v1202
        %v1204 = vpop.f32.mrf.mxu0
        %v1205 = vadd.f32 %v1059, %v1204
        %1206 = vdwg.mxu0
        %1207 = vmatpush.bf16.msra.mxu0 0
        %1208 = vmatpush.bf16.msra.mxu0 0
        %1209 = vmatpush.bf16.msra.mxu0 0
        %1210 = vmatpush.bf16.msra.mxu0 0
        %1211 = vmatpush.bf16.msra.mxu0 %v1120
        %1212 = vmatpush.bf16.msra.mxu0 %v1119
        %1213 = vmatpush.bf16.msra.mxu0 %v1118
        %1214 = vmatpush.bf16.msra.mxu0 %v1117
        %1215 = vmatmul.bf16.gmra.mxu0 %v1135
        %v1216 = vpop.f32.mrf.mxu0
        %v1217 = vadd.f32 %v1168, %v1216
        %v1218 = vpop.f32.mrf.mxu0
        %v1219 = vadd.f32 %v1170, %v1218
        %1220 = vmatmul.bf16.gmra.mxu0 %v1138
        %v1221 = vpop.f32.mrf.mxu0
        %v1222 = vadd.f32 %v1173, %v1221
        %v1223 = vpop.f32.mrf.mxu0
        %v1224 = vadd.f32 %v1175, %v1223
        %1225 = vmatmul.bf16.gmra.mxu0 %v1141
        %v1226 = vpop.f32.mrf.mxu0
        %v1227 = vadd.f32 %v1178, %v1226
        %v1228 = vpop.f32.mrf.mxu0
        %v1229 = vadd.f32 %v1180, %v1228
        %1230 = vmatmul.bf16.gmra.mxu0 %v1144
        %v1231 = vpop.f32.mrf.mxu0
        %v1232 = vadd.f32 %v1183, %v1231
        %v1233 = vpop.f32.mrf.mxu0
        %v1234 = vadd.f32 %v1185, %v1233
        %1235 = vmatmul.bf16.gmra.mxu0 %v1147
        %v1236 = vpop.f32.mrf.mxu0
        %v1237 = vadd.f32 %v1188, %v1236
        %v1238 = vpop.f32.mrf.mxu0
        %v1239 = vadd.f32 %v1190, %v1238
        %1240 = vmatmul.bf16.gmra.mxu0 %v1150
        %v1241 = vpop.f32.mrf.mxu0
        %v1242 = vadd.f32 %v1193, %v1241
        %v1243 = vpop.f32.mrf.mxu0
        %v1244 = vadd.f32 %v1195, %v1243
        %1245 = vmatmul.bf16.gmra.mxu0 %v1153
        %v1246 = vpop.f32.mrf.mxu0
        %v1247 = vadd.f32 %v1198, %v1246
        %v1248 = vpop.f32.mrf.mxu0
        %v1249 = vadd.f32 %v1200, %v1248
        %1250 = vmatmul.bf16.gmra.mxu0 %v1156
        %v1251 = vpop.f32.mrf.mxu0
        %v1252 = vadd.f32 %v1203, %v1251
        %v1253 = vpop.f32.mrf.mxu0
        %v1254 = vadd.f32 %v1205, %v1253
        %1255 = vdwg.mxu0
        %v1256 = vmul.f32 %v1217, 0.5
        %v1257 = vmul.f32 %v1219, 0.5
        %v1258 = vmul.f32 %v1222, 0.5
        %v1259 = vmul.f32 %v1224, 0.5
        %v1260 = vmul.f32 %v1227, 0.5
        %v1261 = vmul.f32 %v1229, 0.5
        %v1262 = vmul.f32 %v1232, 0.5
        %v1263 = vmul.f32 %v1234, 0.5
        %v1264 = vmul.f32 %v1237, 0.5
        %v1265 = vmul.f32 %v1239, 0.5
        %v1266 = vmul.f32 %v1242, 0.5
        %v1267 = vmul.f32 %v1244, 0.5
        %v1268 = vmul.f32 %v1247, 0.5
        %v1269 = vmul.f32 %v1249, 0.5
        %v1270 = vmul.f32 %v1252, 0.5
        %v1271 = vmul.f32 %v1254, 0.5
        %v1272 = vtanh.pop %v1256
        %v1273 = vtanh.pop %v1257
        %v1274 = vtanh.pop %v1258
        %v1275 = vtanh.pop %v1259
        %v1276 = vtanh.pop %v1260
        %v1277 = vtanh.pop %v1261
        %v1278 = vtanh.pop %v1262
        %v1279 = vtanh.pop %v1263
        %v1280 = vtanh.pop %v1264
        %v1281 = vtanh.pop %v1265
        %v1282 = vtanh.pop %v1266
        %v1283 = vtanh.pop %v1267
        %v1284 = vtanh.pop %v1268
        %v1285 = vtanh.pop %v1269
        %v1286 = vtanh.pop %v1270
        %v1287 = vtanh.pop %v1271
        %v1288 = vadd.f32 %v1272, 1.0
        %v1289 = vadd.f32 %v1273, 1.0
        %v1290 = vadd.f32 %v1274, 1.0
        %v1291 = vadd.f32 %v1275, 1.0
        %v1292 = vadd.f32 %v1276, 1.0
        %v1293 = vadd.f32 %v1277, 1.0
        %v1294 = vadd.f32 %v1278, 1.0
        %v1295 = vadd.f32 %v1279, 1.0
        %v1296 = vadd.f32 %v1280, 1.0
        %v1297 = vadd.f32 %v1281, 1.0
        %v1298 = vadd.f32 %v1282, 1.0
        %v1299 = vadd.f32 %v1283, 1.0
        %v1300 = vadd.f32 %v1284, 1.0
        %v1301 = vadd.f32 %v1285, 1.0
        %v1302 = vadd.f32 %v1286, 1.0
        %v1303 = vadd.f32 %v1287, 1.0
        %v1304 = vmul.f32 %v1288, 0.5
        %v1305 = vmul.f32 %v1289, 0.5
        %v1306 = vmul.f32 %v1290, 0.5
        %v1307 = vmul.f32 %v1291, 0.5
        %v1308 = vmul.f32 %v1292, 0.5
        %v1309 = vmul.f32 %v1293, 0.5
        %v1310 = vmul.f32 %v1294, 0.5
        %v1311 = vmul.f32 %v1295, 0.5
        %v1312 = vmul.f32 %v1296, 0.5
        %v1313 = vmul.f32 %v1297, 0.5
        %v1314 = vmul.f32 %v1298, 0.5
        %v1315 = vmul.f32 %v1299, 0.5
        %v1316 = vmul.f32 %v1300, 0.5
        %v1317 = vmul.f32 %v1301, 0.5
        %v1318 = vmul.f32 %v1302, 0.5
        %v1319 = vmul.f32 %v1303, 0.5
        %v1320 = vpack.c.bf16 %v1305, %v1304
        %v1321 = vpack.c.bf16 %v1307, %v1306
        %v1322 = vpack.c.bf16 %v1309, %v1308
        %v1323 = vpack.c.bf16 %v1311, %v1310
        %v1324 = vpack.c.bf16 %v1313, %v1312
        %v1325 = vpack.c.bf16 %v1315, %v1314
        %v1326 = vpack.c.bf16 %v1317, %v1316
        %v1327 = vpack.c.bf16 %v1319, %v1318
        %v1328 = vld [vmem:[%s7] sm:$0xff]
        %v1329 = vld [vmem:[%s7 + $0x8] sm:$0xff]
        %v1330 = vld [vmem:[%s7 + $0x10] sm:$0xff]
        %v1331 = vld [vmem:[%s7 + $0x18] sm:$0xff]
        %v1332 = vld [vmem:[%s7 + $0x20] sm:$0xff]
        %v1333 = vld [vmem:[%s7 + $0x28] sm:$0xff]
        %v1334 = vld [vmem:[%s7 + $0x30] sm:$0xff]
        %v1335 = vld [vmem:[%s7 + $0x38] sm:$0xff]
        %v1336 = vld [vmem:[%s7 + $0x40] sm:$0xff]
        %v1337 = vld [vmem:[%s7 + $0x48] sm:$0xff]
        %v1338 = vld [vmem:[%s7 + $0x50] sm:$0xff]
        %v1339 = vld [vmem:[%s7 + $0x58] sm:$0xff]
        %v1340 = vld [vmem:[%s8] sm:$0x3]
        %v1342 = vperm.slane %v1340, 0
        %v1343 = vperm.slane %v1340, 1
        %v1358 = vunpack.c.l.b16 %v1328
        %v1359 = vunpack.c.h.b16 %v1328
        %v1360 = vunpack.c.l.b16 %v1329
        %v1361 = vunpack.c.h.b16 %v1329
        %v1362 = vunpack.c.l.b16 %v1330
        %v1363 = vunpack.c.h.b16 %v1330
        %v1364 = vunpack.c.l.b16 %v1331
        %v1365 = vunpack.c.h.b16 %v1331
        %v1366 = vunpack.c.l.b16 %v1332
        %v1367 = vunpack.c.h.b16 %v1332
        %v1368 = vunpack.c.l.b16 %v1333
        %v1369 = vunpack.c.h.b16 %v1333
        %v1370 = vunpack.c.l.b16 %v1334
        %v1371 = vunpack.c.h.b16 %v1334
        %v1372 = vunpack.c.l.b16 %v1335
        %v1373 = vunpack.c.h.b16 %v1335
        %v1374 = vunpack.c.l.b16 %v1336
        %v1375 = vunpack.c.h.b16 %v1336
        %v1376 = vunpack.c.l.b16 %v1337
        %v1377 = vunpack.c.h.b16 %v1337
        %v1378 = vunpack.c.l.b16 %v1338
        %v1379 = vunpack.c.h.b16 %v1338
        %v1380 = vunpack.c.l.b16 %v1339
        %v1381 = vunpack.c.h.b16 %v1339
        %v1382 = vpack.c.b16 %v1360, %v1358
        %v1383 = vpack.c.b16 %v1361, %v1359
        %v1384 = vpack.c.b16 %v1364, %v1362
        %v1385 = vpack.c.b16 %v1365, %v1363
        %v1386 = vpack.c.b16 %v1368, %v1366
        %v1387 = vpack.c.b16 %v1369, %v1367
        %v1388 = vpack.c.b16 %v1372, %v1370
        %v1389 = vpack.c.b16 %v1373, %v1371
        %v1390 = vpack.c.b16 %v1376, %v1374
        %v1391 = vpack.c.b16 %v1377, %v1375
        %v1392 = vpack.c.b16 %v1380, %v1378
        %v1393 = vpack.c.b16 %v1381, %v1379
        %v1407 = vsel %vm766, %v1320, 0
        %v1410 = vsel %vm766, %v1321, 0
        %v1413 = vsel %vm766, %v1322, 0
        %v1416 = vsel %vm766, %v1323, 0
        %v1419 = vsel %vm766, %v1324, 0
        %v1422 = vsel %vm766, %v1325, 0
        %v1425 = vsel %vm766, %v1326, 0
        %v1428 = vsel %vm766, %v1327, 0
        %1430 = vmatpush.bf16.msra.mxu0 0
        %1431 = vmatpush.bf16.msra.mxu0 0
        %1432 = vmatpush.bf16.msra.mxu0 %v1392
        %1433 = vmatpush.bf16.msra.mxu0 %v1390
        %1434 = vmatpush.bf16.msra.mxu0 %v1388
        %1435 = vmatpush.bf16.msra.mxu0 %v1386
        %1436 = vmatpush.bf16.msra.mxu0 %v1384
        %1437 = vmatpush.bf16.msra.mxu0 %v1382
        %1438 = vmatmul.bf16.gmra.mxu0 %v1407
        %v1439 = vpop.f32.mrf.mxu0
        %v1440 = vadd.f32 %v1342, %v1439
        %v1441 = vpop.f32.mrf.mxu0
        %v1442 = vadd.f32 %v1342, %v1441
        %1443 = vmatmul.bf16.gmra.mxu0 %v1410
        %v1444 = vpop.f32.mrf.mxu0
        %v1445 = vadd.f32 %v1342, %v1444
        %v1446 = vpop.f32.mrf.mxu0
        %v1447 = vadd.f32 %v1342, %v1446
        %1448 = vmatmul.bf16.gmra.mxu0 %v1413
        %v1449 = vpop.f32.mrf.mxu0
        %v1450 = vadd.f32 %v1342, %v1449
        %v1451 = vpop.f32.mrf.mxu0
        %v1452 = vadd.f32 %v1342, %v1451
        %1453 = vmatmul.bf16.gmra.mxu0 %v1416
        %v1454 = vpop.f32.mrf.mxu0
        %v1455 = vadd.f32 %v1342, %v1454
        %v1456 = vpop.f32.mrf.mxu0
        %v1457 = vadd.f32 %v1342, %v1456
        %1458 = vmatmul.bf16.gmra.mxu0 %v1419
        %v1459 = vpop.f32.mrf.mxu0
        %v1460 = vadd.f32 %v1342, %v1459
        %v1461 = vpop.f32.mrf.mxu0
        %v1462 = vadd.f32 %v1342, %v1461
        %1463 = vmatmul.bf16.gmra.mxu0 %v1422
        %v1464 = vpop.f32.mrf.mxu0
        %v1465 = vadd.f32 %v1342, %v1464
        %v1466 = vpop.f32.mrf.mxu0
        %v1467 = vadd.f32 %v1342, %v1466
        %1468 = vmatmul.bf16.gmra.mxu0 %v1425
        %v1469 = vpop.f32.mrf.mxu0
        %v1470 = vadd.f32 %v1342, %v1469
        %v1471 = vpop.f32.mrf.mxu0
        %v1472 = vadd.f32 %v1342, %v1471
        %1473 = vmatmul.bf16.gmra.mxu0 %v1428
        %v1474 = vpop.f32.mrf.mxu0
        %v1475 = vadd.f32 %v1342, %v1474
        %v1476 = vpop.f32.mrf.mxu0
        %v1477 = vadd.f32 %v1342, %v1476
        %1478 = vdwg.mxu0
        %1479 = vmatpush.bf16.msra.mxu0 0
        %1480 = vmatpush.bf16.msra.mxu0 0
        %1481 = vmatpush.bf16.msra.mxu0 %v1393
        %1482 = vmatpush.bf16.msra.mxu0 %v1391
        %1483 = vmatpush.bf16.msra.mxu0 %v1389
        %1484 = vmatpush.bf16.msra.mxu0 %v1387
        %1485 = vmatpush.bf16.msra.mxu0 %v1385
        %1486 = vmatpush.bf16.msra.mxu0 %v1383
        %1487 = vmatmul.bf16.gmra.mxu0 %v1407
        %v1488 = vpop.f32.mrf.mxu0
        %v1489 = vadd.f32 %v1343, %v1488
        %v1490 = vpop.f32.mrf.mxu0
        %v1491 = vadd.f32 %v1343, %v1490
        %1492 = vmatmul.bf16.gmra.mxu0 %v1410
        %v1493 = vpop.f32.mrf.mxu0
        %v1494 = vadd.f32 %v1343, %v1493
        %v1495 = vpop.f32.mrf.mxu0
        %v1496 = vadd.f32 %v1343, %v1495
        %1497 = vmatmul.bf16.gmra.mxu0 %v1413
        %v1498 = vpop.f32.mrf.mxu0
        %v1499 = vadd.f32 %v1343, %v1498
        %v1500 = vpop.f32.mrf.mxu0
        %v1501 = vadd.f32 %v1343, %v1500
        %1502 = vmatmul.bf16.gmra.mxu0 %v1416
        %v1503 = vpop.f32.mrf.mxu0
        %v1504 = vadd.f32 %v1343, %v1503
        %v1505 = vpop.f32.mrf.mxu0
        %v1506 = vadd.f32 %v1343, %v1505
        %1507 = vmatmul.bf16.gmra.mxu0 %v1419
        %v1508 = vpop.f32.mrf.mxu0
        %v1509 = vadd.f32 %v1343, %v1508
        %v1510 = vpop.f32.mrf.mxu0
        %v1511 = vadd.f32 %v1343, %v1510
        %1512 = vmatmul.bf16.gmra.mxu0 %v1422
        %v1513 = vpop.f32.mrf.mxu0
        %v1514 = vadd.f32 %v1343, %v1513
        %v1515 = vpop.f32.mrf.mxu0
        %v1516 = vadd.f32 %v1343, %v1515
        %1517 = vmatmul.bf16.gmra.mxu0 %v1425
        %v1518 = vpop.f32.mrf.mxu0
        %v1519 = vadd.f32 %v1343, %v1518
        %v1520 = vpop.f32.mrf.mxu0
        %v1521 = vadd.f32 %v1343, %v1520
        %1522 = vmatmul.bf16.gmra.mxu0 %v1428
        %v1523 = vpop.f32.mrf.mxu0
        %v1524 = vadd.f32 %v1343, %v1523
        %v1525 = vpop.f32.mrf.mxu0
        %v1526 = vadd.f32 %v1343, %v1525
        %1527 = vdwg.mxu0
        %v1528 = vmul.f32 %v1440, 0.5
        %v1529 = vmul.f32 %v1489, 0.5
        %v1530 = vmul.f32 %v1442, 0.5
        %v1531 = vmul.f32 %v1491, 0.5
        %v1532 = vmul.f32 %v1445, 0.5
        %v1533 = vmul.f32 %v1494, 0.5
        %v1534 = vmul.f32 %v1447, 0.5
        %v1535 = vmul.f32 %v1496, 0.5
        %v1536 = vmul.f32 %v1450, 0.5
        %v1537 = vmul.f32 %v1499, 0.5
        %v1538 = vmul.f32 %v1452, 0.5
        %v1539 = vmul.f32 %v1501, 0.5
        %v1540 = vmul.f32 %v1455, 0.5
        %v1541 = vmul.f32 %v1504, 0.5
        %v1542 = vmul.f32 %v1457, 0.5
        %v1543 = vmul.f32 %v1506, 0.5
        %v1544 = vmul.f32 %v1460, 0.5
        %v1545 = vmul.f32 %v1509, 0.5
        %v1546 = vmul.f32 %v1462, 0.5
        %v1547 = vmul.f32 %v1511, 0.5
        %v1548 = vmul.f32 %v1465, 0.5
        %v1549 = vmul.f32 %v1514, 0.5
        %v1550 = vmul.f32 %v1467, 0.5
        %v1551 = vmul.f32 %v1516, 0.5
        %v1552 = vmul.f32 %v1470, 0.5
        %v1553 = vmul.f32 %v1519, 0.5
        %v1554 = vmul.f32 %v1472, 0.5
        %v1555 = vmul.f32 %v1521, 0.5
        %v1556 = vmul.f32 %v1475, 0.5
        %v1557 = vmul.f32 %v1524, 0.5
        %v1558 = vmul.f32 %v1477, 0.5
        %v1559 = vmul.f32 %v1526, 0.5
        %v1560 = vtanh.pop %v1528
        %v1561 = vtanh.pop %v1529
        %v1562 = vtanh.pop %v1530
        %v1563 = vtanh.pop %v1531
        %v1564 = vtanh.pop %v1532
        %v1565 = vtanh.pop %v1533
        %v1566 = vtanh.pop %v1534
        %v1567 = vtanh.pop %v1535
        %v1568 = vtanh.pop %v1536
        %v1569 = vtanh.pop %v1537
        %v1570 = vtanh.pop %v1538
        %v1571 = vtanh.pop %v1539
        %v1572 = vtanh.pop %v1540
        %v1573 = vtanh.pop %v1541
        %v1574 = vtanh.pop %v1542
        %v1575 = vtanh.pop %v1543
        %v1576 = vtanh.pop %v1544
        %v1577 = vtanh.pop %v1545
        %v1578 = vtanh.pop %v1546
        %v1579 = vtanh.pop %v1547
        %v1580 = vtanh.pop %v1548
        %v1581 = vtanh.pop %v1549
        %v1582 = vtanh.pop %v1550
        %v1583 = vtanh.pop %v1551
        %v1584 = vtanh.pop %v1552
        %v1585 = vtanh.pop %v1553
        %v1586 = vtanh.pop %v1554
        %v1587 = vtanh.pop %v1555
        %v1588 = vtanh.pop %v1556
        %v1589 = vtanh.pop %v1557
        %v1590 = vtanh.pop %v1558
        %v1591 = vtanh.pop %v1559
        %v1592 = vadd.f32 %v1560, 1.0
        %v1593 = vadd.f32 %v1561, 1.0
        %v1594 = vadd.f32 %v1562, 1.0
        %v1595 = vadd.f32 %v1563, 1.0
        %v1596 = vadd.f32 %v1564, 1.0
        %v1597 = vadd.f32 %v1565, 1.0
        %v1598 = vadd.f32 %v1566, 1.0
        %v1599 = vadd.f32 %v1567, 1.0
        %v1600 = vadd.f32 %v1568, 1.0
        %v1601 = vadd.f32 %v1569, 1.0
        %v1602 = vadd.f32 %v1570, 1.0
        %v1603 = vadd.f32 %v1571, 1.0
        %v1604 = vadd.f32 %v1572, 1.0
        %v1605 = vadd.f32 %v1573, 1.0
        %v1606 = vadd.f32 %v1574, 1.0
        %v1607 = vadd.f32 %v1575, 1.0
        %v1608 = vadd.f32 %v1576, 1.0
        %v1609 = vadd.f32 %v1577, 1.0
        %v1610 = vadd.f32 %v1578, 1.0
        %v1611 = vadd.f32 %v1579, 1.0
        %v1612 = vadd.f32 %v1580, 1.0
        %v1613 = vadd.f32 %v1581, 1.0
        %v1614 = vadd.f32 %v1582, 1.0
        %v1615 = vadd.f32 %v1583, 1.0
        %v1616 = vadd.f32 %v1584, 1.0
        %v1617 = vadd.f32 %v1585, 1.0
        %v1618 = vadd.f32 %v1586, 1.0
        %v1619 = vadd.f32 %v1587, 1.0
        %v1620 = vadd.f32 %v1588, 1.0
        %v1621 = vadd.f32 %v1589, 1.0
        %v1622 = vadd.f32 %v1590, 1.0
        %v1623 = vadd.f32 %v1591, 1.0
        %v1624 = vmul.f32 %v1592, 0.5
        %v1625 = vmul.f32 %v1593, 0.5
        %v1626 = vmul.f32 %v1594, 0.5
        %v1627 = vmul.f32 %v1595, 0.5
        %v1628 = vmul.f32 %v1596, 0.5
        %v1629 = vmul.f32 %v1597, 0.5
        %v1630 = vmul.f32 %v1598, 0.5
        %v1631 = vmul.f32 %v1599, 0.5
        %v1632 = vmul.f32 %v1600, 0.5
        %v1633 = vmul.f32 %v1601, 0.5
        %v1634 = vmul.f32 %v1602, 0.5
        %v1635 = vmul.f32 %v1603, 0.5
        %v1636 = vmul.f32 %v1604, 0.5
        %v1637 = vmul.f32 %v1605, 0.5
        %v1638 = vmul.f32 %v1606, 0.5
        %v1639 = vmul.f32 %v1607, 0.5
        %v1640 = vmul.f32 %v1608, 0.5
        %v1641 = vmul.f32 %v1609, 0.5
        %v1642 = vmul.f32 %v1610, 0.5
        %v1643 = vmul.f32 %v1611, 0.5
        %v1644 = vmul.f32 %v1612, 0.5
        %v1645 = vmul.f32 %v1613, 0.5
        %v1646 = vmul.f32 %v1614, 0.5
        %v1647 = vmul.f32 %v1615, 0.5
        %v1648 = vmul.f32 %v1616, 0.5
        %v1649 = vmul.f32 %v1617, 0.5
        %v1650 = vmul.f32 %v1618, 0.5
        %v1651 = vmul.f32 %v1619, 0.5
        %v1652 = vmul.f32 %v1620, 0.5
        %v1653 = vmul.f32 %v1621, 0.5
        %v1654 = vmul.f32 %v1622, 0.5
        %v1655 = vmul.f32 %v1623, 0.5
        %v1656 = vpack.c.bf16 %v1626, %v1624
        %v1657 = vpack.c.bf16 %v1627, %v1625
        %v1658 = vpack.c.bf16 %v1630, %v1628
        %v1659 = vpack.c.bf16 %v1631, %v1629
        %v1660 = vpack.c.bf16 %v1634, %v1632
        %v1661 = vpack.c.bf16 %v1635, %v1633
        %v1662 = vpack.c.bf16 %v1638, %v1636
        %v1663 = vpack.c.bf16 %v1639, %v1637
        %v1664 = vpack.c.bf16 %v1642, %v1640
        %v1665 = vpack.c.bf16 %v1643, %v1641
        %v1666 = vpack.c.bf16 %v1646, %v1644
        %v1667 = vpack.c.bf16 %v1647, %v1645
        %v1668 = vpack.c.bf16 %v1650, %v1648
        %v1669 = vpack.c.bf16 %v1651, %v1649
        %v1670 = vpack.c.bf16 %v1654, %v1652
        %v1671 = vpack.c.bf16 %v1655, %v1653
        %v1672 = vld [vmem:[%s9] sm:$0xff]
        %v1673 = vld [vmem:[%s9 + $0x8] sm:$0xf]
        %v1674 = vld [vmem:[%s9 + $0xc] sm:$0xff]
        %v1675 = vld [vmem:[%s9 + $0x14] sm:$0xf]
        %v1676 = vld [vmem:[%s9 + $0x18] sm:$0xff]
        %v1677 = vld [vmem:[%s9 + $0x20] sm:$0xf]
        %v1678 = vld [vmem:[%s9 + $0x24] sm:$0xff]
        %v1679 = vld [vmem:[%s9 + $0x2c] sm:$0xf]
        %v1680 = vld [vmem:[%s9 + $0x30] sm:$0xff]
        %v1681 = vld [vmem:[%s9 + $0x38] sm:$0xf]
        %v1682 = vld [vmem:[%s9 + $0x3c] sm:$0xff]
        %v1683 = vld [vmem:[%s9 + $0x44] sm:$0xf]
        %v1684 = vld [vmem:[%s9 + $0x48] sm:$0xff]
        %v1685 = vld [vmem:[%s9 + $0x50] sm:$0xf]
        %v1686 = vld [vmem:[%s9 + $0x54] sm:$0xff]
        %v1687 = vld [vmem:[%s9 + $0x5c] sm:$0xf]
        %v1688 = vld [vmem:[%s9 + $0x60] sm:$0xff]
        %v1689 = vld [vmem:[%s9 + $0x68] sm:$0xf]
        %v1690 = vld [vmem:[%s9 + $0x6c] sm:$0xff]
        %v1691 = vld [vmem:[%s9 + $0x74] sm:$0xf]
        %v1692 = vld [vmem:[%s9 + $0x78] sm:$0xff]
        %v1693 = vld [vmem:[%s9 + $0x80] sm:$0xf]
        %v1694 = vld [vmem:[%s9 + $0x84] sm:$0xff]
        %v1695 = vld [vmem:[%s9 + $0x8c] sm:$0xf]
        %v1696 = vld [vmem:[%s9 + $0x90] sm:$0xff]
        %v1697 = vld [vmem:[%s9 + $0x98] sm:$0xf]
        %v1698 = vld [vmem:[%s9 + $0x9c] sm:$0xff]
        %v1699 = vld [vmem:[%s9 + $0xa4] sm:$0xf]
        %v1700 = vld [vmem:[%s9 + $0xa8] sm:$0xff]
        %v1701 = vld [vmem:[%s9 + $0xb0] sm:$0xf]
        %v1702 = vld [vmem:[%s9 + $0xb4] sm:$0xff]
        %v1703 = vld [vmem:[%s9 + $0xbc] sm:$0xf]
        %v1704 = vld [vmem:[%s9 + $0xc0] sm:$0xff]
        %v1705 = vld [vmem:[%s9 + $0xc8] sm:$0xf]
        %v1706 = vld [vmem:[%s9 + $0xcc] sm:$0xff]
        %v1707 = vld [vmem:[%s9 + $0xd4] sm:$0xf]
        %v1708 = vld [vmem:[%s9 + $0xd8] sm:$0xff]
        %v1709 = vld [vmem:[%s9 + $0xe0] sm:$0xf]
        %v1710 = vld [vmem:[%s9 + $0xe4] sm:$0xff]
        %v1711 = vld [vmem:[%s9 + $0xec] sm:$0xf]
        %v1712 = vld [vmem:[%s9 + $0xf0] sm:$0xff]
        %v1713 = vld [vmem:[%s9 + $0xf8] sm:$0xf]
        %v1714 = vld [vmem:[%s9 + $0xfc] sm:$0xff]
        %v1715 = vld [vmem:[%s9 + $0x104] sm:$0xf]
        %v1716 = vld [vmem:[%s9 + $0x108] sm:$0xff]
        %v1717 = vld [vmem:[%s9 + $0x110] sm:$0xf]
        %v1718 = vld [vmem:[%s9 + $0x114] sm:$0xff]
        %v1719 = vld [vmem:[%s9 + $0x11c] sm:$0xf]
        %v1720 = vld [vmem:[%s9 + $0x120] sm:$0xff]
        %v1721 = vld [vmem:[%s9 + $0x128] sm:$0xf]
        %v1722 = vld [vmem:[%s9 + $0x12c] sm:$0xff]
        %v1723 = vld [vmem:[%s9 + $0x134] sm:$0xf]
        %v1724 = vld [vmem:[%s10] sm:$0x7]
        %v1726 = vperm.slane %v1724, 0
        %v1727 = vperm.slane %v1724, 1
        %v1728 = vperm.slane %v1724, 2
        %v1784 = vunpack.c.l.b16 %v1672
        %v1785 = vunpack.c.h.b16 %v1672
        %v1786 = vunpack.c.l.b16 %v1673
        %v1787 = vunpack.c.l.b16 %v1674
        %v1788 = vunpack.c.h.b16 %v1674
        %v1789 = vunpack.c.l.b16 %v1675
        %v1790 = vunpack.c.l.b16 %v1676
        %v1791 = vunpack.c.h.b16 %v1676
        %v1792 = vunpack.c.l.b16 %v1677
        %v1793 = vunpack.c.l.b16 %v1678
        %v1794 = vunpack.c.h.b16 %v1678
        %v1795 = vunpack.c.l.b16 %v1679
        %v1796 = vunpack.c.l.b16 %v1680
        %v1797 = vunpack.c.h.b16 %v1680
        %v1798 = vunpack.c.l.b16 %v1681
        %v1799 = vunpack.c.l.b16 %v1682
        %v1800 = vunpack.c.h.b16 %v1682
        %v1801 = vunpack.c.l.b16 %v1683
        %v1802 = vunpack.c.l.b16 %v1684
        %v1803 = vunpack.c.h.b16 %v1684
        %v1804 = vunpack.c.l.b16 %v1685
        %v1805 = vunpack.c.l.b16 %v1686
        %v1806 = vunpack.c.h.b16 %v1686
        %v1807 = vunpack.c.l.b16 %v1687
        %v1808 = vunpack.c.l.b16 %v1688
        %v1809 = vunpack.c.h.b16 %v1688
        %v1810 = vunpack.c.l.b16 %v1689
        %v1811 = vunpack.c.l.b16 %v1690
        %v1812 = vunpack.c.h.b16 %v1690
        %v1813 = vunpack.c.l.b16 %v1691
        %v1814 = vunpack.c.l.b16 %v1692
        %v1815 = vunpack.c.h.b16 %v1692
        %v1816 = vunpack.c.l.b16 %v1693
        %v1817 = vunpack.c.l.b16 %v1694
        %v1818 = vunpack.c.h.b16 %v1694
        %v1819 = vunpack.c.l.b16 %v1695
        %v1820 = vunpack.c.l.b16 %v1696
        %v1821 = vunpack.c.h.b16 %v1696
        %v1822 = vunpack.c.l.b16 %v1697
        %v1823 = vunpack.c.l.b16 %v1698
        %v1824 = vunpack.c.h.b16 %v1698
        %v1825 = vunpack.c.l.b16 %v1699
        %v1826 = vunpack.c.l.b16 %v1700
        %v1827 = vunpack.c.h.b16 %v1700
        %v1828 = vunpack.c.l.b16 %v1701
        %v1829 = vunpack.c.l.b16 %v1702
        %v1830 = vunpack.c.h.b16 %v1702
        %v1831 = vunpack.c.l.b16 %v1703
        %v1832 = vunpack.c.l.b16 %v1704
        %v1833 = vunpack.c.h.b16 %v1704
        %v1834 = vunpack.c.l.b16 %v1705
        %v1835 = vunpack.c.l.b16 %v1706
        %v1836 = vunpack.c.h.b16 %v1706
        %v1837 = vunpack.c.l.b16 %v1707
        %v1838 = vunpack.c.l.b16 %v1708
        %v1839 = vunpack.c.h.b16 %v1708
        %v1840 = vunpack.c.l.b16 %v1709
        %v1841 = vunpack.c.l.b16 %v1710
        %v1842 = vunpack.c.h.b16 %v1710
        %v1843 = vunpack.c.l.b16 %v1711
        %v1844 = vunpack.c.l.b16 %v1712
        %v1845 = vunpack.c.h.b16 %v1712
        %v1846 = vunpack.c.l.b16 %v1713
        %v1847 = vunpack.c.l.b16 %v1714
        %v1848 = vunpack.c.h.b16 %v1714
        %v1849 = vunpack.c.l.b16 %v1715
        %v1850 = vunpack.c.l.b16 %v1716
        %v1851 = vunpack.c.h.b16 %v1716
        %v1852 = vunpack.c.l.b16 %v1717
        %v1853 = vunpack.c.l.b16 %v1718
        %v1854 = vunpack.c.h.b16 %v1718
        %v1855 = vunpack.c.l.b16 %v1719
        %v1856 = vunpack.c.l.b16 %v1720
        %v1857 = vunpack.c.h.b16 %v1720
        %v1858 = vunpack.c.l.b16 %v1721
        %v1859 = vunpack.c.l.b16 %v1722
        %v1860 = vunpack.c.h.b16 %v1722
        %v1861 = vunpack.c.l.b16 %v1723
        %v1862 = vpack.c.b16 %v1787, %v1784
        %v1863 = vpack.c.b16 %v1788, %v1785
        %v1864 = vpack.c.b16 %v1789, %v1786
        %v1865 = vpack.c.b16 %v1793, %v1790
        %v1866 = vpack.c.b16 %v1794, %v1791
        %v1867 = vpack.c.b16 %v1795, %v1792
        %v1868 = vpack.c.b16 %v1799, %v1796
        %v1869 = vpack.c.b16 %v1800, %v1797
        %v1870 = vpack.c.b16 %v1801, %v1798
        %v1871 = vpack.c.b16 %v1805, %v1802
        %v1872 = vpack.c.b16 %v1806, %v1803
        %v1873 = vpack.c.b16 %v1807, %v1804
        %v1874 = vpack.c.b16 %v1811, %v1808
        %v1875 = vpack.c.b16 %v1812, %v1809
        %v1876 = vpack.c.b16 %v1813, %v1810
        %v1877 = vpack.c.b16 %v1817, %v1814
        %v1878 = vpack.c.b16 %v1818, %v1815
        %v1879 = vpack.c.b16 %v1819, %v1816
        %v1880 = vpack.c.b16 %v1823, %v1820
        %v1881 = vpack.c.b16 %v1824, %v1821
        %v1882 = vpack.c.b16 %v1825, %v1822
        %v1883 = vpack.c.b16 %v1829, %v1826
        %v1884 = vpack.c.b16 %v1830, %v1827
        %v1885 = vpack.c.b16 %v1831, %v1828
        %v1886 = vpack.c.b16 %v1835, %v1832
        %v1887 = vpack.c.b16 %v1836, %v1833
        %v1888 = vpack.c.b16 %v1837, %v1834
        %v1889 = vpack.c.b16 %v1841, %v1838
        %v1890 = vpack.c.b16 %v1842, %v1839
        %v1891 = vpack.c.b16 %v1843, %v1840
        %v1892 = vpack.c.b16 %v1847, %v1844
        %v1893 = vpack.c.b16 %v1848, %v1845
        %v1894 = vpack.c.b16 %v1849, %v1846
        %v1895 = vpack.c.b16 %v1853, %v1850
        %v1896 = vpack.c.b16 %v1854, %v1851
        %v1897 = vpack.c.b16 %v1855, %v1852
        %v1898 = vpack.c.b16 %v1859, %v1856
        %v1899 = vpack.c.b16 %v1860, %v1857
        %v1900 = vpack.c.b16 %v1861, %v1858
        %vm1940 = vcmask 654336
        %v1942 = vsel %vm1940, %v1657, 0
        %v1945 = vsel %vm1940, %v1659, 0
        %v1948 = vsel %vm1940, %v1661, 0
        %v1951 = vsel %vm1940, %v1663, 0
        %v1954 = vsel %vm1940, %v1665, 0
        %v1957 = vsel %vm1940, %v1667, 0
        %v1960 = vsel %vm1940, %v1669, 0
        %v1963 = vsel %vm1940, %v1671, 0
        %1965 = vmatpush.bf16.msra.mxu0 %v1883
        %1966 = vmatpush.bf16.msra.mxu0 %v1880
        %1967 = vmatpush.bf16.msra.mxu0 %v1877
        %1968 = vmatpush.bf16.msra.mxu0 %v1874
        %1969 = vmatpush.bf16.msra.mxu0 %v1871
        %1970 = vmatpush.bf16.msra.mxu0 %v1868
        %1971 = vmatpush.bf16.msra.mxu0 %v1865
        %1972 = vmatpush.bf16.msra.mxu0 %v1862
        %1973 = vmatmul.bf16.gmra.mxu0 %v1656
        %v1974 = vpop.f32.mrf.mxu0
        %v1975 = vadd.f32 %v1726, %v1974
        %v1976 = vpop.f32.mrf.mxu0
        %v1977 = vadd.f32 %v1726, %v1976
        %1978 = vmatmul.bf16.gmra.mxu0 %v1658
        %v1979 = vpop.f32.mrf.mxu0
        %v1980 = vadd.f32 %v1726, %v1979
        %v1981 = vpop.f32.mrf.mxu0
        %v1982 = vadd.f32 %v1726, %v1981
        %1983 = vmatmul.bf16.gmra.mxu0 %v1660
        %v1984 = vpop.f32.mrf.mxu0
        %v1985 = vadd.f32 %v1726, %v1984
        %v1986 = vpop.f32.mrf.mxu0
        %v1987 = vadd.f32 %v1726, %v1986
        %1988 = vmatmul.bf16.gmra.mxu0 %v1662
        %v1989 = vpop.f32.mrf.mxu0
        %v1990 = vadd.f32 %v1726, %v1989
        %v1991 = vpop.f32.mrf.mxu0
        %v1992 = vadd.f32 %v1726, %v1991
        %1993 = vmatmul.bf16.gmra.mxu0 %v1664
        %v1994 = vpop.f32.mrf.mxu0
        %v1995 = vadd.f32 %v1726, %v1994
        %v1996 = vpop.f32.mrf.mxu0
        %v1997 = vadd.f32 %v1726, %v1996
        %1998 = vmatmul.bf16.gmra.mxu0 %v1666
        %v1999 = vpop.f32.mrf.mxu0
        %v2000 = vadd.f32 %v1726, %v1999
        %v2001 = vpop.f32.mrf.mxu0
        %v2002 = vadd.f32 %v1726, %v2001
        %2003 = vmatmul.bf16.gmra.mxu0 %v1668
        %v2004 = vpop.f32.mrf.mxu0
        %v2005 = vadd.f32 %v1726, %v2004
        %v2006 = vpop.f32.mrf.mxu0
        %v2007 = vadd.f32 %v1726, %v2006
        %2008 = vmatmul.bf16.gmra.mxu0 %v1670
        %v2009 = vpop.f32.mrf.mxu0
        %v2010 = vadd.f32 %v1726, %v2009
        %v2011 = vpop.f32.mrf.mxu0
        %v2012 = vadd.f32 %v1726, %v2011
        %2013 = vdwg.mxu0
        %2014 = vmatpush.bf16.msra.mxu0 0
        %2015 = vmatpush.bf16.msra.mxu0 0
        %2016 = vmatpush.bf16.msra.mxu0 0
        %2017 = vmatpush.bf16.msra.mxu0 %v1898
        %2018 = vmatpush.bf16.msra.mxu0 %v1895
        %2019 = vmatpush.bf16.msra.mxu0 %v1892
        %2020 = vmatpush.bf16.msra.mxu0 %v1889
        %2021 = vmatpush.bf16.msra.mxu0 %v1886
        %2022 = vmatmul.bf16.gmra.mxu0 %v1942
        %v2023 = vpop.f32.mrf.mxu0
        %v2024 = vadd.f32 %v1975, %v2023
        %v2025 = vpop.f32.mrf.mxu0
        %v2026 = vadd.f32 %v1977, %v2025
        %2027 = vmatmul.bf16.gmra.mxu0 %v1945
        %v2028 = vpop.f32.mrf.mxu0
        %v2029 = vadd.f32 %v1980, %v2028
        %v2030 = vpop.f32.mrf.mxu0
        %v2031 = vadd.f32 %v1982, %v2030
        %2032 = vmatmul.bf16.gmra.mxu0 %v1948
        %v2033 = vpop.f32.mrf.mxu0
        %v2034 = vadd.f32 %v1985, %v2033
        %v2035 = vpop.f32.mrf.mxu0
        %v2036 = vadd.f32 %v1987, %v2035
        %2037 = vmatmul.bf16.gmra.mxu0 %v1951
        %v2038 = vpop.f32.mrf.mxu0
        %v2039 = vadd.f32 %v1990, %v2038
        %v2040 = vpop.f32.mrf.mxu0
        %v2041 = vadd.f32 %v1992, %v2040
        %2042 = vmatmul.bf16.gmra.mxu0 %v1954
        %v2043 = vpop.f32.mrf.mxu0
        %v2044 = vadd.f32 %v1995, %v2043
        %v2045 = vpop.f32.mrf.mxu0
        %v2046 = vadd.f32 %v1997, %v2045
        %2047 = vmatmul.bf16.gmra.mxu0 %v1957
        %v2048 = vpop.f32.mrf.mxu0
        %v2049 = vadd.f32 %v2000, %v2048
        %v2050 = vpop.f32.mrf.mxu0
        %v2051 = vadd.f32 %v2002, %v2050
        %2052 = vmatmul.bf16.gmra.mxu0 %v1960
        %v2053 = vpop.f32.mrf.mxu0
        %v2054 = vadd.f32 %v2005, %v2053
        %v2055 = vpop.f32.mrf.mxu0
        %v2056 = vadd.f32 %v2007, %v2055
        %2057 = vmatmul.bf16.gmra.mxu0 %v1963
        %v2058 = vpop.f32.mrf.mxu0
        %v2059 = vadd.f32 %v2010, %v2058
        %v2060 = vpop.f32.mrf.mxu0
        %v2061 = vadd.f32 %v2012, %v2060
        %2062 = vdwg.mxu0
        %2063 = vmatpush.bf16.msra.mxu0 %v1884
        %2064 = vmatpush.bf16.msra.mxu0 %v1881
        %2065 = vmatpush.bf16.msra.mxu0 %v1878
        %2066 = vmatpush.bf16.msra.mxu0 %v1875
        %2067 = vmatpush.bf16.msra.mxu0 %v1872
        %2068 = vmatpush.bf16.msra.mxu0 %v1869
        %2069 = vmatpush.bf16.msra.mxu0 %v1866
        %2070 = vmatpush.bf16.msra.mxu0 %v1863
        %2071 = vmatmul.bf16.gmra.mxu0 %v1656
        %v2072 = vpop.f32.mrf.mxu0
        %v2073 = vadd.f32 %v1727, %v2072
        %v2074 = vpop.f32.mrf.mxu0
        %v2075 = vadd.f32 %v1727, %v2074
        %2076 = vmatmul.bf16.gmra.mxu0 %v1658
        %v2077 = vpop.f32.mrf.mxu0
        %v2078 = vadd.f32 %v1727, %v2077
        %v2079 = vpop.f32.mrf.mxu0
        %v2080 = vadd.f32 %v1727, %v2079
        %2081 = vmatmul.bf16.gmra.mxu0 %v1660
        %v2082 = vpop.f32.mrf.mxu0
        %v2083 = vadd.f32 %v1727, %v2082
        %v2084 = vpop.f32.mrf.mxu0
        %v2085 = vadd.f32 %v1727, %v2084
        %2086 = vmatmul.bf16.gmra.mxu0 %v1662
        %v2087 = vpop.f32.mrf.mxu0
        %v2088 = vadd.f32 %v1727, %v2087
        %v2089 = vpop.f32.mrf.mxu0
        %v2090 = vadd.f32 %v1727, %v2089
        %2091 = vmatmul.bf16.gmra.mxu0 %v1664
        %v2092 = vpop.f32.mrf.mxu0
        %v2093 = vadd.f32 %v1727, %v2092
        %v2094 = vpop.f32.mrf.mxu0
        %v2095 = vadd.f32 %v1727, %v2094
        %2096 = vmatmul.bf16.gmra.mxu0 %v1666
        %v2097 = vpop.f32.mrf.mxu0
        %v2098 = vadd.f32 %v1727, %v2097
        %v2099 = vpop.f32.mrf.mxu0
        %v2100 = vadd.f32 %v1727, %v2099
        %2101 = vmatmul.bf16.gmra.mxu0 %v1668
        %v2102 = vpop.f32.mrf.mxu0
        %v2103 = vadd.f32 %v1727, %v2102
        %v2104 = vpop.f32.mrf.mxu0
        %v2105 = vadd.f32 %v1727, %v2104
        %2106 = vmatmul.bf16.gmra.mxu0 %v1670
        %v2107 = vpop.f32.mrf.mxu0
        %v2108 = vadd.f32 %v1727, %v2107
        %v2109 = vpop.f32.mrf.mxu0
        %v2110 = vadd.f32 %v1727, %v2109
        %2111 = vdwg.mxu0
        %2112 = vmatpush.bf16.msra.mxu0 0
        %2113 = vmatpush.bf16.msra.mxu0 0
        %2114 = vmatpush.bf16.msra.mxu0 0
        %2115 = vmatpush.bf16.msra.mxu0 %v1899
        %2116 = vmatpush.bf16.msra.mxu0 %v1896
        %2117 = vmatpush.bf16.msra.mxu0 %v1893
        %2118 = vmatpush.bf16.msra.mxu0 %v1890
        %2119 = vmatpush.bf16.msra.mxu0 %v1887
        %2120 = vmatmul.bf16.gmra.mxu0 %v1942
        %v2121 = vpop.f32.mrf.mxu0
        %v2122 = vadd.f32 %v2073, %v2121
        %v2123 = vpop.f32.mrf.mxu0
        %v2124 = vadd.f32 %v2075, %v2123
        %2125 = vmatmul.bf16.gmra.mxu0 %v1945
        %v2126 = vpop.f32.mrf.mxu0
        %v2127 = vadd.f32 %v2078, %v2126
        %v2128 = vpop.f32.mrf.mxu0
        %v2129 = vadd.f32 %v2080, %v2128
        %2130 = vmatmul.bf16.gmra.mxu0 %v1948
        %v2131 = vpop.f32.mrf.mxu0
        %v2132 = vadd.f32 %v2083, %v2131
        %v2133 = vpop.f32.mrf.mxu0
        %v2134 = vadd.f32 %v2085, %v2133
        %2135 = vmatmul.bf16.gmra.mxu0 %v1951
        %v2136 = vpop.f32.mrf.mxu0
        %v2137 = vadd.f32 %v2088, %v2136
        %v2138 = vpop.f32.mrf.mxu0
        %v2139 = vadd.f32 %v2090, %v2138
        %2140 = vmatmul.bf16.gmra.mxu0 %v1954
        %v2141 = vpop.f32.mrf.mxu0
        %v2142 = vadd.f32 %v2093, %v2141
        %v2143 = vpop.f32.mrf.mxu0
        %v2144 = vadd.f32 %v2095, %v2143
        %2145 = vmatmul.bf16.gmra.mxu0 %v1957
        %v2146 = vpop.f32.mrf.mxu0
        %v2147 = vadd.f32 %v2098, %v2146
        %v2148 = vpop.f32.mrf.mxu0
        %v2149 = vadd.f32 %v2100, %v2148
        %2150 = vmatmul.bf16.gmra.mxu0 %v1960
        %v2151 = vpop.f32.mrf.mxu0
        %v2152 = vadd.f32 %v2103, %v2151
        %v2153 = vpop.f32.mrf.mxu0
        %v2154 = vadd.f32 %v2105, %v2153
        %2155 = vmatmul.bf16.gmra.mxu0 %v1963
        %v2156 = vpop.f32.mrf.mxu0
        %v2157 = vadd.f32 %v2108, %v2156
        %v2158 = vpop.f32.mrf.mxu0
        %v2159 = vadd.f32 %v2110, %v2158
        %2160 = vdwg.mxu0
        %2161 = vmatpush.bf16.msra.mxu0 %v1885
        %2162 = vmatpush.bf16.msra.mxu0 %v1882
        %2163 = vmatpush.bf16.msra.mxu0 %v1879
        %2164 = vmatpush.bf16.msra.mxu0 %v1876
        %2165 = vmatpush.bf16.msra.mxu0 %v1873
        %2166 = vmatpush.bf16.msra.mxu0 %v1870
        %2167 = vmatpush.bf16.msra.mxu0 %v1867
        %2168 = vmatpush.bf16.msra.mxu0 %v1864
        %2169 = vmatmul.bf16.gmra.mxu0 %v1656
        %v2170 = vpop.f32.mrf.mxu0
        %v2171 = vadd.f32 %v1728, %v2170
        %v2172 = vpop.f32.mrf.mxu0
        %v2173 = vadd.f32 %v1728, %v2172
        %2174 = vmatmul.bf16.gmra.mxu0 %v1658
        %v2175 = vpop.f32.mrf.mxu0
        %v2176 = vadd.f32 %v1728, %v2175
        %v2177 = vpop.f32.mrf.mxu0
        %v2178 = vadd.f32 %v1728, %v2177
        %2179 = vmatmul.bf16.gmra.mxu0 %v1660
        %v2180 = vpop.f32.mrf.mxu0
        %v2181 = vadd.f32 %v1728, %v2180
        %v2182 = vpop.f32.mrf.mxu0
        %v2183 = vadd.f32 %v1728, %v2182
        %2184 = vmatmul.bf16.gmra.mxu0 %v1662
        %v2185 = vpop.f32.mrf.mxu0
        %v2186 = vadd.f32 %v1728, %v2185
        %v2187 = vpop.f32.mrf.mxu0
        %v2188 = vadd.f32 %v1728, %v2187
        %2189 = vmatmul.bf16.gmra.mxu0 %v1664
        %v2190 = vpop.f32.mrf.mxu0
        %v2191 = vadd.f32 %v1728, %v2190
        %v2192 = vpop.f32.mrf.mxu0
        %v2193 = vadd.f32 %v1728, %v2192
        %2194 = vmatmul.bf16.gmra.mxu0 %v1666
        %v2195 = vpop.f32.mrf.mxu0
        %v2196 = vadd.f32 %v1728, %v2195
        %v2197 = vpop.f32.mrf.mxu0
        %v2198 = vadd.f32 %v1728, %v2197
        %2199 = vmatmul.bf16.gmra.mxu0 %v1668
        %v2200 = vpop.f32.mrf.mxu0
        %v2201 = vadd.f32 %v1728, %v2200
        %v2202 = vpop.f32.mrf.mxu0
        %v2203 = vadd.f32 %v1728, %v2202
        %2204 = vmatmul.bf16.gmra.mxu0 %v1670
        %v2205 = vpop.f32.mrf.mxu0
        %v2206 = vadd.f32 %v1728, %v2205
        %v2207 = vpop.f32.mrf.mxu0
        %v2208 = vadd.f32 %v1728, %v2207
        %2209 = vdwg.mxu0
        %2210 = vmatpush.bf16.msra.mxu0 0
        %2211 = vmatpush.bf16.msra.mxu0 0
        %2212 = vmatpush.bf16.msra.mxu0 0
        %2213 = vmatpush.bf16.msra.mxu0 %v1900
        %2214 = vmatpush.bf16.msra.mxu0 %v1897
        %2215 = vmatpush.bf16.msra.mxu0 %v1894
        %2216 = vmatpush.bf16.msra.mxu0 %v1891
        %2217 = vmatpush.bf16.msra.mxu0 %v1888
        %2218 = vmatmul.bf16.gmra.mxu0 %v1942
        %v2219 = vpop.f32.mrf.mxu0
        %v2220 = vadd.f32 %v2171, %v2219
        %v2221 = vpop.f32.mrf.mxu0
        %v2222 = vadd.f32 %v2173, %v2221
        %2223 = vmatmul.bf16.gmra.mxu0 %v1945
        %v2224 = vpop.f32.mrf.mxu0
        %v2225 = vadd.f32 %v2176, %v2224
        %v2226 = vpop.f32.mrf.mxu0
        %v2227 = vadd.f32 %v2178, %v2226
        %2228 = vmatmul.bf16.gmra.mxu0 %v1948
        %v2229 = vpop.f32.mrf.mxu0
        %v2230 = vadd.f32 %v2181, %v2229
        %v2231 = vpop.f32.mrf.mxu0
        %v2232 = vadd.f32 %v2183, %v2231
        %2233 = vmatmul.bf16.gmra.mxu0 %v1951
        %v2234 = vpop.f32.mrf.mxu0
        %v2235 = vadd.f32 %v2186, %v2234
        %v2236 = vpop.f32.mrf.mxu0
        %v2237 = vadd.f32 %v2188, %v2236
        %2238 = vmatmul.bf16.gmra.mxu0 %v1954
        %v2239 = vpop.f32.mrf.mxu0
        %v2240 = vadd.f32 %v2191, %v2239
        %v2241 = vpop.f32.mrf.mxu0
        %v2242 = vadd.f32 %v2193, %v2241
        %2243 = vmatmul.bf16.gmra.mxu0 %v1957
        %v2244 = vpop.f32.mrf.mxu0
        %v2245 = vadd.f32 %v2196, %v2244
        %v2246 = vpop.f32.mrf.mxu0
        %v2247 = vadd.f32 %v2198, %v2246
        %2248 = vmatmul.bf16.gmra.mxu0 %v1960
        %v2249 = vpop.f32.mrf.mxu0
        %v2250 = vadd.f32 %v2201, %v2249
        %v2251 = vpop.f32.mrf.mxu0
        %v2252 = vadd.f32 %v2203, %v2251
        %2253 = vmatmul.bf16.gmra.mxu0 %v1963
        %v2254 = vpop.f32.mrf.mxu0
        %v2255 = vadd.f32 %v2206, %v2254
        %v2256 = vpop.f32.mrf.mxu0
        %v2257 = vadd.f32 %v2208, %v2256
        %2258 = vdwg.mxu0
        %v2259 = vmul.f32 %v2024, 0.5
        %v2260 = vmul.f32 %v2122, 0.5
        %v2261 = vmul.f32 %v2220, 0.5
        %v2262 = vmul.f32 %v2026, 0.5
        %v2263 = vmul.f32 %v2124, 0.5
        %v2264 = vmul.f32 %v2222, 0.5
        %v2265 = vmul.f32 %v2029, 0.5
        %v2266 = vmul.f32 %v2127, 0.5
        %v2267 = vmul.f32 %v2225, 0.5
        %v2268 = vmul.f32 %v2031, 0.5
        %v2269 = vmul.f32 %v2129, 0.5
        %v2270 = vmul.f32 %v2227, 0.5
        %v2271 = vmul.f32 %v2034, 0.5
        %v2272 = vmul.f32 %v2132, 0.5
        %v2273 = vmul.f32 %v2230, 0.5
        %v2274 = vmul.f32 %v2036, 0.5
        %v2275 = vmul.f32 %v2134, 0.5
        %v2276 = vmul.f32 %v2232, 0.5
        %v2277 = vmul.f32 %v2039, 0.5
        %v2278 = vmul.f32 %v2137, 0.5
        %v2279 = vmul.f32 %v2235, 0.5
        %v2280 = vmul.f32 %v2041, 0.5
        %v2281 = vmul.f32 %v2139, 0.5
        %v2282 = vmul.f32 %v2237, 0.5
        %v2283 = vmul.f32 %v2044, 0.5
        %v2284 = vmul.f32 %v2142, 0.5
        %v2285 = vmul.f32 %v2240, 0.5
        %v2286 = vmul.f32 %v2046, 0.5
        %v2287 = vmul.f32 %v2144, 0.5
        %v2288 = vmul.f32 %v2242, 0.5
        %v2289 = vmul.f32 %v2049, 0.5
        %v2290 = vmul.f32 %v2147, 0.5
        %v2291 = vmul.f32 %v2245, 0.5
        %v2292 = vmul.f32 %v2051, 0.5
        %v2293 = vmul.f32 %v2149, 0.5
        %v2294 = vmul.f32 %v2247, 0.5
        %v2295 = vmul.f32 %v2054, 0.5
        %v2296 = vmul.f32 %v2152, 0.5
        %v2297 = vmul.f32 %v2250, 0.5
        %v2298 = vmul.f32 %v2056, 0.5
        %v2299 = vmul.f32 %v2154, 0.5
        %v2300 = vmul.f32 %v2252, 0.5
        %v2301 = vmul.f32 %v2059, 0.5
        %v2302 = vmul.f32 %v2157, 0.5
        %v2303 = vmul.f32 %v2255, 0.5
        %v2304 = vmul.f32 %v2061, 0.5
        %v2305 = vmul.f32 %v2159, 0.5
        %v2306 = vmul.f32 %v2257, 0.5
        %v2307 = vtanh.pop %v2259
        %v2308 = vtanh.pop %v2260
        %v2309 = vtanh.pop %v2261
        %v2310 = vtanh.pop %v2262
        %v2311 = vtanh.pop %v2263
        %v2312 = vtanh.pop %v2264
        %v2313 = vtanh.pop %v2265
        %v2314 = vtanh.pop %v2266
        %v2315 = vtanh.pop %v2267
        %v2316 = vtanh.pop %v2268
        %v2317 = vtanh.pop %v2269
        %v2318 = vtanh.pop %v2270
        %v2319 = vtanh.pop %v2271
        %v2320 = vtanh.pop %v2272
        %v2321 = vtanh.pop %v2273
        %v2322 = vtanh.pop %v2274
        %v2323 = vtanh.pop %v2275
        %v2324 = vtanh.pop %v2276
        %v2325 = vtanh.pop %v2277
        %v2326 = vtanh.pop %v2278
        %v2327 = vtanh.pop %v2279
        %v2328 = vtanh.pop %v2280
        %v2329 = vtanh.pop %v2281
        %v2330 = vtanh.pop %v2282
        %v2331 = vtanh.pop %v2283
        %v2332 = vtanh.pop %v2284
        %v2333 = vtanh.pop %v2285
        %v2334 = vtanh.pop %v2286
        %v2335 = vtanh.pop %v2287
        %v2336 = vtanh.pop %v2288
        %v2337 = vtanh.pop %v2289
        %v2338 = vtanh.pop %v2290
        %v2339 = vtanh.pop %v2291
        %v2340 = vtanh.pop %v2292
        %v2341 = vtanh.pop %v2293
        %v2342 = vtanh.pop %v2294
        %v2343 = vtanh.pop %v2295
        %v2344 = vtanh.pop %v2296
        %v2345 = vtanh.pop %v2297
        %v2346 = vtanh.pop %v2298
        %v2347 = vtanh.pop %v2299
        %v2348 = vtanh.pop %v2300
        %v2349 = vtanh.pop %v2301
        %v2350 = vtanh.pop %v2302
        %v2351 = vtanh.pop %v2303
        %v2352 = vtanh.pop %v2304
        %v2353 = vtanh.pop %v2305
        %v2354 = vtanh.pop %v2306
        %v2355 = vadd.f32 %v2307, 1.0
        %v2356 = vadd.f32 %v2308, 1.0
        %v2357 = vadd.f32 %v2309, 1.0
        %v2358 = vadd.f32 %v2310, 1.0
        %v2359 = vadd.f32 %v2311, 1.0
        %v2360 = vadd.f32 %v2312, 1.0
        %v2361 = vadd.f32 %v2313, 1.0
        %v2362 = vadd.f32 %v2314, 1.0
        %v2363 = vadd.f32 %v2315, 1.0
        %v2364 = vadd.f32 %v2316, 1.0
        %v2365 = vadd.f32 %v2317, 1.0
        %v2366 = vadd.f32 %v2318, 1.0
        %v2367 = vadd.f32 %v2319, 1.0
        %v2368 = vadd.f32 %v2320, 1.0
        %v2369 = vadd.f32 %v2321, 1.0
        %v2370 = vadd.f32 %v2322, 1.0
        %v2371 = vadd.f32 %v2323, 1.0
        %v2372 = vadd.f32 %v2324, 1.0
        %v2373 = vadd.f32 %v2325, 1.0
        %v2374 = vadd.f32 %v2326, 1.0
        %v2375 = vadd.f32 %v2327, 1.0
        %v2376 = vadd.f32 %v2328, 1.0
        %v2377 = vadd.f32 %v2329, 1.0
        %v2378 = vadd.f32 %v2330, 1.0
        %v2379 = vadd.f32 %v2331, 1.0
        %v2380 = vadd.f32 %v2332, 1.0
        %v2381 = vadd.f32 %v2333, 1.0
        %v2382 = vadd.f32 %v2334, 1.0
        %v2383 = vadd.f32 %v2335, 1.0
        %v2384 = vadd.f32 %v2336, 1.0
        %v2385 = vadd.f32 %v2337, 1.0
        %v2386 = vadd.f32 %v2338, 1.0
        %v2387 = vadd.f32 %v2339, 1.0
        %v2388 = vadd.f32 %v2340, 1.0
        %v2389 = vadd.f32 %v2341, 1.0
        %v2390 = vadd.f32 %v2342, 1.0
        %v2391 = vadd.f32 %v2343, 1.0
        %v2392 = vadd.f32 %v2344, 1.0
        %v2393 = vadd.f32 %v2345, 1.0
        %v2394 = vadd.f32 %v2346, 1.0
        %v2395 = vadd.f32 %v2347, 1.0
        %v2396 = vadd.f32 %v2348, 1.0
        %v2397 = vadd.f32 %v2349, 1.0
        %v2398 = vadd.f32 %v2350, 1.0
        %v2399 = vadd.f32 %v2351, 1.0
        %v2400 = vadd.f32 %v2352, 1.0
        %v2401 = vadd.f32 %v2353, 1.0
        %v2402 = vadd.f32 %v2354, 1.0
        %v2403 = vmul.f32 %v2355, 0.5
        %v2404 = vmul.f32 %v2356, 0.5
        %v2405 = vmul.f32 %v2357, 0.5
        %v2406 = vmul.f32 %v2358, 0.5
        %v2407 = vmul.f32 %v2359, 0.5
        %v2408 = vmul.f32 %v2360, 0.5
        %v2409 = vmul.f32 %v2361, 0.5
        %v2410 = vmul.f32 %v2362, 0.5
        %v2411 = vmul.f32 %v2363, 0.5
        %v2412 = vmul.f32 %v2364, 0.5
        %v2413 = vmul.f32 %v2365, 0.5
        %v2414 = vmul.f32 %v2366, 0.5
        %v2415 = vmul.f32 %v2367, 0.5
        %v2416 = vmul.f32 %v2368, 0.5
        %v2417 = vmul.f32 %v2369, 0.5
        %v2418 = vmul.f32 %v2370, 0.5
        %v2419 = vmul.f32 %v2371, 0.5
        %v2420 = vmul.f32 %v2372, 0.5
        %v2421 = vmul.f32 %v2373, 0.5
        %v2422 = vmul.f32 %v2374, 0.5
        %v2423 = vmul.f32 %v2375, 0.5
        %v2424 = vmul.f32 %v2376, 0.5
        %v2425 = vmul.f32 %v2377, 0.5
        %v2426 = vmul.f32 %v2378, 0.5
        %v2427 = vmul.f32 %v2379, 0.5
        %v2428 = vmul.f32 %v2380, 0.5
        %v2429 = vmul.f32 %v2381, 0.5
        %v2430 = vmul.f32 %v2382, 0.5
        %v2431 = vmul.f32 %v2383, 0.5
        %v2432 = vmul.f32 %v2384, 0.5
        %v2433 = vmul.f32 %v2385, 0.5
        %v2434 = vmul.f32 %v2386, 0.5
        %v2435 = vmul.f32 %v2387, 0.5
        %v2436 = vmul.f32 %v2388, 0.5
        %v2437 = vmul.f32 %v2389, 0.5
        %v2438 = vmul.f32 %v2390, 0.5
        %v2439 = vmul.f32 %v2391, 0.5
        %v2440 = vmul.f32 %v2392, 0.5
        %v2441 = vmul.f32 %v2393, 0.5
        %v2442 = vmul.f32 %v2394, 0.5
        %v2443 = vmul.f32 %v2395, 0.5
        %v2444 = vmul.f32 %v2396, 0.5
        %v2445 = vmul.f32 %v2397, 0.5
        %v2446 = vmul.f32 %v2398, 0.5
        %v2447 = vmul.f32 %v2399, 0.5
        %v2448 = vmul.f32 %v2400, 0.5
        %v2449 = vmul.f32 %v2401, 0.5
        %v2450 = vmul.f32 %v2402, 0.5
        %v2451 = vpack.c.bf16 %v2406, %v2403
        %v2452 = vpack.c.bf16 %v2407, %v2404
        %v2453 = vpack.c.bf16 %v2408, %v2405
        %v2454 = vpack.c.bf16 %v2412, %v2409
        %v2455 = vpack.c.bf16 %v2413, %v2410
        %v2456 = vpack.c.bf16 %v2414, %v2411
        %v2457 = vpack.c.bf16 %v2418, %v2415
        %v2458 = vpack.c.bf16 %v2419, %v2416
        %v2459 = vpack.c.bf16 %v2420, %v2417
        %v2460 = vpack.c.bf16 %v2424, %v2421
        %v2461 = vpack.c.bf16 %v2425, %v2422
        %v2462 = vpack.c.bf16 %v2426, %v2423
        %v2463 = vpack.c.bf16 %v2430, %v2427
        %v2464 = vpack.c.bf16 %v2431, %v2428
        %v2465 = vpack.c.bf16 %v2432, %v2429
        %v2466 = vpack.c.bf16 %v2436, %v2433
        %v2467 = vpack.c.bf16 %v2437, %v2434
        %v2468 = vpack.c.bf16 %v2438, %v2435
        %v2469 = vpack.c.bf16 %v2442, %v2439
        %v2470 = vpack.c.bf16 %v2443, %v2440
        %v2471 = vpack.c.bf16 %v2444, %v2441
        %v2472 = vpack.c.bf16 %v2448, %v2445
        %v2473 = vpack.c.bf16 %v2449, %v2446
        %v2474 = vpack.c.bf16 %v2450, %v2447
        %v2475 = vld [vmem:[%s11] sm:$0xff]
        %v2476 = vld [vmem:[%s11 + $0x8] sm:$0xf]
        %v2477 = vld [vmem:[%s11 + $0xc] sm:$0xff]
        %v2478 = vld [vmem:[%s11 + $0x14] sm:$0xf]
        %v2479 = vld [vmem:[%s11 + $0x18] sm:$0xff]
        %v2480 = vld [vmem:[%s11 + $0x20] sm:$0xf]
        %v2481 = vld [vmem:[%s11 + $0x24] sm:$0xff]
        %v2482 = vld [vmem:[%s11 + $0x2c] sm:$0xf]
        %v2483 = vld [vmem:[%s11 + $0x30] sm:$0xff]
        %v2484 = vld [vmem:[%s11 + $0x38] sm:$0xf]
        %v2485 = vld [vmem:[%s11 + $0x3c] sm:$0xff]
        %v2486 = vld [vmem:[%s11 + $0x44] sm:$0xf]
        %v2487 = vld [vmem:[%s11 + $0x48] sm:$0xff]
        %v2488 = vld [vmem:[%s11 + $0x50] sm:$0xf]
        %v2489 = vld [vmem:[%s11 + $0x54] sm:$0xff]
        %v2490 = vld [vmem:[%s11 + $0x5c] sm:$0xf]
        %v2491 = vld [vmem:[%s11 + $0x60] sm:$0xff]
        %v2492 = vld [vmem:[%s11 + $0x68] sm:$0xf]
        %v2493 = vld [vmem:[%s11 + $0x6c] sm:$0xff]
        %v2494 = vld [vmem:[%s11 + $0x74] sm:$0xf]
        %v2495 = vld [vmem:[%s11 + $0x78] sm:$0xff]
        %v2496 = vld [vmem:[%s11 + $0x80] sm:$0xf]
        %v2497 = vld [vmem:[%s11 + $0x84] sm:$0xff]
        %v2498 = vld [vmem:[%s11 + $0x8c] sm:$0xf]
        %v2499 = vld [vmem:[%s11 + $0x90] sm:$0xff]
        %v2500 = vld [vmem:[%s11 + $0x98] sm:$0xf]
        %v2501 = vld [vmem:[%s11 + $0x9c] sm:$0xff]
        %v2502 = vld [vmem:[%s11 + $0xa4] sm:$0xf]
        %v2503 = vld [vmem:[%s11 + $0xa8] sm:$0xff]
        %v2504 = vld [vmem:[%s11 + $0xb0] sm:$0xf]
        %v2505 = vld [vmem:[%s11 + $0xb4] sm:$0xff]
        %v2506 = vld [vmem:[%s11 + $0xbc] sm:$0xf]
        %v2507 = vld [vmem:[%s11 + $0xc0] sm:$0xff]
        %v2508 = vld [vmem:[%s11 + $0xc8] sm:$0xf]
        %v2509 = vld [vmem:[%s11 + $0xcc] sm:$0xff]
        %v2510 = vld [vmem:[%s11 + $0xd4] sm:$0xf]
        %v2511 = vld [vmem:[%s11 + $0xd8] sm:$0xff]
        %v2512 = vld [vmem:[%s11 + $0xe0] sm:$0xf]
        %v2513 = vld [vmem:[%s11 + $0xe4] sm:$0xff]
        %v2514 = vld [vmem:[%s11 + $0xec] sm:$0xf]
        %v2515 = vld [vmem:[%s11 + $0xf0] sm:$0xff]
        %v2516 = vld [vmem:[%s11 + $0xf8] sm:$0xf]
        %v2517 = vld [vmem:[%s11 + $0xfc] sm:$0xff]
        %v2518 = vld [vmem:[%s11 + $0x104] sm:$0xf]
        %v2519 = vld [vmem:[%s11 + $0x108] sm:$0xff]
        %v2520 = vld [vmem:[%s11 + $0x110] sm:$0xf]
        %v2521 = vld [vmem:[%s11 + $0x114] sm:$0xff]
        %v2522 = vld [vmem:[%s11 + $0x11c] sm:$0xf]
        %v2523 = vld [vmem:[%s12] sm:$0xff]
        %v2524 = vld [vmem:[%s12 + $0x8] sm:$0xff]
        %v2525 = vld [vmem:[%s12 + $0x10] sm:$0xff]
        %v2526 = vld [vmem:[%s12 + $0x18] sm:$0xff]
        %v2527 = vld [vmem:[%s12 + $0x20] sm:$0xff]
        %v2528 = vld [vmem:[%s12 + $0x28] sm:$0xff]
        %v2529 = vld [vmem:[%s12 + $0x30] sm:$0xff]
        %v2530 = vld [vmem:[%s12 + $0x38] sm:$0xff]
        %v2531 = vld [vmem:[%s12 + $0x40] sm:$0xff]
        %v2532 = vld [vmem:[%s12 + $0x48] sm:$0xff]
        %v2533 = vld [vmem:[%s12 + $0x50] sm:$0xff]
        %v2534 = vld [vmem:[%s12 + $0x58] sm:$0xff]
        %v2535 = vld [vmem:[%s12 + $0x60] sm:$0xff]
        %v2536 = vld [vmem:[%s12 + $0x68] sm:$0xff]
        %v2537 = vld [vmem:[%s12 + $0x70] sm:$0xff]
        %v2538 = vld [vmem:[%s12 + $0x78] sm:$0xff]
        %v2539 = vld [vmem:[%s12 + $0x80] sm:$0xff]
        %v2540 = vld [vmem:[%s12 + $0x88] sm:$0xff]
        %v2541 = vld [vmem:[%s12 + $0x90] sm:$0xff]
        %v2542 = vld [vmem:[%s12 + $0x98] sm:$0xff]
        %v2543 = vld [vmem:[%s12 + $0xa0] sm:$0xff]
        %v2544 = vld [vmem:[%s12 + $0xa8] sm:$0xff]
        %v2545 = vld [vmem:[%s12 + $0xb0] sm:$0xff]
        %v2546 = vld [vmem:[%s12 + $0xb8] sm:$0xff]
        %2548 = vset.pattern.permute.xlu0 0
        %2549 = vperm.xlu0 %2548, %v2523
        %v2550 = vpop.permute.xlu0 %2549
        %2553 = vset.pattern.permute.xlu0 0
        %2554 = vperm.xlu0 %2553, %v2524
        %v2555 = vpop.permute.xlu0 %2554
        %2558 = vset.pattern.permute.xlu0 0
        %2559 = vperm.xlu0 %2558, %v2525
        %v2560 = vpop.permute.xlu0 %2559
        %2563 = vset.pattern.permute.xlu0 0
        %2564 = vperm.xlu0 %2563, %v2526
        %v2565 = vpop.permute.xlu0 %2564
        %2568 = vset.pattern.permute.xlu0 0
        %2569 = vperm.xlu0 %2568, %v2527
        %v2570 = vpop.permute.xlu0 %2569
        %2573 = vset.pattern.permute.xlu0 0
        %2574 = vperm.xlu0 %2573, %v2528
        %v2575 = vpop.permute.xlu0 %2574
        %2578 = vset.pattern.permute.xlu0 0
        %2579 = vperm.xlu0 %2578, %v2529
        %v2580 = vpop.permute.xlu0 %2579
        %2583 = vset.pattern.permute.xlu0 0
        %2584 = vperm.xlu0 %2583, %v2530
        %v2585 = vpop.permute.xlu0 %2584
        %2588 = vset.pattern.permute.xlu0 0
        %2589 = vperm.xlu0 %2588, %v2531
        %v2590 = vpop.permute.xlu0 %2589
        %2593 = vset.pattern.permute.xlu0 0
        %2594 = vperm.xlu0 %2593, %v2532
        %v2595 = vpop.permute.xlu0 %2594
        %2598 = vset.pattern.permute.xlu0 0
        %2599 = vperm.xlu0 %2598, %v2533
        %v2600 = vpop.permute.xlu0 %2599
        %2603 = vset.pattern.permute.xlu0 0
        %2604 = vperm.xlu0 %2603, %v2534
        %v2605 = vpop.permute.xlu0 %2604
        %2608 = vset.pattern.permute.xlu0 0
        %2609 = vperm.xlu0 %2608, %v2535
        %v2610 = vpop.permute.xlu0 %2609
        %2613 = vset.pattern.permute.xlu0 0
        %2614 = vperm.xlu0 %2613, %v2536
        %v2615 = vpop.permute.xlu0 %2614
        %2618 = vset.pattern.permute.xlu0 0
        %2619 = vperm.xlu0 %2618, %v2537
        %v2620 = vpop.permute.xlu0 %2619
        %2623 = vset.pattern.permute.xlu0 0
        %2624 = vperm.xlu0 %2623, %v2538
        %v2625 = vpop.permute.xlu0 %2624
        %2628 = vset.pattern.permute.xlu0 0
        %2629 = vperm.xlu0 %2628, %v2539
        %v2630 = vpop.permute.xlu0 %2629
        %2633 = vset.pattern.permute.xlu0 0
        %2634 = vperm.xlu0 %2633, %v2540
        %v2635 = vpop.permute.xlu0 %2634
        %2638 = vset.pattern.permute.xlu0 0
        %2639 = vperm.xlu0 %2638, %v2541
        %v2640 = vpop.permute.xlu0 %2639
        %2643 = vset.pattern.permute.xlu0 0
        %2644 = vperm.xlu0 %2643, %v2542
        %v2645 = vpop.permute.xlu0 %2644
        %2648 = vset.pattern.permute.xlu0 0
        %2649 = vperm.xlu0 %2648, %v2543
        %v2650 = vpop.permute.xlu0 %2649
        %2653 = vset.pattern.permute.xlu0 0
        %2654 = vperm.xlu0 %2653, %v2544
        %v2655 = vpop.permute.xlu0 %2654
        %2658 = vset.pattern.permute.xlu0 0
        %2659 = vperm.xlu0 %2658, %v2545
        %v2660 = vpop.permute.xlu0 %2659
        %2663 = vset.pattern.permute.xlu0 0
        %2664 = vperm.xlu0 %2663, %v2546
        %v2665 = vpop.permute.xlu0 %2664
        %v2715 = vunpack.c.l.b16 %v2475
        %v2716 = vunpack.c.h.b16 %v2475
        %v2717 = vunpack.c.l.b16 %v2476
        %v2718 = vunpack.c.l.b16 %v2477
        %v2719 = vunpack.c.h.b16 %v2477
        %v2720 = vunpack.c.l.b16 %v2478
        %v2721 = vunpack.c.l.b16 %v2479
        %v2722 = vunpack.c.h.b16 %v2479
        %v2723 = vunpack.c.l.b16 %v2480
        %v2724 = vunpack.c.l.b16 %v2481
        %v2725 = vunpack.c.h.b16 %v2481
        %v2726 = vunpack.c.l.b16 %v2482
        %v2727 = vunpack.c.l.b16 %v2483
        %v2728 = vunpack.c.h.b16 %v2483
        %v2729 = vunpack.c.l.b16 %v2484
        %v2730 = vunpack.c.l.b16 %v2485
        %v2731 = vunpack.c.h.b16 %v2485
        %v2732 = vunpack.c.l.b16 %v2486
        %v2733 = vunpack.c.l.b16 %v2487
        %v2734 = vunpack.c.h.b16 %v2487
        %v2735 = vunpack.c.l.b16 %v2488
        %v2736 = vunpack.c.l.b16 %v2489
        %v2737 = vunpack.c.h.b16 %v2489
        %v2738 = vunpack.c.l.b16 %v2490
        %v2739 = vunpack.c.l.b16 %v2491
        %v2740 = vunpack.c.h.b16 %v2491
        %v2741 = vunpack.c.l.b16 %v2492
        %v2742 = vunpack.c.l.b16 %v2493
        %v2743 = vunpack.c.h.b16 %v2493
        %v2744 = vunpack.c.l.b16 %v2494
        %v2745 = vunpack.c.l.b16 %v2495
        %v2746 = vunpack.c.h.b16 %v2495
        %v2747 = vunpack.c.l.b16 %v2496
        %v2748 = vunpack.c.l.b16 %v2497
        %v2749 = vunpack.c.h.b16 %v2497
        %v2750 = vunpack.c.l.b16 %v2498
        %v2751 = vunpack.c.l.b16 %v2499
        %v2752 = vunpack.c.h.b16 %v2499
        %v2753 = vunpack.c.l.b16 %v2500
        %v2754 = vunpack.c.l.b16 %v2501
        %v2755 = vunpack.c.h.b16 %v2501
        %v2756 = vunpack.c.l.b16 %v2502
        %v2757 = vunpack.c.l.b16 %v2503
        %v2758 = vunpack.c.h.b16 %v2503
        %v2759 = vunpack.c.l.b16 %v2504
        %v2760 = vunpack.c.l.b16 %v2505
        %v2761 = vunpack.c.h.b16 %v2505
        %v2762 = vunpack.c.l.b16 %v2506
        %v2763 = vunpack.c.l.b16 %v2507
        %v2764 = vunpack.c.h.b16 %v2507
        %v2765 = vunpack.c.l.b16 %v2508
        %v2766 = vunpack.c.l.b16 %v2509
        %v2767 = vunpack.c.h.b16 %v2509
        %v2768 = vunpack.c.l.b16 %v2510
        %v2769 = vunpack.c.l.b16 %v2511
        %v2770 = vunpack.c.h.b16 %v2511
        %v2771 = vunpack.c.l.b16 %v2512
        %v2772 = vunpack.c.l.b16 %v2513
        %v2773 = vunpack.c.h.b16 %v2513
        %v2774 = vunpack.c.l.b16 %v2514
        %v2775 = vunpack.c.l.b16 %v2515
        %v2776 = vunpack.c.h.b16 %v2515
        %v2777 = vunpack.c.l.b16 %v2516
        %v2778 = vunpack.c.l.b16 %v2517
        %v2779 = vunpack.c.h.b16 %v2517
        %v2780 = vunpack.c.l.b16 %v2518
        %v2781 = vunpack.c.l.b16 %v2519
        %v2782 = vunpack.c.h.b16 %v2519
        %v2783 = vunpack.c.l.b16 %v2520
        %v2784 = vunpack.c.l.b16 %v2521
        %v2785 = vunpack.c.h.b16 %v2521
        %v2786 = vunpack.c.l.b16 %v2522
        %v2787 = vpack.c.b16 %v2718, %v2715
        %v2788 = vpack.c.b16 %v2719, %v2716
        %v2789 = vpack.c.b16 %v2720, %v2717
        %v2790 = vpack.c.b16 %v2724, %v2721
        %v2791 = vpack.c.b16 %v2725, %v2722
        %v2792 = vpack.c.b16 %v2726, %v2723
        %v2793 = vpack.c.b16 %v2730, %v2727
        %v2794 = vpack.c.b16 %v2731, %v2728
        %v2795 = vpack.c.b16 %v2732, %v2729
        %v2796 = vpack.c.b16 %v2736, %v2733
        %v2797 = vpack.c.b16 %v2737, %v2734
        %v2798 = vpack.c.b16 %v2738, %v2735
        %v2799 = vpack.c.b16 %v2742, %v2739
        %v2800 = vpack.c.b16 %v2743, %v2740
        %v2801 = vpack.c.b16 %v2744, %v2741
        %v2802 = vpack.c.b16 %v2748, %v2745
        %v2803 = vpack.c.b16 %v2749, %v2746
        %v2804 = vpack.c.b16 %v2750, %v2747
        %v2805 = vpack.c.b16 %v2754, %v2751
        %v2806 = vpack.c.b16 %v2755, %v2752
        %v2807 = vpack.c.b16 %v2756, %v2753
        %v2808 = vpack.c.b16 %v2760, %v2757
        %v2809 = vpack.c.b16 %v2761, %v2758
        %v2810 = vpack.c.b16 %v2762, %v2759
        %v2811 = vpack.c.b16 %v2766, %v2763
        %v2812 = vpack.c.b16 %v2767, %v2764
        %v2813 = vpack.c.b16 %v2768, %v2765
        %v2814 = vpack.c.b16 %v2772, %v2769
        %v2815 = vpack.c.b16 %v2773, %v2770
        %v2816 = vpack.c.b16 %v2774, %v2771
        %v2817 = vpack.c.b16 %v2778, %v2775
        %v2818 = vpack.c.b16 %v2779, %v2776
        %v2819 = vpack.c.b16 %v2780, %v2777
        %v2820 = vpack.c.b16 %v2784, %v2781
        %v2821 = vpack.c.b16 %v2785, %v2782
        %v2822 = vpack.c.b16 %v2786, %v2783
        %2859 = vmatpush.bf16.xpose.msra.mxu0 %v2472
        %2860 = vmatpush.bf16.xpose.msra.mxu0 %v2469
        %2861 = vmatpush.bf16.xpose.msra.mxu0 %v2466
        %2862 = vmatpush.bf16.xpose.msra.mxu0 %v2463
        %2863 = vmatpush.bf16.xpose.msra.mxu0 %v2460
        %2864 = vmatpush.bf16.xpose.msra.mxu0 %v2457
        %2865 = vmatpush.bf16.xpose.msra.mxu0 %v2454
        %2866 = vmatpush.bf16.xpose.msra.mxu0 %v2451
        %2867 = vmatmul.bf16.gmra.mxu0 %v2787
        %v2868 = vpop.f32.mrf.mxu0
        %v2869 = vadd.f32 %v2550, %v2868
        %v2870 = vpop.f32.mrf.mxu0
        %v2871 = vadd.f32 %v2555, %v2870
        %2872 = vmatmul.bf16.gmra.mxu0 %v2790
        %v2873 = vpop.f32.mrf.mxu0
        %v2874 = vadd.f32 %v2560, %v2873
        %v2875 = vpop.f32.mrf.mxu0
        %v2876 = vadd.f32 %v2565, %v2875
        %2877 = vmatmul.bf16.gmra.mxu0 %v2793
        %v2878 = vpop.f32.mrf.mxu0
        %v2879 = vadd.f32 %v2570, %v2878
        %v2880 = vpop.f32.mrf.mxu0
        %v2881 = vadd.f32 %v2575, %v2880
        %2882 = vmatmul.bf16.gmra.mxu0 %v2796
        %v2883 = vpop.f32.mrf.mxu0
        %v2884 = vadd.f32 %v2580, %v2883
        %v2885 = vpop.f32.mrf.mxu0
        %v2886 = vadd.f32 %v2585, %v2885
        %2887 = vmatmul.bf16.gmra.mxu0 %v2799
        %v2888 = vpop.f32.mrf.mxu0
        %v2889 = vadd.f32 %v2590, %v2888
        %v2890 = vpop.f32.mrf.mxu0
        %v2891 = vadd.f32 %v2595, %v2890
        %2892 = vmatmul.bf16.gmra.mxu0 %v2802
        %v2893 = vpop.f32.mrf.mxu0
        %v2894 = vadd.f32 %v2600, %v2893
        %v2895 = vpop.f32.mrf.mxu0
        %v2896 = vadd.f32 %v2605, %v2895
        %2897 = vmatmul.bf16.gmra.mxu0 %v2805
        %v2898 = vpop.f32.mrf.mxu0
        %v2899 = vadd.f32 %v2610, %v2898
        %v2900 = vpop.f32.mrf.mxu0
        %v2901 = vadd.f32 %v2615, %v2900
        %2902 = vmatmul.bf16.gmra.mxu0 %v2808
        %v2903 = vpop.f32.mrf.mxu0
        %v2904 = vadd.f32 %v2620, %v2903
        %v2905 = vpop.f32.mrf.mxu0
        %v2906 = vadd.f32 %v2625, %v2905
        %2907 = vmatmul.bf16.gmra.mxu0 %v2811
        %v2908 = vpop.f32.mrf.mxu0
        %v2909 = vadd.f32 %v2630, %v2908
        %v2910 = vpop.f32.mrf.mxu0
        %v2911 = vadd.f32 %v2635, %v2910
        %2912 = vmatmul.bf16.gmra.mxu0 %v2814
        %v2913 = vpop.f32.mrf.mxu0
        %v2914 = vadd.f32 %v2640, %v2913
        %v2915 = vpop.f32.mrf.mxu0
        %v2916 = vadd.f32 %v2645, %v2915
        %2917 = vmatmul.bf16.gmra.mxu0 %v2817
        %v2918 = vpop.f32.mrf.mxu0
        %v2919 = vadd.f32 %v2650, %v2918
        %v2920 = vpop.f32.mrf.mxu0
        %v2921 = vadd.f32 %v2655, %v2920
        %2922 = vmatmul.bf16.gmra.mxu0 %v2820
        %v2923 = vpop.f32.mrf.mxu0
        %v2924 = vadd.f32 %v2660, %v2923
        %v2925 = vpop.f32.mrf.mxu0
        %v2926 = vadd.f32 %v2665, %v2925
        %2927 = vdwg.mxu0
        %2928 = vmatpush.bf16.xpose.msra.mxu0 %v2473
        %2929 = vmatpush.bf16.xpose.msra.mxu0 %v2470
        %2930 = vmatpush.bf16.xpose.msra.mxu0 %v2467
        %2931 = vmatpush.bf16.xpose.msra.mxu0 %v2464
        %2932 = vmatpush.bf16.xpose.msra.mxu0 %v2461
        %2933 = vmatpush.bf16.xpose.msra.mxu0 %v2458
        %2934 = vmatpush.bf16.xpose.msra.mxu0 %v2455
        %2935 = vmatpush.bf16.xpose.msra.mxu0 %v2452
        %2936 = vmatmul.bf16.gmra.mxu0 %v2788
        %v2937 = vpop.f32.mrf.mxu0
        %v2938 = vadd.f32 %v2869, %v2937
        %v2939 = vpop.f32.mrf.mxu0
        %v2940 = vadd.f32 %v2871, %v2939
        %2941 = vmatmul.bf16.gmra.mxu0 %v2791
        %v2942 = vpop.f32.mrf.mxu0
        %v2943 = vadd.f32 %v2874, %v2942
        %v2944 = vpop.f32.mrf.mxu0
        %v2945 = vadd.f32 %v2876, %v2944
        %2946 = vmatmul.bf16.gmra.mxu0 %v2794
        %v2947 = vpop.f32.mrf.mxu0
        %v2948 = vadd.f32 %v2879, %v2947
        %v2949 = vpop.f32.mrf.mxu0
        %v2950 = vadd.f32 %v2881, %v2949
        %2951 = vmatmul.bf16.gmra.mxu0 %v2797
        %v2952 = vpop.f32.mrf.mxu0
        %v2953 = vadd.f32 %v2884, %v2952
        %v2954 = vpop.f32.mrf.mxu0
        %v2955 = vadd.f32 %v2886, %v2954
        %2956 = vmatmul.bf16.gmra.mxu0 %v2800
        %v2957 = vpop.f32.mrf.mxu0
        %v2958 = vadd.f32 %v2889, %v2957
        %v2959 = vpop.f32.mrf.mxu0
        %v2960 = vadd.f32 %v2891, %v2959
        %2961 = vmatmul.bf16.gmra.mxu0 %v2803
        %v2962 = vpop.f32.mrf.mxu0
        %v2963 = vadd.f32 %v2894, %v2962
        %v2964 = vpop.f32.mrf.mxu0
        %v2965 = vadd.f32 %v2896, %v2964
        %2966 = vmatmul.bf16.gmra.mxu0 %v2806
        %v2967 = vpop.f32.mrf.mxu0
        %v2968 = vadd.f32 %v2899, %v2967
        %v2969 = vpop.f32.mrf.mxu0
        %v2970 = vadd.f32 %v2901, %v2969
        %2971 = vmatmul.bf16.gmra.mxu0 %v2809
        %v2972 = vpop.f32.mrf.mxu0
        %v2973 = vadd.f32 %v2904, %v2972
        %v2974 = vpop.f32.mrf.mxu0
        %v2975 = vadd.f32 %v2906, %v2974
        %2976 = vmatmul.bf16.gmra.mxu0 %v2812
        %v2977 = vpop.f32.mrf.mxu0
        %v2978 = vadd.f32 %v2909, %v2977
        %v2979 = vpop.f32.mrf.mxu0
        %v2980 = vadd.f32 %v2911, %v2979
        %2981 = vmatmul.bf16.gmra.mxu0 %v2815
        %v2982 = vpop.f32.mrf.mxu0
        %v2983 = vadd.f32 %v2914, %v2982
        %v2984 = vpop.f32.mrf.mxu0
        %v2985 = vadd.f32 %v2916, %v2984
        %2986 = vmatmul.bf16.gmra.mxu0 %v2818
        %v2987 = vpop.f32.mrf.mxu0
        %v2988 = vadd.f32 %v2919, %v2987
        %v2989 = vpop.f32.mrf.mxu0
        %v2990 = vadd.f32 %v2921, %v2989
        %2991 = vmatmul.bf16.gmra.mxu0 %v2821
        %v2992 = vpop.f32.mrf.mxu0
        %v2993 = vadd.f32 %v2924, %v2992
        %v2994 = vpop.f32.mrf.mxu0
        %v2995 = vadd.f32 %v2926, %v2994
        %2996 = vdwg.mxu0
        %2997 = vmatpush.bf16.xpose.msra.mxu0 %v2474
        %2998 = vmatpush.bf16.xpose.msra.mxu0 %v2471
        %2999 = vmatpush.bf16.xpose.msra.mxu0 %v2468
        %3000 = vmatpush.bf16.xpose.msra.mxu0 %v2465
        %3001 = vmatpush.bf16.xpose.msra.mxu0 %v2462
        %3002 = vmatpush.bf16.xpose.msra.mxu0 %v2459
        %3003 = vmatpush.bf16.xpose.msra.mxu0 %v2456
        %3004 = vmatpush.bf16.xpose.msra.mxu0 %v2453
        %3005 = vmatmul.bf16.gmra.mxu0 %v2789
        %v3006 = vpop.f32.mrf.mxu0
        %v3007 = vadd.f32 %v2938, %v3006
        %v3008 = vpop.f32.mrf.mxu0
        %v3009 = vadd.f32 %v2940, %v3008
        %3010 = vmatmul.bf16.gmra.mxu0 %v2792
        %v3011 = vpop.f32.mrf.mxu0
        %v3012 = vadd.f32 %v2943, %v3011
        %v3013 = vpop.f32.mrf.mxu0
        %v3014 = vadd.f32 %v2945, %v3013
        %3015 = vmatmul.bf16.gmra.mxu0 %v2795
        %v3016 = vpop.f32.mrf.mxu0
        %v3017 = vadd.f32 %v2948, %v3016
        %v3018 = vpop.f32.mrf.mxu0
        %v3019 = vadd.f32 %v2950, %v3018
        %3020 = vmatmul.bf16.gmra.mxu0 %v2798
        %v3021 = vpop.f32.mrf.mxu0
        %v3022 = vadd.f32 %v2953, %v3021
        %v3023 = vpop.f32.mrf.mxu0
        %v3024 = vadd.f32 %v2955, %v3023
        %3025 = vmatmul.bf16.gmra.mxu0 %v2801
        %v3026 = vpop.f32.mrf.mxu0
        %v3027 = vadd.f32 %v2958, %v3026
        %v3028 = vpop.f32.mrf.mxu0
        %v3029 = vadd.f32 %v2960, %v3028
        %3030 = vmatmul.bf16.gmra.mxu0 %v2804
        %v3031 = vpop.f32.mrf.mxu0
        %v3032 = vadd.f32 %v2963, %v3031
        %v3033 = vpop.f32.mrf.mxu0
        %v3034 = vadd.f32 %v2965, %v3033
        %3035 = vmatmul.bf16.gmra.mxu0 %v2807
        %v3036 = vpop.f32.mrf.mxu0
        %v3037 = vadd.f32 %v2968, %v3036
        %v3038 = vpop.f32.mrf.mxu0
        %v3039 = vadd.f32 %v2970, %v3038
        %3040 = vmatmul.bf16.gmra.mxu0 %v2810
        %v3041 = vpop.f32.mrf.mxu0
        %v3042 = vadd.f32 %v2973, %v3041
        %v3043 = vpop.f32.mrf.mxu0
        %v3044 = vadd.f32 %v2975, %v3043
        %3045 = vmatmul.bf16.gmra.mxu0 %v2813
        %v3046 = vpop.f32.mrf.mxu0
        %v3047 = vadd.f32 %v2978, %v3046
        %v3048 = vpop.f32.mrf.mxu0
        %v3049 = vadd.f32 %v2980, %v3048
        %3050 = vmatmul.bf16.gmra.mxu0 %v2816
        %v3051 = vpop.f32.mrf.mxu0
        %v3052 = vadd.f32 %v2983, %v3051
        %v3053 = vpop.f32.mrf.mxu0
        %v3054 = vadd.f32 %v2985, %v3053
        %3055 = vmatmul.bf16.gmra.mxu0 %v2819
        %v3056 = vpop.f32.mrf.mxu0
        %v3057 = vadd.f32 %v2988, %v3056
        %v3058 = vpop.f32.mrf.mxu0
        %v3059 = vadd.f32 %v2990, %v3058
        %3060 = vmatmul.bf16.gmra.mxu0 %v2822
        %v3061 = vpop.f32.mrf.mxu0
        %v3062 = vadd.f32 %v2993, %v3061
        %v3063 = vpop.f32.mrf.mxu0
        %v3064 = vadd.f32 %v2995, %v3063
        %3065 = vdwg.mxu0
        %v3066 = vmul.f32 %v3007, 0.5
        %v3067 = vmul.f32 %v3009, 0.5
        %v3068 = vmul.f32 %v3012, 0.5
        %v3069 = vmul.f32 %v3014, 0.5
        %v3070 = vmul.f32 %v3017, 0.5
        %v3071 = vmul.f32 %v3019, 0.5
        %v3072 = vmul.f32 %v3022, 0.5
        %v3073 = vmul.f32 %v3024, 0.5
        %v3074 = vmul.f32 %v3027, 0.5
        %v3075 = vmul.f32 %v3029, 0.5
        %v3076 = vmul.f32 %v3032, 0.5
        %v3077 = vmul.f32 %v3034, 0.5
        %v3078 = vmul.f32 %v3037, 0.5
        %v3079 = vmul.f32 %v3039, 0.5
        %v3080 = vmul.f32 %v3042, 0.5
        %v3081 = vmul.f32 %v3044, 0.5
        %v3082 = vmul.f32 %v3047, 0.5
        %v3083 = vmul.f32 %v3049, 0.5
        %v3084 = vmul.f32 %v3052, 0.5
        %v3085 = vmul.f32 %v3054, 0.5
        %v3086 = vmul.f32 %v3057, 0.5
        %v3087 = vmul.f32 %v3059, 0.5
        %v3088 = vmul.f32 %v3062, 0.5
        %v3089 = vmul.f32 %v3064, 0.5
        %v3090 = vtanh.pop %v3066
        %v3091 = vtanh.pop %v3067
        %v3092 = vtanh.pop %v3068
        %v3093 = vtanh.pop %v3069
        %v3094 = vtanh.pop %v3070
        %v3095 = vtanh.pop %v3071
        %v3096 = vtanh.pop %v3072
        %v3097 = vtanh.pop %v3073
        %v3098 = vtanh.pop %v3074
        %v3099 = vtanh.pop %v3075
        %v3100 = vtanh.pop %v3076
        %v3101 = vtanh.pop %v3077
        %v3102 = vtanh.pop %v3078
        %v3103 = vtanh.pop %v3079
        %v3104 = vtanh.pop %v3080
        %v3105 = vtanh.pop %v3081
        %v3106 = vtanh.pop %v3082
        %v3107 = vtanh.pop %v3083
        %v3108 = vtanh.pop %v3084
        %v3109 = vtanh.pop %v3085
        %v3110 = vtanh.pop %v3086
        %v3111 = vtanh.pop %v3087
        %v3112 = vtanh.pop %v3088
        %v3113 = vtanh.pop %v3089
        %v3114 = vadd.f32 %v3090, 1.0
        %v3115 = vadd.f32 %v3091, 1.0
        %v3116 = vadd.f32 %v3092, 1.0
        %v3117 = vadd.f32 %v3093, 1.0
        %v3118 = vadd.f32 %v3094, 1.0
        %v3119 = vadd.f32 %v3095, 1.0
        %v3120 = vadd.f32 %v3096, 1.0
        %v3121 = vadd.f32 %v3097, 1.0
        %v3122 = vadd.f32 %v3098, 1.0
        %v3123 = vadd.f32 %v3099, 1.0
        %v3124 = vadd.f32 %v3100, 1.0
        %v3125 = vadd.f32 %v3101, 1.0
        %v3126 = vadd.f32 %v3102, 1.0
        %v3127 = vadd.f32 %v3103, 1.0
        %v3128 = vadd.f32 %v3104, 1.0
        %v3129 = vadd.f32 %v3105, 1.0
        %v3130 = vadd.f32 %v3106, 1.0
        %v3131 = vadd.f32 %v3107, 1.0
        %v3132 = vadd.f32 %v3108, 1.0
        %v3133 = vadd.f32 %v3109, 1.0
        %v3134 = vadd.f32 %v3110, 1.0
        %v3135 = vadd.f32 %v3111, 1.0
        %v3136 = vadd.f32 %v3112, 1.0
        %v3137 = vadd.f32 %v3113, 1.0
        %v3138 = vmul.f32 %v3114, 0.5
        %v3139 = vmul.f32 %v3115, 0.5
        %v3140 = vmul.f32 %v3116, 0.5
        %v3141 = vmul.f32 %v3117, 0.5
        %v3142 = vmul.f32 %v3118, 0.5
        %v3143 = vmul.f32 %v3119, 0.5
        %v3144 = vmul.f32 %v3120, 0.5
        %v3145 = vmul.f32 %v3121, 0.5
        %v3146 = vmul.f32 %v3122, 0.5
        %v3147 = vmul.f32 %v3123, 0.5
        %v3148 = vmul.f32 %v3124, 0.5
        %v3149 = vmul.f32 %v3125, 0.5
        %v3150 = vmul.f32 %v3126, 0.5
        %v3151 = vmul.f32 %v3127, 0.5
        %v3152 = vmul.f32 %v3128, 0.5
        %v3153 = vmul.f32 %v3129, 0.5
        %v3154 = vmul.f32 %v3130, 0.5
        %v3155 = vmul.f32 %v3131, 0.5
        %v3156 = vmul.f32 %v3132, 0.5
        %v3157 = vmul.f32 %v3133, 0.5
        %v3158 = vmul.f32 %v3134, 0.5
        %v3159 = vmul.f32 %v3135, 0.5
        %v3160 = vmul.f32 %v3136, 0.5
        %v3161 = vmul.f32 %v3137, 0.5
        %3162 = vst [vmem:[%s442] sm:$0xff] %v3138
        %3163 = vst [vmem:[%s442 + $0x8] sm:$0xff] %v3139
        %3164 = vst [vmem:[%s442 + $0x10] sm:$0xff] %v3140
        %3165 = vst [vmem:[%s442 + $0x18] sm:$0xff] %v3141
        %3166 = vst [vmem:[%s442 + $0x20] sm:$0xff] %v3142
        %3167 = vst [vmem:[%s442 + $0x28] sm:$0xff] %v3143
        %3168 = vst [vmem:[%s442 + $0x30] sm:$0xff] %v3144
        %3169 = vst [vmem:[%s442 + $0x38] sm:$0xff] %v3145
        %3170 = vst [vmem:[%s442 + $0x40] sm:$0xff] %v3146
        %3171 = vst [vmem:[%s442 + $0x48] sm:$0xff] %v3147
        %3172 = vst [vmem:[%s442 + $0x50] sm:$0xff] %v3148
        %3173 = vst [vmem:[%s442 + $0x58] sm:$0xff] %v3149
        %3174 = vst [vmem:[%s442 + $0x60] sm:$0xff] %v3150
        %3175 = vst [vmem:[%s442 + $0x68] sm:$0xff] %v3151
        %3176 = vst [vmem:[%s442 + $0x70] sm:$0xff] %v3152
        %3177 = vst [vmem:[%s442 + $0x78] sm:$0xff] %v3153
        %3178 = vst [vmem:[%s442 + $0x80] sm:$0xff] %v3154
        %3179 = vst [vmem:[%s442 + $0x88] sm:$0xff] %v3155
        %3180 = vst [vmem:[%s442 + $0x90] sm:$0xff] %v3156
        %3181 = vst [vmem:[%s442 + $0x98] sm:$0xff] %v3157
        %3182 = vst [vmem:[%s442 + $0xa0] sm:$0xff] %v3158
        %3183 = vst [vmem:[%s442 + $0xa8] sm:$0xff] %v3159
        %3184 = vst [vmem:[%s442 + $0xb0] sm:$0xff] %v3160
        %3185 = vst [vmem:[%s442 + $0xb8] sm:$0xff] %v3161
        %s3186 = sand.u32 %s310, 1
        %s3187 = sand.u32 %s310, 1
        %s3188 = smul.addr %s3187, 192
        %s3189 = scalar_lea.vmem [#allocation2], %s3188
        // Predicated region
        $region73: #{model_forward.1} parent=71 // pred_check
          %p3190 = pneg %p320
        $region74: #{model_forward.1} parent=71 // pred_check_branch
          %3192 = sbr.rel (%p3190) target = $region76
        $region75: #{model_forward.1} parent=71 // pred_region
          %s3193 = smul.addr %s24, 8
          %s3194 = scalar_lea.vmem %s13, %s3193
          // Predicated region
          $region77: #{model_forward.1} parent=75 // pred_check
            _
          $region78: #{model_forward.1} parent=75 // pred_check_branch
            %3196 = sbr.rel (0) target = $region80
          $region79: #{model_forward.1} parent=75 // pred_region
            // Predicated region
            $region81: #{model_forward.1} parent=79 // pred_check
              _
            $region82: #{model_forward.1} parent=79 // pred_check_branch
              %3198 = sbr.rel (0) target = $region84
            $region83: #{model_forward.1} parent=79 // pred_region
              // Predicated region
              $region96: #{model_forward.1} parent=83 // pred_check
                _
              $region97: #{model_forward.1} parent=83 // pred_check_branch
                %3260 = sbr.rel (0) target = $region99
              $region98: #{model_forward.1} parent=83 // pred_region
                loop: start=0, step=1, limit=1
                $region100: #{model_forward.1} parent=98 // loop_pre_header
                  _
                $region101: #{model_forward.1} parent=98 // loop_header
                  %s3262 = sphi 0, %s3266
                  %p3263 = scmp.ge.s32.totalorder %s3262, 1
                  %s3267 = sphi %s3189, %s3189
                  %s3268 = sphi %s3194, %s3194
                $region102: #{model_forward.1} parent=98 // loop_header_branch
                  %3265 = sbr.rel (%p3263) target = $region106
                $region103: #{model_forward.1} parent=98 // loop_body
                  %v3269 = vld [vmem:[%s3267] sm:$0xff]
                  %3270 = vst [vmem:[%s3268] sm:$0xff] %v3269
                  %v3271 = vld [vmem:[%s3267 + $0x8] sm:$0xff]
                  %3272 = vst [vmem:[%s3268 + $0x18] sm:$0xff] %v3271
                  %v3273 = vld [vmem:[%s3267 + $0x10] sm:$0xff]
                  %3274 = vst [vmem:[%s3268 + $0x30] sm:$0xff] %v3273
                  %v3275 = vld [vmem:[%s3267 + $0x18] sm:$0xff]
                  %3276 = vst [vmem:[%s3268 + $0x48] sm:$0xff] %v3275
                  %v3277 = vld [vmem:[%s3267 + $0x20] sm:$0xff]
                  %3278 = vst [vmem:[%s3268 + $0x60] sm:$0xff] %v3277
                  %v3279 = vld [vmem:[%s3267 + $0x28] sm:$0xff]
                  %3280 = vst [vmem:[%s3268 + $0x78] sm:$0xff] %v3279
                  %v3281 = vld [vmem:[%s3267 + $0x30] sm:$0xff]
                  %3282 = vst [vmem:[%s3268 + $0x90] sm:$0xff] %v3281
                  %v3283 = vld [vmem:[%s3267 + $0x38] sm:$0xff]
                  %3284 = vst [vmem:[%s3268 + $0xa8] sm:$0xff] %v3283
                  %v3285 = vld [vmem:[%s3267 + $0x40] sm:$0xff]
                  %3286 = vst [vmem:[%s3268 + $0xc0] sm:$0xff] %v3285
                  %v3287 = vld [vmem:[%s3267 + $0x48] sm:$0xff]
                  %3288 = vst [vmem:[%s3268 + $0xd8] sm:$0xff] %v3287
                  %v3289 = vld [vmem:[%s3267 + $0x50] sm:$0xff]
                  %3290 = vst [vmem:[%s3268 + $0xf0] sm:$0xff] %v3289
                  %v3291 = vld [vmem:[%s3267 + $0x58] sm:$0xff]
                  %3292 = vst [vmem:[%s3268 + $0x108] sm:$0xff] %v3291
                  %v3293 = vld [vmem:[%s3267 + $0x60] sm:$0xff]
                  %3294 = vst [vmem:[%s3268 + $0x120] sm:$0xff] %v3293
                  %v3295 = vld [vmem:[%s3267 + $0x68] sm:$0xff]
                  %3296 = vst [vmem:[%s3268 + $0x138] sm:$0xff] %v3295
                  %v3297 = vld [vmem:[%s3267 + $0x70] sm:$0xff]
                  %3298 = vst [vmem:[%s3268 + $0x150] sm:$0xff] %v3297
                  %v3299 = vld [vmem:[%s3267 + $0x78] sm:$0xff]
                  %3300 = vst [vmem:[%s3268 + $0x168] sm:$0xff] %v3299
                  %v3301 = vld [vmem:[%s3267 + $0x80] sm:$0xff]
                  %3302 = vst [vmem:[%s3268 + $0x180] sm:$0xff] %v3301
                  %v3303 = vld [vmem:[%s3267 + $0x88] sm:$0xff]
                  %3304 = vst [vmem:[%s3268 + $0x198] sm:$0xff] %v3303
                  %v3305 = vld [vmem:[%s3267 + $0x90] sm:$0xff]
                  %3306 = vst [vmem:[%s3268 + $0x1b0] sm:$0xff] %v3305
                  %v3307 = vld [vmem:[%s3267 + $0x98] sm:$0xff]
                  %3308 = vst [vmem:[%s3268 + $0x1c8] sm:$0xff] %v3307
                  %v3309 = vld [vmem:[%s3267 + $0xa0] sm:$0xff]
                  %3310 = vst [vmem:[%s3268 + $0x1e0] sm:$0xff] %v3309
                  %v3311 = vld [vmem:[%s3267 + $0xa8] sm:$0xff]
                  %3312 = vst [vmem:[%s3268 + $0x1f8] sm:$0xff] %v3311
                  %v3313 = vld [vmem:[%s3267 + $0xb0] sm:$0xff]
                  %3314 = vst [vmem:[%s3268 + $0x210] sm:$0xff] %v3313
                  %v3315 = vld [vmem:[%s3267 + $0xb8] sm:$0xff]
                  %3316 = vst [vmem:[%s3268 + $0x228] sm:$0xff] %v3315
                $region104: #{model_forward.1} parent=98 // loop_footer
                  %s3266 = sadd.s32 1, %s3262
                $region105: #{model_forward.1} parent=98 // loop_footer_branch
                  %3261 = sbr.rel target = $region101
                $region106: #{model_forward.1} parent=98 // loop_exit
                  _
              $region99: #{model_forward.1} parent=83 // pred_fallthru
                _
              // Predicated region
              $region107: #{model_forward.1} parent=83 // pred_check
                _
              $region108: #{model_forward.1} parent=83 // pred_check_branch
                %3318 = sbr.rel target = $region110
              $region109: #{model_forward.1} parent=83 // pred_region
                _
              $region110: #{model_forward.1} parent=83 // pred_fallthru
                _
            $region84: #{model_forward.1} parent=79 // pred_fallthru
              _
            // Predicated region
            $region85: #{model_forward.1} parent=79 // pred_check
              _
            $region86: #{model_forward.1} parent=79 // pred_check_branch
              %3200 = sbr.rel target = $region88
            $region87: #{model_forward.1} parent=79 // pred_region
              %s3202 = ssub.s32 256, 1
              loop: start=0, step=1, limit=1
              $region89: #{model_forward.1} parent=87 // loop_pre_header
                _
              $region90: #{model_forward.1} parent=87 // loop_header
                %s3204 = sphi 0, %s3208
                %p3205 = scmp.ge.s32.totalorder %s3204, 1
                %s3209 = sphi %s3189, %s3189
                %s3210 = sphi %s3194, %s3194
              $region91: #{model_forward.1} parent=87 // loop_header_branch
                %3207 = sbr.rel (%p3205) target = $region95
              $region92: #{model_forward.1} parent=87 // loop_body
                %v3211 = vld [vmem:[%s3209] sm:%s3202]
                %3212 = vst [vmem:[%s3210] sm:%s3202] %v3211
                %v3213 = vld [vmem:[%s3209 + $0x8] sm:%s3202]
                %3214 = vst [vmem:[%s3210 + $0x18] sm:%s3202] %v3213
                %v3215 = vld [vmem:[%s3209 + $0x10] sm:%s3202]
                %3216 = vst [vmem:[%s3210 + $0x30] sm:%s3202] %v3215
                %v3217 = vld [vmem:[%s3209 + $0x18] sm:%s3202]
                %3218 = vst [vmem:[%s3210 + $0x48] sm:%s3202] %v3217
                %v3219 = vld [vmem:[%s3209 + $0x20] sm:%s3202]
                %3220 = vst [vmem:[%s3210 + $0x60] sm:%s3202] %v3219
                %v3221 = vld [vmem:[%s3209 + $0x28] sm:%s3202]
                %3222 = vst [vmem:[%s3210 + $0x78] sm:%s3202] %v3221
                %v3223 = vld [vmem:[%s3209 + $0x30] sm:%s3202]
                %3224 = vst [vmem:[%s3210 + $0x90] sm:%s3202] %v3223
                %v3225 = vld [vmem:[%s3209 + $0x38] sm:%s3202]
                %3226 = vst [vmem:[%s3210 + $0xa8] sm:%s3202] %v3225
                %v3227 = vld [vmem:[%s3209 + $0x40] sm:%s3202]
                %3228 = vst [vmem:[%s3210 + $0xc0] sm:%s3202] %v3227
                %v3229 = vld [vmem:[%s3209 + $0x48] sm:%s3202]
                %3230 = vst [vmem:[%s3210 + $0xd8] sm:%s3202] %v3229
                %v3231 = vld [vmem:[%s3209 + $0x50] sm:%s3202]
                %3232 = vst [vmem:[%s3210 + $0xf0] sm:%s3202] %v3231
                %v3233 = vld [vmem:[%s3209 + $0x58] sm:%s3202]
                %3234 = vst [vmem:[%s3210 + $0x108] sm:%s3202] %v3233
                %v3235 = vld [vmem:[%s3209 + $0x60] sm:%s3202]
                %3236 = vst [vmem:[%s3210 + $0x120] sm:%s3202] %v3235
                %v3237 = vld [vmem:[%s3209 + $0x68] sm:%s3202]
                %3238 = vst [vmem:[%s3210 + $0x138] sm:%s3202] %v3237
                %v3239 = vld [vmem:[%s3209 + $0x70] sm:%s3202]
                %3240 = vst [vmem:[%s3210 + $0x150] sm:%s3202] %v3239
                %v3241 = vld [vmem:[%s3209 + $0x78] sm:%s3202]
                %3242 = vst [vmem:[%s3210 + $0x168] sm:%s3202] %v3241
                %v3243 = vld [vmem:[%s3209 + $0x80] sm:%s3202]
                %3244 = vst [vmem:[%s3210 + $0x180] sm:%s3202] %v3243
                %v3245 = vld [vmem:[%s3209 + $0x88] sm:%s3202]
                %3246 = vst [vmem:[%s3210 + $0x198] sm:%s3202] %v3245
                %v3247 = vld [vmem:[%s3209 + $0x90] sm:%s3202]
                %3248 = vst [vmem:[%s3210 + $0x1b0] sm:%s3202] %v3247
                %v3249 = vld [vmem:[%s3209 + $0x98] sm:%s3202]
                %3250 = vst [vmem:[%s3210 + $0x1c8] sm:%s3202] %v3249
                %v3251 = vld [vmem:[%s3209 + $0xa0] sm:%s3202]
                %3252 = vst [vmem:[%s3210 + $0x1e0] sm:%s3202] %v3251
                %v3253 = vld [vmem:[%s3209 + $0xa8] sm:%s3202]
                %3254 = vst [vmem:[%s3210 + $0x1f8] sm:%s3202] %v3253
                %v3255 = vld [vmem:[%s3209 + $0xb0] sm:%s3202]
                %3256 = vst [vmem:[%s3210 + $0x210] sm:%s3202] %v3255
                %v3257 = vld [vmem:[%s3209 + $0xb8] sm:%s3202]
                %3258 = vst [vmem:[%s3210 + $0x228] sm:%s3202] %v3257
              $region93: #{model_forward.1} parent=87 // loop_footer
                %s3208 = sadd.s32 1, %s3204
              $region94: #{model_forward.1} parent=87 // loop_footer_branch
                %3203 = sbr.rel target = $region90
              $region95: #{model_forward.1} parent=87 // loop_exit
                _
            $region88: #{model_forward.1} parent=79 // pred_fallthru
              _
          $region80: #{model_forward.1} parent=75 // pred_fallthru
            _
          %3319 = vnop
        $region76: #{model_forward.1} parent=71 // pred_fallthru
          _
      $region72: #{model_forward.1} parent=5 // pred_fallthru
        _
      %p3320 = scmp.le.s32.totalorder 2, %s19
      // Predicated region
      $region111: #{model_forward.1} parent=5 // pred_check
        %p3321 = pneg %p3320
      $region112: #{model_forward.1} parent=5 // pred_check_branch
        %3323 = sbr.rel (%p3321) target = $region114
      $region113: #{model_forward.1} parent=5 // pred_region
        %s3324 = ssub.s32 %s19, 2
        // Predicated region
        $region115: #{model_forward.1} parent=113 // pred_check
          %p3325 = pneg %p326
        $region116: #{model_forward.1} parent=113 // pred_check_branch
          %3327 = sbr.rel (%p3325) target = $region118
        $region117: #{model_forward.1} parent=113 // pred_region
          %s3328 = sand.u32 %s311, 1
          %s3329 = sand.u32 %s311, 1
          %s3330 = smul.addr %s3329, 192
          %s3331 = scalar_lea.vmem [#allocation2], %s3330
        $region118: #{model_forward.1} parent=113 // pred_fallthru
          _
      $region114: #{model_forward.1} parent=5 // pred_fallthru
        _
    $region6: #{model_forward.1} parent=1 // loop_footer
      %s23 = sadd.s32 1, %s19
    $region7: #{model_forward.1} parent=1 // loop_footer_branch
      %18 = sbr.rel target = $region3
    $region8: #{model_forward.1} parent=1 // loop_exit
      _

</llo_original>
